<compile_context>
chip_gen: v5e
topology: v5e:2x2
jax: 0.10.0
libtpu: 0.0.40
codegen_flags: <defaults>
</compile_context>

<pallas_src>
import functools

import jax
import jax.numpy as jnp
from jax import lax
from jax.experimental import pallas as pl
from jax.experimental.pallas import tpu as pltpu

_MAX_ROW_TILE = 512  # multiple of 8/128; keeps double-buffered tiles well inside
                     # the v7x 32 MiB scoped-VMEM budget even for the 1000-wide layer.


def _row_tile(n):
    # Full-extent block when small (always legal), otherwise a 512-row tile.
    return n if n <= _MAX_ROW_TILE else _MAX_ROW_TILE


# --------------------------------------------------------------------------- #
# Fused MLP tower kernel:  act3(act2(act1(x@W1+b1)@W2+b2)@W3+b3)
# --------------------------------------------------------------------------- #
def _make_mlp_kernel(acts):
    n_layers = len(acts)

    def kernel(*refs):
        x_ref, out_ref = refs[0], refs[-1]
        h = x_ref[...].astype(jnp.float32)          # compute in f32 (v5e-safe)
        for l in range(n_layers):
            w = refs[1 + 2 * l][...].astype(jnp.float32)
            b = refs[2 + 2 * l][...].astype(jnp.float32)
            h = acts[l](jnp.dot(h, w, preferred_element_type=jnp.float32) + b)
        out_ref[...] = h.astype(out_ref.dtype)

    return kernel


def mlp_tower(x, layers, acts, out_dtype=None):
    """layers: sequence of (w, b); w stored pre-transposed as (in, out), b as (1, out)."""
    n, f_in = x.shape
    out_dim = layers[-1][0].shape[1]
    out_dtype = out_dtype if out_dtype is not None else x.dtype
    tb = _row_tile(n)
    grid = (pl.cdiv(n, tb),)

    in_specs = [pl.BlockSpec((tb, f_in), lambda i: (i, 0))]
    flat = []
    for w, b in layers:
        flat += [w, b]
        in_specs += [pl.BlockSpec(w.shape, lambda i: (0, 0)),   # weights resident
                     pl.BlockSpec(b.shape, lambda i: (0, 0))]

    return pl.pallas_call(
        _make_mlp_kernel(tuple(acts)),
        out_shape=jax.ShapeDtypeStruct((n, out_dim), out_dtype),
        grid=grid,
        in_specs=in_specs,
        out_specs=pl.BlockSpec((tb, out_dim), lambda i: (i, 0)),
        compiler_params=pltpu.CompilerParams(
            dimension_semantics=("parallel",)),
    )(x, *flat)


# --------------------------------------------------------------------------- #
# Fused concate tower: mul -> ReLU MLP x3 -> sum over features (lane-dense out)
# --------------------------------------------------------------------------- #
def _make_concate_sum_kernel(acts):
    n_layers = len(acts)

    def kernel(*refs):
        a_ref, b_ref, out_ref = refs[0], refs[1], refs[-1]
        h = a_ref[...].astype(jnp.float32) * b_ref[...].astype(jnp.float32)
        for l in range(n_layers):
            w = refs[2 + 2 * l][...].astype(jnp.float32)
            b = refs[3 + 2 * l][...].astype(jnp.float32)
            h = acts[l](jnp.dot(h, w, preferred_element_type=jnp.float32) + b)
        # torch.sum(f_concate_rep, 1).float(); batch kept on the 128-lane axis.
        out_ref[...] = jnp.sum(h, axis=1)[None, :].astype(out_ref.dtype)

    return kernel


def concate_tower_sum(f_urep_ver2, f_irep, layers, acts):
    n, h_dim = f_irep.shape
    tb = _row_tile(n)
    grid = (pl.cdiv(n, tb),)

    in_specs = [pl.BlockSpec((tb, h_dim), lambda i: (i, 0)),
                pl.BlockSpec((tb, h_dim), lambda i: (i, 0))]
    flat = []
    for w, b in layers:
        flat += [w, b]
        in_specs += [pl.BlockSpec(w.shape, lambda i: (0, 0)),
                     pl.BlockSpec(b.shape, lambda i: (0, 0))]

    out = pl.pallas_call(
        _make_concate_sum_kernel(tuple(acts)),
        out_shape=jax.ShapeDtypeStruct((1, n), jnp.float32),
        grid=grid,
        in_specs=in_specs,
        out_specs=pl.BlockSpec((1, tb), lambda i: (0, i)),
        compiler_params=pltpu.CompilerParams(
            dimension_semantics=("parallel",)),
    )(f_urep_ver2, f_irep, *flat)
    return out.reshape(n)  # (B,) float32, matching torch .float()


# --------------------------------------------------------------------------- #
# Fused attention / exp-normalisation / aggregation kernel
# --------------------------------------------------------------------------- #
def _make_attention_kernel(attention_type):
    def kernel(intex_ref, f_irep_ref, f_urep_ref, out_ref):
        a = intex_ref[...].astype(jnp.float32)        # (B, S)
        fi = f_irep_ref[...].astype(jnp.float32)      # (B, H)
        fu = f_urep_ref[...].astype(jnp.float32)      # (S, H)

        # XX = intex_mat.T @ f_irep  (transpose-LHS contraction, MXU-native)
        xx = lax.dot_general(a, fi, (((0,), (0,)), ((), ())),
                             preferred_element_type=jnp.float32)   # (S, H)

        if attention_type == 'dot':
            z = jnp.sum(xx * fu, axis=1, keepdims=True)            # (S, 1)
        elif attention_type == 'cosin':
            eps = 1e-6
            num = jnp.sum(xx * fu, axis=1, keepdims=True)
            nx = jnp.sqrt(jnp.sum(xx * xx, axis=1, keepdims=True))
            nu = jnp.sqrt(jnp.sum(fu * fu, axis=1, keepdims=True))
            z = num / jnp.maximum(nx * nu, eps)
        else:
            # TODO(synk): attention_type='general' uses self.attention, which the
            # original PyTorch module never defines; no faithful translation exists.
            raise NotImplementedError(attention_type)

        z = jnp.exp(z)                                             # (S, 1), EUP
        sum_a = jnp.dot(a, z, preferred_element_type=jnp.float32)  # (B, 1)
        sum_b = lax.dot_general(a, sum_a, (((0,), (0,)), ((), ())),
                                preferred_element_type=jnp.float32)  # (S, 1)
        norm_z = z / sum_b
        f_urep2 = norm_z * fu                                      # (S, H)
        out_ref[...] = jnp.dot(a, f_urep2,
                               preferred_element_type=jnp.float32).astype(out_ref.dtype)

    return kernel


def attention_aggregate(intex_mat, f_irep, f_urep, attention_type):
    b, _ = intex_mat.shape
    h = f_urep.shape[1]
    vmem = pl.BlockSpec(memory_space=pltpu.MemorySpace.VMEM)
    return pl.pallas_call(
        _make_attention_kernel(attention_type),
        out_shape=jax.ShapeDtypeStruct((b, h), f_urep.dtype),
        in_specs=[vmem, vmem, vmem],
        out_specs=vmem,
    )(intex_mat, f_irep, f_urep)


# --------------------------------------------------------------------------- #
# Parameters + forward
# --------------------------------------------------------------------------- #
def init_params(key, item_feature, interaction_matrix, concate_matrix=100,
                mlp_user=False, dtype=jnp.float32):
    dims = {
        'item':   [(item_feature, 250), (250, 200), (200, 100)],
        'inter':  [(interaction_matrix, 1000), (1000, 500), (500, 100)],
        'concat': [(concate_matrix, 80), (80, 60), (60, 40)],
    }
    if mlp_user:
        dims['user_mlp'] = [(100, 100), (100, 100)]
    params = {}
    for name, shapes in dims.items():
        layers = []
        for fan_in, fan_out in shapes:
            key, kw, kb = jax.random.split(key, 3)
            bound = float(fan_in) ** -0.5                  # PyTorch Linear default init
            # Weights stored pre-transposed (in, out) = torch W.T; bias as (1, out).
            w = jax.random.uniform(kw, (fan_in, fan_out), dtype, -bound, bound)
            b = jax.random.uniform(kb, (1, fan_out), dtype, -bound, bound)
            layers.append((w, b))
        params[name] = layers
    return params


@functools.partial(jax.jit, static_argnames=('attention_type', 'mlp_user'))
def flexible_model_forward(params, u_inp_vocabs, i_inp_vocab, intex_mat,
                           interaction_matrix_batch,
                           attention_type='dot', mlp_user=False):
    tanh3 = (jnp.tanh,) * 3
    relu = lambda v: jnp.maximum(v, 0.0)
    relu3 = (relu,) * 3

    f_urep = mlp_tower(u_inp_vocabs, params['item'], tanh3)              # (S, 100)
    f_irep = mlp_tower(i_inp_vocab, params['item'], tanh3)               # (B, 100)
    f_urep_ver2 = mlp_tower(interaction_matrix_batch, params['inter'], relu3)  # (B, 100)

    # concate = mul(f_urep_ver2, f_irep); forward_once3; sum over features
    f_concate_rep = concate_tower_sum(f_urep_ver2, f_irep,
                                      params['concat'], relu3)           # (B,)

    # attention-style aggregation of support-item reps into per-batch user reps
    f_urep_out = attention_aggregate(intex_mat, f_irep, f_urep, attention_type)  # (B, 100)
    if mlp_user:
        f_urep_out = mlp_tower(f_urep_out, params['user_mlp'], (jnp.tanh, jnp.tanh))

    return f_urep_out, f_irep, f_concate_rep


if __name__ == "__main__":
    item_feature, interaction_matrix, concate_matrix = 32, 64, 100
    B, S = 4, 8                                   # batch items, total support items
    root = jax.random.PRNGKey(0)
    kp, k1, k2, k3 = jax.random.split(root, 4)

    params = init_params(kp, item_feature, interaction_matrix, concate_matrix)

    u_inp_vocabs = jax.random.normal(k1, (S, item_feature), jnp.float32)
    i_inp_vocab = jax.random.normal(k2, (B, item_feature), jnp.float32)
    interaction_matrix_batch = jax.random.normal(k3, (B, interaction_matrix), jnp.float32)
    # Index matrix: each support item belongs to one batch row (keeps the
    # exp-normalisation denominator strictly positive, as in the real data).
    intex_mat = (jnp.arange(S)[None, :] % B == jnp.arange(B)[:, None]).astype(jnp.float32)

    f_urep, f_irep, f_concate_rep = flexible_model_forward(
        params, u_inp_vocabs, i_inp_vocab, intex_mat, interaction_matrix_batch)
    jax.block_until_ready((f_urep, f_irep, f_concate_rep))

    assert f_urep.shape == (B, 100)
    assert f_irep.shape == (B, 100)
    assert f_concate_rep.shape == (B,)
    assert bool(jnp.isfinite(f_urep).all()
                & jnp.isfinite(f_irep).all()
                & jnp.isfinite(f_concate_rep).all())
    print("KERNEL_OK")
</pallas_src>

<mosaic_0001>
module attributes {stable_mosaic.version = 11 : i64} {
  func.func @kernel(%arg0: memref<4x8xf32, #tpu.memory_space<vmem>>, %arg1: memref<4x100xf32, #tpu.memory_space<vmem>>, %arg2: memref<8x100xf32, #tpu.memory_space<vmem>>, %arg3: memref<4x100xf32, #tpu.memory_space<vmem>>) attributes {dimension_semantics = [], scalar_prefetch = 0 : i64, scratch_operands = 0 : i64, tpu.core_type = #tpu.core_type<tc>} {
    %c0 = arith.constant 0 : index
    %c0_0 = arith.constant 0 : index
    %0 = vector.load %arg0[%c0, %c0_0] : memref<4x8xf32, #tpu.memory_space<vmem>>, vector<4x8xf32>
    %c0_1 = arith.constant 0 : index
    %c0_2 = arith.constant 0 : index
    %1 = vector.load %arg1[%c0_1, %c0_2] : memref<4x100xf32, #tpu.memory_space<vmem>>, vector<4x100xf32>
    %c0_3 = arith.constant 0 : index
    %c0_4 = arith.constant 0 : index
    %2 = vector.load %arg2[%c0_3, %c0_4] : memref<8x100xf32, #tpu.memory_space<vmem>>, vector<8x100xf32>
    %cst = arith.constant dense<0.000000e+00> : vector<8x100xf32>
    %3 = tpu.matmul %0, %1, %cst {dimension_numbers = #tpu.dot_dimension_numbers<[0], [0], [1], [1], [0, 1, 1, 1], [], []>} : vector<4x8xf32>, vector<4x100xf32>, vector<8x100xf32> -> vector<8x100xf32>
    %4 = arith.mulf %3, %2 : vector<8x100xf32>
    %cst_5 = arith.constant dense<0.000000e+00> : vector<8xf32>
    %5 = vector.multi_reduction <add>, %4, %cst_5 [1] : vector<8x100xf32> to vector<8xf32>
    %6 = vector.shape_cast %5 : vector<8xf32> to vector<8x1xf32>
    %7 = math.exp %6 : vector<8x1xf32>
    %cst_6 = arith.constant dense<0.000000e+00> : vector<4x1xf32>
    %8 = tpu.matmul %0, %7, %cst_6 {dimension_numbers = #tpu.dot_dimension_numbers<[1], [0], [0], [1], [0, 0, 1, 1], [], []>} : vector<4x8xf32>, vector<8x1xf32>, vector<4x1xf32> -> vector<4x1xf32>
    %cst_7 = arith.constant dense<0.000000e+00> : vector<8x1xf32>
    %9 = tpu.matmul %0, %8, %cst_7 {dimension_numbers = #tpu.dot_dimension_numbers<[0], [0], [1], [1], [0, 1, 1, 1], [], []>} : vector<4x8xf32>, vector<4x1xf32>, vector<8x1xf32> -> vector<8x1xf32>
    %10 = arith.divf %7, %9 : vector<8x1xf32>
    %11 = vector.broadcast %10 : vector<8x1xf32> to vector<8x100xf32>
    %12 = arith.mulf %11, %2 : vector<8x100xf32>
    %cst_8 = arith.constant dense<0.000000e+00> : vector<4x100xf32>
    %13 = tpu.matmul %0, %12, %cst_8 {dimension_numbers = #tpu.dot_dimension_numbers<[1], [0], [0], [1], [0, 0, 1, 1], [], []>} : vector<4x8xf32>, vector<8x100xf32>, vector<4x100xf32> -> vector<4x100xf32>
    %c0_9 = arith.constant 0 : index
    %c0_10 = arith.constant 0 : index
    %14 = vector.load %arg3[%c0_9, %c0_10] : memref<4x100xf32, #tpu.memory_space<vmem>>, vector<4x100xf32>
    tpu.vector_store %arg3[%c0_9, %c0_10], %13 {strides = array<i32>} : memref<4x100xf32, #tpu.memory_space<vmem>>, vector<4x100xf32>,
    return
  }
}

module attributes {stable_mosaic.version = 11 : i64} {
  func.func @kernel(%arg0: i32, %arg1: memref<4x32xf32, #tpu.memory_space<vmem>>, %arg2: memref<32x250xf32, #tpu.memory_space<vmem>>, %arg3: memref<1x250xf32, #tpu.memory_space<vmem>>, %arg4: memref<250x200xf32, #tpu.memory_space<vmem>>, %arg5: memref<1x200xf32, #tpu.memory_space<vmem>>, %arg6: memref<200x100xf32, #tpu.memory_space<vmem>>, %arg7: memref<1x100xf32, #tpu.memory_space<vmem>>, %arg8: memref<4x100xf32, #tpu.memory_space<vmem>>) attributes {dimension_semantics = [#tpu.dimension_semantics<parallel>], iteration_bounds = array<i64: 1>, scalar_prefetch = 0 : i64, scratch_operands = 0 : i64, tpu.core_type = #tpu.core_type<tc>, window_params = [{transform_indices = @transform_0, window_bounds = array<i64: 4, 32>}, {pipeline_mode = #tpu.pipeline_mode<synchronous>, transform_indices = @transform_1, window_bounds = array<i64: 32, 250>}, {pipeline_mode = #tpu.pipeline_mode<synchronous>, transform_indices = @transform_2, window_bounds = array<i64: 1, 250>}, {pipeline_mode = #tpu.pipeline_mode<synchronous>, transform_indices = @transform_3, window_bounds = array<i64: 250, 200>}, {pipeline_mode = #tpu.pipeline_mode<synchronous>, transform_indices = @transform_4, window_bounds = array<i64: 1, 200>}, {pipeline_mode = #tpu.pipeline_mode<synchronous>, transform_indices = @transform_5, window_bounds = array<i64: 200, 100>}, {pipeline_mode = #tpu.pipeline_mode<synchronous>, transform_indices = @transform_6, window_bounds = array<i64: 1, 100>}, {transform_indices = @transform_7, window_bounds = array<i64: 4, 100>}]} {
    %c0 = arith.constant 0 : index
    %c0_0 = arith.constant 0 : index
    %0 = vector.load %arg1[%c0, %c0_0] : memref<4x32xf32, #tpu.memory_space<vmem>>, vector<4x32xf32>
    %c0_1 = arith.constant 0 : index
    %c0_2 = arith.constant 0 : index
    %1 = vector.load %arg2[%c0_1, %c0_2] : memref<32x250xf32, #tpu.memory_space<vmem>>, vector<32x250xf32>
    %c0_3 = arith.constant 0 : index
    %c0_4 = arith.constant 0 : index
    %2 = vector.load %arg3[%c0_3, %c0_4] : memref<1x250xf32, #tpu.memory_space<vmem>>, vector<1x250xf32>
    %cst = arith.constant dense<0.000000e+00> : vector<4x250xf32>
    %3 = tpu.matmul %0, %1, %cst {dimension_numbers = #tpu.dot_dimension_numbers<[1], [0], [0], [1], [0, 0, 1, 1], [], []>} : vector<4x32xf32>, vector<32x250xf32>, vector<4x250xf32> -> vector<4x250xf32>
    %4 = vector.broadcast %2 : vector<1x250xf32> to vector<4x250xf32>
    %5 = arith.addf %3, %4 : vector<4x250xf32>
    %6 = math.tanh %5 : vector<4x250xf32>
    %c0_5 = arith.constant 0 : index
    %c0_6 = arith.constant 0 : index
    %7 = vector.load %arg4[%c0_5, %c0_6] : memref<250x200xf32, #tpu.memory_space<vmem>>, vector<250x200xf32>
    %c0_7 = arith.constant 0 : index
    %c0_8 = arith.constant 0 : index
    %8 = vector.load %arg5[%c0_7, %c0_8] : memref<1x200xf32, #tpu.memory_space<vmem>>, vector<1x200xf32>
    %cst_9 = arith.constant dense<0.000000e+00> : vector<4x200xf32>
    %9 = tpu.matmul %6, %7, %cst_9 {dimension_numbers = #tpu.dot_dimension_numbers<[1], [0], [0], [1], [0, 0, 1, 1], [], []>} : vector<4x250xf32>, vector<250x200xf32>, vector<4x200xf32> -> vector<4x200xf32>
    %10 = vector.broadcast %8 : vector<1x200xf32> to vector<4x200xf32>
    %11 = arith.addf %9, %10 : vector<4x200xf32>
    %12 = math.tanh %11 : vector<4x200xf32>
    %c0_10 = arith.constant 0 : index
    %c0_11 = arith.constant 0 : index
    %13 = vector.load %arg6[%c0_10, %c0_11] : memref<200x100xf32, #tpu.memory_space<vmem>>, vector<200x100xf32>
    %c0_12 = arith.constant 0 : index
    %c0_13 = arith.constant 0 : index
    %14 = vector.load %arg7[%c0_12, %c0_13] : memref<1x100xf32, #tpu.memory_space<vmem>>, vector<1x100xf32>
    %cst_14 = arith.constant dense<0.000000e+00> : vector<4x100xf32>
    %15 = tpu.matmul %12, %13, %cst_14 {dimension_numbers = #tpu.dot_dimension_numbers<[1], [0], [0], [1], [0, 0, 1, 1], [], []>} : vector<4x200xf32>, vector<200x100xf32>, vector<4x100xf32> -> vector<4x100xf32>
    %16 = vector.broadcast %14 : vector<1x100xf32> to vector<4x100xf32>
    %17 = arith.addf %15, %16 : vector<4x100xf32>
    %18 = math.tanh %17 : vector<4x100xf32>
    %c0_15 = arith.constant 0 : index
    %c0_16 = arith.constant 0 : index
    %19 = vector.load %arg8[%c0_15, %c0_16] : memref<4x100xf32, #tpu.memory_space<vmem>>, vector<4x100xf32>
    tpu.vector_store %arg8[%c0_15, %c0_16], %18 {strides = array<i32>} : memref<4x100xf32, #tpu.memory_space<vmem>>, vector<4x100xf32>,
    return
  }
  func.func @transform_0(%arg0: i32) -> (i32, i32) {
    %c0_i32 = arith.constant 0 : i32
    %c0_i32_0 = arith.constant 0 : i32
    return %arg0, %c0_i32 : i32, i32
  }
  func.func @transform_1(%arg0: i32) -> (i32, i32) {
    %c0_i32 = arith.constant 0 : i32
    %c0_i32_0 = arith.constant 0 : i32
    %c0_i32_1 = arith.constant 0 : i32
    return %c0_i32, %c0_i32_0 : i32, i32
  }
  func.func @transform_2(%arg0: i32) -> (i32, i32) {
    %c0_i32 = arith.constant 0 : i32
    %c0_i32_0 = arith.constant 0 : i32
    %c0_i32_1 = arith.constant 0 : i32
    return %c0_i32, %c0_i32_0 : i32, i32
  }
  func.func @transform_3(%arg0: i32) -> (i32, i32) {
    %c0_i32 = arith.constant 0 : i32
    %c0_i32_0 = arith.constant 0 : i32
    %c0_i32_1 = arith.constant 0 : i32
    return %c0_i32, %c0_i32_0 : i32, i32
  }
  func.func @transform_4(%arg0: i32) -> (i32, i32) {
    %c0_i32 = arith.constant 0 : i32
    %c0_i32_0 = arith.constant 0 : i32
    %c0_i32_1 = arith.constant 0 : i32
    return %c0_i32, %c0_i32_0 : i32, i32
  }
  func.func @transform_5(%arg0: i32) -> (i32, i32) {
    %c0_i32 = arith.constant 0 : i32
    %c0_i32_0 = arith.constant 0 : i32
    %c0_i32_1 = arith.constant 0 : i32
    return %c0_i32, %c0_i32_0 : i32, i32
  }
  func.func @transform_6(%arg0: i32) -> (i32, i32) {
    %c0_i32 = arith.constant 0 : i32
    %c0_i32_0 = arith.constant 0 : i32
    %c0_i32_1 = arith.constant 0 : i32
    return %c0_i32, %c0_i32_0 : i32, i32
  }
  func.func @transform_7(%arg0: i32) -> (i32, i32) {
    %c0_i32 = arith.constant 0 : i32
    %c0_i32_0 = arith.constant 0 : i32
    return %arg0, %c0_i32 : i32, i32
  }
}

module attributes {stable_mosaic.version = 11 : i64} {
  func.func @kernel(%arg0: i32, %arg1: memref<8x32xf32, #tpu.memory_space<vmem>>, %arg2: memref<32x250xf32, #tpu.memory_space<vmem>>, %arg3: memref<1x250xf32, #tpu.memory_space<vmem>>, %arg4: memref<250x200xf32, #tpu.memory_space<vmem>>, %arg5: memref<1x200xf32, #tpu.memory_space<vmem>>, %arg6: memref<200x100xf32, #tpu.memory_space<vmem>>, %arg7: memref<1x100xf32, #tpu.memory_space<vmem>>, %arg8: memref<8x100xf32, #tpu.memory_space<vmem>>) attributes {dimension_semantics = [#tpu.dimension_semantics<parallel>], iteration_bounds = array<i64: 1>, scalar_prefetch = 0 : i64, scratch_operands = 0 : i64, tpu.core_type = #tpu.core_type<tc>, window_params = [{transform_indices = @transform_0, window_bounds = array<i64: 8, 32>}, {pipeline_mode = #tpu.pipeline_mode<synchronous>, transform_indices = @transform_1, window_bounds = array<i64: 32, 250>}, {pipeline_mode = #tpu.pipeline_mode<synchronous>, transform_indices = @transform_2, window_bounds = array<i64: 1, 250>}, {pipeline_mode = #tpu.pipeline_mode<synchronous>, transform_indices = @transform_3, window_bounds = array<i64: 250, 200>}, {pipeline_mode = #tpu.pipeline_mode<synchronous>, transform_indices = @transform_4, window_bounds = array<i64: 1, 200>}, {pipeline_mode = #tpu.pipeline_mode<synchronous>, transform_indices = @transform_5, window_bounds = array<i64: 200, 100>}, {pipeline_mode = #tpu.pipeline_mode<synchronous>, transform_indices = @transform_6, window_bounds = array<i64: 1, 100>}, {transform_indices = @transform_7, window_bounds = array<i64: 8, 100>}]} {
    %c0 = arith.constant 0 : index
    %c0_0 = arith.constant 0 : index
    %0 = vector.load %arg1[%c0, %c0_0] : memref<8x32xf32, #tpu.memory_space<vmem>>, vector<8x32xf32>
    %c0_1 = arith.constant 0 : index
    %c0_2 = arith.constant 0 : index
    %1 = vector.load %arg2[%c0_1, %c0_2] : memref<32x250xf32, #tpu.memory_space<vmem>>, vector<32x250xf32>
    %c0_3 = arith.constant 0 : index
    %c0_4 = arith.constant 0 : index
    %2 = vector.load %arg3[%c0_3, %c0_4] : memref<1x250xf32, #tpu.memory_space<vmem>>, vector<1x250xf32>
    %cst = arith.constant dense<0.000000e+00> : vector<8x250xf32>
    %3 = tpu.matmul %0, %1, %cst {dimension_numbers = #tpu.dot_dimension_numbers<[1], [0], [0], [1], [0, 0, 1, 1], [], []>} : vector<8x32xf32>, vector<32x250xf32>, vector<8x250xf32> -> vector<8x250xf32>
    %4 = vector.broadcast %2 : vector<1x250xf32> to vector<8x250xf32>
    %5 = arith.addf %3, %4 : vector<8x250xf32>
    %6 = math.tanh %5 : vector<8x250xf32>
    %c0_5 = arith.constant 0 : index
    %c0_6 = arith.constant 0 : index
    %7 = vector.load %arg4[%c0_5, %c0_6] : memref<250x200xf32, #tpu.memory_space<vmem>>, vector<250x200xf32>
    %c0_7 = arith.constant 0 : index
    %c0_8 = arith.constant 0 : index
    %8 = vector.load %arg5[%c0_7, %c0_8] : memref<1x200xf32, #tpu.memory_space<vmem>>, vector<1x200xf32>
    %cst_9 = arith.constant dense<0.000000e+00> : vector<8x200xf32>
    %9 = tpu.matmul %6, %7, %cst_9 {dimension_numbers = #tpu.dot_dimension_numbers<[1], [0], [0], [1], [0, 0, 1, 1], [], []>} : vector<8x250xf32>, vector<250x200xf32>, vector<8x200xf32> -> vector<8x200xf32>
    %10 = vector.broadcast %8 : vector<1x200xf32> to vector<8x200xf32>
    %11 = arith.addf %9, %10 : vector<8x200xf32>
    %12 = math.tanh %11 : vector<8x200xf32>
    %c0_10 = arith.constant 0 : index
    %c0_11 = arith.constant 0 : index
    %13 = vector.load %arg6[%c0_10, %c0_11] : memref<200x100xf32, #tpu.memory_space<vmem>>, vector<200x100xf32>
    %c0_12 = arith.constant 0 : index
    %c0_13 = arith.constant 0 : index
    %14 = vector.load %arg7[%c0_12, %c0_13] : memref<1x100xf32, #tpu.memory_space<vmem>>, vector<1x100xf32>
    %cst_14 = arith.constant dense<0.000000e+00> : vector<8x100xf32>
    %15 = tpu.matmul %12, %13, %cst_14 {dimension_numbers = #tpu.dot_dimension_numbers<[1], [0], [0], [1], [0, 0, 1, 1], [], []>} : vector<8x200xf32>, vector<200x100xf32>, vector<8x100xf32> -> vector<8x100xf32>
    %16 = vector.broadcast %14 : vector<1x100xf32> to vector<8x100xf32>
    %17 = arith.addf %15, %16 : vector<8x100xf32>
    %18 = math.tanh %17 : vector<8x100xf32>
    %c0_15 = arith.constant 0 : index
    %c0_16 = arith.constant 0 : index
    %19 = vector.load %arg8[%c0_15, %c0_16] : memref<8x100xf32, #tpu.memory_space<vmem>>, vector<8x100xf32>
    tpu.vector_store %arg8[%c0_15, %c0_16], %18 {strides = array<i32>} : memref<8x100xf32, #tpu.memory_space<vmem>>, vector<8x100xf32>,
    return
  }
  func.func @transform_0(%arg0: i32) -> (i32, i32) {
    %c0_i32 = arith.constant 0 : i32
    %c0_i32_0 = arith.constant 0 : i32
    return %arg0, %c0_i32 : i32, i32
  }
  func.func @transform_1(%arg0: i32) -> (i32, i32) {
    %c0_i32 = arith.constant 0 : i32
    %c0_i32_0 = arith.constant 0 : i32
    %c0_i32_1 = arith.constant 0 : i32
    return %c0_i32, %c0_i32_0 : i32, i32
  }
  func.func @transform_2(%arg0: i32) -> (i32, i32) {
    %c0_i32 = arith.constant 0 : i32
    %c0_i32_0 = arith.constant 0 : i32
    %c0_i32_1 = arith.constant 0 : i32
    return %c0_i32, %c0_i32_0 : i32, i32
  }
  func.func @transform_3(%arg0: i32) -> (i32, i32) {
    %c0_i32 = arith.constant 0 : i32
    %c0_i32_0 = arith.constant 0 : i32
    %c0_i32_1 = arith.constant 0 : i32
    return %c0_i32, %c0_i32_0 : i32, i32
  }
  func.func @transform_4(%arg0: i32) -> (i32, i32) {
    %c0_i32 = arith.constant 0 : i32
    %c0_i32_0 = arith.constant 0 : i32
    %c0_i32_1 = arith.constant 0 : i32
    return %c0_i32, %c0_i32_0 : i32, i32
  }
  func.func @transform_5(%arg0: i32) -> (i32, i32) {
    %c0_i32 = arith.constant 0 : i32
    %c0_i32_0 = arith.constant 0 : i32
    %c0_i32_1 = arith.constant 0 : i32
    return %c0_i32, %c0_i32_0 : i32, i32
  }
  func.func @transform_6(%arg0: i32) -> (i32, i32) {
    %c0_i32 = arith.constant 0 : i32
    %c0_i32_0 = arith.constant 0 : i32
    %c0_i32_1 = arith.constant 0 : i32
    return %c0_i32, %c0_i32_0 : i32, i32
  }
  func.func @transform_7(%arg0: i32) -> (i32, i32) {
    %c0_i32 = arith.constant 0 : i32
    %c0_i32_0 = arith.constant 0 : i32
    return %arg0, %c0_i32 : i32, i32
  }
}

module attributes {stable_mosaic.version = 11 : i64} {
  func.func @kernel(%arg0: i32, %arg1: memref<4x64xf32, #tpu.memory_space<vmem>>, %arg2: memref<64x1000xf32, #tpu.memory_space<vmem>>, %arg3: memref<1x1000xf32, #tpu.memory_space<vmem>>, %arg4: memref<1000x500xf32, #tpu.memory_space<vmem>>, %arg5: memref<1x500xf32, #tpu.memory_space<vmem>>, %arg6: memref<500x100xf32, #tpu.memory_space<vmem>>, %arg7: memref<1x100xf32, #tpu.memory_space<vmem>>, %arg8: memref<4x100xf32, #tpu.memory_space<vmem>>) attributes {dimension_semantics = [#tpu.dimension_semantics<parallel>], iteration_bounds = array<i64: 1>, scalar_prefetch = 0 : i64, scratch_operands = 0 : i64, tpu.core_type = #tpu.core_type<tc>, window_params = [{transform_indices = @transform_0, window_bounds = array<i64: 4, 64>}, {pipeline_mode = #tpu.pipeline_mode<synchronous>, transform_indices = @transform_1, window_bounds = array<i64: 64, 1000>}, {pipeline_mode = #tpu.pipeline_mode<synchronous>, transform_indices = @transform_2, window_bounds = array<i64: 1, 1000>}, {pipeline_mode = #tpu.pipeline_mode<synchronous>, transform_indices = @transform_3, window_bounds = array<i64: 1000, 500>}, {pipeline_mode = #tpu.pipeline_mode<synchronous>, transform_indices = @transform_4, window_bounds = array<i64: 1, 500>}, {pipeline_mode = #tpu.pipeline_mode<synchronous>, transform_indices = @transform_5, window_bounds = array<i64: 500, 100>}, {pipeline_mode = #tpu.pipeline_mode<synchronous>, transform_indices = @transform_6, window_bounds = array<i64: 1, 100>}, {transform_indices = @transform_7, window_bounds = array<i64: 4, 100>}]} {
    %c0 = arith.constant 0 : index
    %c0_0 = arith.constant 0 : index
    %0 = vector.load %arg1[%c0, %c0_0] : memref<4x64xf32, #tpu.memory_space<vmem>>, vector<4x64xf32>
    %c0_1 = arith.constant 0 : index
    %c0_2 = arith.constant 0 : index
    %1 = vector.load %arg2[%c0_1, %c0_2] : memref<64x1000xf32, #tpu.memory_space<vmem>>, vector<64x1000xf32>
    %c0_3 = arith.constant 0 : index
    %c0_4 = arith.constant 0 : index
    %2 = vector.load %arg3[%c0_3, %c0_4] : memref<1x1000xf32, #tpu.memory_space<vmem>>, vector<1x1000xf32>
    %cst = arith.constant dense<0.000000e+00> : vector<4x1000xf32>
    %3 = tpu.matmul %0, %1, %cst {dimension_numbers = #tpu.dot_dimension_numbers<[1], [0], [0], [1], [0, 0, 1, 1], [], []>} : vector<4x64xf32>, vector<64x1000xf32>, vector<4x1000xf32> -> vector<4x1000xf32>
    %4 = vector.broadcast %2 : vector<1x1000xf32> to vector<4x1000xf32>
    %5 = arith.addf %3, %4 : vector<4x1000xf32>
    %cst_5 = arith.constant 0.000000e+00 : f32
    %6 = vector.broadcast %cst_5 : f32 to vector<4x1000xf32>
    %7 = arith.maximumf %5, %6 : vector<4x1000xf32>
    %c0_6 = arith.constant 0 : index
    %c0_7 = arith.constant 0 : index
    %8 = vector.load %arg4[%c0_6, %c0_7] : memref<1000x500xf32, #tpu.memory_space<vmem>>, vector<1000x500xf32>
    %c0_8 = arith.constant 0 : index
    %c0_9 = arith.constant 0 : index
    %9 = vector.load %arg5[%c0_8, %c0_9] : memref<1x500xf32, #tpu.memory_space<vmem>>, vector<1x500xf32>
    %cst_10 = arith.constant dense<0.000000e+00> : vector<4x500xf32>
    %10 = tpu.matmul %7, %8, %cst_10 {dimension_numbers = #tpu.dot_dimension_numbers<[1], [0], [0], [1], [0, 0, 1, 1], [], []>} : vector<4x1000xf32>, vector<1000x500xf32>, vector<4x500xf32> -> vector<4x500xf32>
    %11 = vector.broadcast %9 : vector<1x500xf32> to vector<4x500xf32>
    %12 = arith.addf %10, %11 : vector<4x500xf32>
    %cst_11 = arith.constant 0.000000e+00 : f32
    %13 = vector.broadcast %cst_11 : f32 to vector<4x500xf32>
    %14 = arith.maximumf %12, %13 : vector<4x500xf32>
    %c0_12 = arith.constant 0 : index
    %c0_13 = arith.constant 0 : index
    %15 = vector.load %arg6[%c0_12, %c0_13] : memref<500x100xf32, #tpu.memory_space<vmem>>, vector<500x100xf32>
    %c0_14 = arith.constant 0 : index
    %c0_15 = arith.constant 0 : index
    %16 = vector.load %arg7[%c0_14, %c0_15] : memref<1x100xf32, #tpu.memory_space<vmem>>, vector<1x100xf32>
    %cst_16 = arith.constant dense<0.000000e+00> : vector<4x100xf32>
    %17 = tpu.matmul %14, %15, %cst_16 {dimension_numbers = #tpu.dot_dimension_numbers<[1], [0], [0], [1], [0, 0, 1, 1], [], []>} : vector<4x500xf32>, vector<500x100xf32>, vector<4x100xf32> -> vector<4x100xf32>
    %18 = vector.broadcast %16 : vector<1x100xf32> to vector<4x100xf32>
    %19 = arith.addf %17, %18 : vector<4x100xf32>
    %cst_17 = arith.constant 0.000000e+00 : f32
    %20 = vector.broadcast %cst_17 : f32 to vector<4x100xf32>
    %21 = arith.maximumf %19, %20 : vector<4x100xf32>
    %c0_18 = arith.constant 0 : index
    %c0_19 = arith.constant 0 : index
    %22 = vector.load %arg8[%c0_18, %c0_19] : memref<4x100xf32, #tpu.memory_space<vmem>>, vector<4x100xf32>
    tpu.vector_store %arg8[%c0_18, %c0_19], %21 {strides = array<i32>} : memref<4x100xf32, #tpu.memory_space<vmem>>, vector<4x100xf32>,
    return
  }
  func.func @transform_0(%arg0: i32) -> (i32, i32) {
    %c0_i32 = arith.constant 0 : i32
    %c0_i32_0 = arith.constant 0 : i32
    return %arg0, %c0_i32 : i32, i32
  }
  func.func @transform_1(%arg0: i32) -> (i32, i32) {
    %c0_i32 = arith.constant 0 : i32
    %c0_i32_0 = arith.constant 0 : i32
    %c0_i32_1 = arith.constant 0 : i32
    return %c0_i32, %c0_i32_0 : i32, i32
  }
  func.func @transform_2(%arg0: i32) -> (i32, i32) {
    %c0_i32 = arith.constant 0 : i32
    %c0_i32_0 = arith.constant 0 : i32
    %c0_i32_1 = arith.constant 0 : i32
    return %c0_i32, %c0_i32_0 : i32, i32
  }
  func.func @transform_3(%arg0: i32) -> (i32, i32) {
    %c0_i32 = arith.constant 0 : i32
    %c0_i32_0 = arith.constant 0 : i32
    %c0_i32_1 = arith.constant 0 : i32
    return %c0_i32, %c0_i32_0 : i32, i32
  }
  func.func @transform_4(%arg0: i32) -> (i32, i32) {
    %c0_i32 = arith.constant 0 : i32
    %c0_i32_0 = arith.constant 0 : i32
    %c0_i32_1 = arith.constant 0 : i32
    return %c0_i32, %c0_i32_0 : i32, i32
  }
  func.func @transform_5(%arg0: i32) -> (i32, i32) {
    %c0_i32 = arith.constant 0 : i32
    %c0_i32_0 = arith.constant 0 : i32
    %c0_i32_1 = arith.constant 0 : i32
    return %c0_i32, %c0_i32_0 : i32, i32
  }
  func.func @transform_6(%arg0: i32) -> (i32, i32) {
    %c0_i32 = arith.constant 0 : i32
    %c0_i32_0 = arith.constant 0 : i32
    %c0_i32_1 = arith.constant 0 : i32
    return %c0_i32, %c0_i32_0 : i32, i32
  }
  func.func @transform_7(%arg0: i32) -> (i32, i32) {
    %c0_i32 = arith.constant 0 : i32
    %c0_i32_0 = arith.constant 0 : i32
    return %arg0, %c0_i32 : i32, i32
  }
}

module attributes {stable_mosaic.version = 11 : i64} {
  func.func @kernel(%arg0: i32, %arg1: memref<4x100xf32, #tpu.memory_space<vmem>>, %arg2: memref<4x100xf32, #tpu.memory_space<vmem>>, %arg3: memref<100x80xf32, #tpu.memory_space<vmem>>, %arg4: memref<1x80xf32, #tpu.memory_space<vmem>>, %arg5: memref<80x60xf32, #tpu.memory_space<vmem>>, %arg6: memref<1x60xf32, #tpu.memory_space<vmem>>, %arg7: memref<60x40xf32, #tpu.memory_space<vmem>>, %arg8: memref<1x40xf32, #tpu.memory_space<vmem>>, %arg9: memref<1x4xf32, #tpu.memory_space<vmem>>) attributes {dimension_semantics = [#tpu.dimension_semantics<parallel>], iteration_bounds = array<i64: 1>, scalar_prefetch = 0 : i64, scratch_operands = 0 : i64, tpu.core_type = #tpu.core_type<tc>, window_params = [{transform_indices = @transform_0, window_bounds = array<i64: 4, 100>}, {transform_indices = @transform_1, window_bounds = array<i64: 4, 100>}, {pipeline_mode = #tpu.pipeline_mode<synchronous>, transform_indices = @transform_2, window_bounds = array<i64: 100, 80>}, {pipeline_mode = #tpu.pipeline_mode<synchronous>, transform_indices = @transform_3, window_bounds = array<i64: 1, 80>}, {pipeline_mode = #tpu.pipeline_mode<synchronous>, transform_indices = @transform_4, window_bounds = array<i64: 80, 60>}, {pipeline_mode = #tpu.pipeline_mode<synchronous>, transform_indices = @transform_5, window_bounds = array<i64: 1, 60>}, {pipeline_mode = #tpu.pipeline_mode<synchronous>, transform_indices = @transform_6, window_bounds = array<i64: 60, 40>}, {pipeline_mode = #tpu.pipeline_mode<synchronous>, transform_indices = @transform_7, window_bounds = array<i64: 1, 40>}, {transform_indices = @transform_8, window_bounds = array<i64: 1, 4>}]} {
    %c0 = arith.constant 0 : index
    %c0_0 = arith.constant 0 : index
    %0 = vector.load %arg1[%c0, %c0_0] : memref<4x100xf32, #tpu.memory_space<vmem>>, vector<4x100xf32>
    %c0_1 = arith.constant 0 : index
    %c0_2 = arith.constant 0 : index
    %1 = vector.load %arg2[%c0_1, %c0_2] : memref<4x100xf32, #tpu.memory_space<vmem>>, vector<4x100xf32>
    %2 = arith.mulf %0, %1 : vector<4x100xf32>
    %c0_3 = arith.constant 0 : index
    %c0_4 = arith.constant 0 : index
    %3 = vector.load %arg3[%c0_3, %c0_4] : memref<100x80xf32, #tpu.memory_space<vmem>>, vector<100x80xf32>
    %c0_5 = arith.constant 0 : index
    %c0_6 = arith.constant 0 : index
    %4 = vector.load %arg4[%c0_5, %c0_6] : memref<1x80xf32, #tpu.memory_space<vmem>>, vector<1x80xf32>
    %cst = arith.constant dense<0.000000e+00> : vector<4x80xf32>
    %5 = tpu.matmul %2, %3, %cst {dimension_numbers = #tpu.dot_dimension_numbers<[1], [0], [0], [1], [0, 0, 1, 1], [], []>} : vector<4x100xf32>, vector<100x80xf32>, vector<4x80xf32> -> vector<4x80xf32>
    %6 = vector.broadcast %4 : vector<1x80xf32> to vector<4x80xf32>
    %7 = arith.addf %5, %6 : vector<4x80xf32>
    %cst_7 = arith.constant 0.000000e+00 : f32
    %8 = vector.broadcast %cst_7 : f32 to vector<4x80xf32>
    %9 = arith.maximumf %7, %8 : vector<4x80xf32>
    %c0_8 = arith.constant 0 : index
    %c0_9 = arith.constant 0 : index
    %10 = vector.load %arg5[%c0_8, %c0_9] : memref<80x60xf32, #tpu.memory_space<vmem>>, vector<80x60xf32>
    %c0_10 = arith.constant 0 : index
    %c0_11 = arith.constant 0 : index
    %11 = vector.load %arg6[%c0_10, %c0_11] : memref<1x60xf32, #tpu.memory_space<vmem>>, vector<1x60xf32>
    %cst_12 = arith.constant dense<0.000000e+00> : vector<4x60xf32>
    %12 = tpu.matmul %9, %10, %cst_12 {dimension_numbers = #tpu.dot_dimension_numbers<[1], [0], [0], [1], [0, 0, 1, 1], [], []>} : vector<4x80xf32>, vector<80x60xf32>, vector<4x60xf32> -> vector<4x60xf32>
    %13 = vector.broadcast %11 : vector<1x60xf32> to vector<4x60xf32>
    %14 = arith.addf %12, %13 : vector<4x60xf32>
    %cst_13 = arith.constant 0.000000e+00 : f32
    %15 = vector.broadcast %cst_13 : f32 to vector<4x60xf32>
    %16 = arith.maximumf %14, %15 : vector<4x60xf32>
    %c0_14 = arith.constant 0 : index
    %c0_15 = arith.constant 0 : index
    %17 = vector.load %arg7[%c0_14, %c0_15] : memref<60x40xf32, #tpu.memory_space<vmem>>, vector<60x40xf32>
    %c0_16 = arith.constant 0 : index
    %c0_17 = arith.constant 0 : index
    %18 = vector.load %arg8[%c0_16, %c0_17] : memref<1x40xf32, #tpu.memory_space<vmem>>, vector<1x40xf32>
    %cst_18 = arith.constant dense<0.000000e+00> : vector<4x40xf32>
    %19 = tpu.matmul %16, %17, %cst_18 {dimension_numbers = #tpu.dot_dimension_numbers<[1], [0], [0], [1], [0, 0, 1, 1], [], []>} : vector<4x60xf32>, vector<60x40xf32>, vector<4x40xf32> -> vector<4x40xf32>
    %20 = vector.broadcast %18 : vector<1x40xf32> to vector<4x40xf32>
    %21 = arith.addf %19, %20 : vector<4x40xf32>
    %cst_19 = arith.constant 0.000000e+00 : f32
    %22 = vector.broadcast %cst_19 : f32 to vector<4x40xf32>
    %23 = arith.maximumf %21, %22 : vector<4x40xf32>
    %cst_20 = arith.constant dense<0.000000e+00> : vector<4xf32>
    %24 = vector.multi_reduction <add>, %23, %cst_20 [1] : vector<4x40xf32> to vector<4xf32>
    %25 = vector.shape_cast %24 : vector<4xf32> to vector<1x4xf32>
    %c0_21 = arith.constant 0 : index
    %c0_22 = arith.constant 0 : index
    %26 = vector.load %arg9[%c0_21, %c0_22] : memref<1x4xf32, #tpu.memory_space<vmem>>, vector<1x4xf32>
    tpu.vector_store %arg9[%c0_21, %c0_22], %25 {strides = array<i32>} : memref<1x4xf32, #tpu.memory_space<vmem>>, vector<1x4xf32>,
    return
  }
  func.func @transform_0(%arg0: i32) -> (i32, i32) {
    %c0_i32 = arith.constant 0 : i32
    %c0_i32_0 = arith.constant 0 : i32
    return %arg0, %c0_i32 : i32, i32
  }
  func.func @transform_1(%arg0: i32) -> (i32, i32) {
    %c0_i32 = arith.constant 0 : i32
    %c0_i32_0 = arith.constant 0 : i32
    return %arg0, %c0_i32 : i32, i32
  }
  func.func @transform_2(%arg0: i32) -> (i32, i32) {
    %c0_i32 = arith.constant 0 : i32
    %c0_i32_0 = arith.constant 0 : i32
    %c0_i32_1 = arith.constant 0 : i32
    return %c0_i32, %c0_i32_0 : i32, i32
  }
  func.func @transform_3(%arg0: i32) -> (i32, i32) {
    %c0_i32 = arith.constant 0 : i32
    %c0_i32_0 = arith.constant 0 : i32
    %c0_i32_1 = arith.constant 0 : i32
    return %c0_i32, %c0_i32_0 : i32, i32
  }
  func.func @transform_4(%arg0: i32) -> (i32, i32) {
    %c0_i32 = arith.constant 0 : i32
    %c0_i32_0 = arith.constant 0 : i32
    %c0_i32_1 = arith.constant 0 : i32
    return %c0_i32, %c0_i32_0 : i32, i32
  }
  func.func @transform_5(%arg0: i32) -> (i32, i32) {
    %c0_i32 = arith.constant 0 : i32
    %c0_i32_0 = arith.constant 0 : i32
    %c0_i32_1 = arith.constant 0 : i32
    return %c0_i32, %c0_i32_0 : i32, i32
  }
  func.func @transform_6(%arg0: i32) -> (i32, i32) {
    %c0_i32 = arith.constant 0 : i32
    %c0_i32_0 = arith.constant 0 : i32
    %c0_i32_1 = arith.constant 0 : i32
    return %c0_i32, %c0_i32_0 : i32, i32
  }
  func.func @transform_7(%arg0: i32) -> (i32, i32) {
    %c0_i32 = arith.constant 0 : i32
    %c0_i32_0 = arith.constant 0 : i32
    %c0_i32_1 = arith.constant 0 : i32
    return %c0_i32, %c0_i32_0 : i32, i32
  }
  func.func @transform_8(%arg0: i32) -> (i32, i32) {
    %c0_i32 = arith.constant 0 : i32
    %c0_i32_0 = arith.constant 0 : i32
    return %c0_i32, %arg0 : i32, i32
  }
}

</mosaic_0001>

<llo_original>
// kernel: flexible_model_forward.9
$region0: #{flexible_model_forward.9}
  #allocation0 [shape = 'u32[]', space=smem, size = 0x4, offset = 0x4, fixed_abs, tag = 'smem constant byte address 0x4 - core index']
  #allocation1 [shape = 'u32[72,128]{1,0:T(1,128)}', space=vmem, size = 0x9000, scoped, tag = 'internal scratch']
  %s0 = inlined_call_operand.hbm [shape: f32[4,8], index: 0, kind: input, shape index: {}]
  %s1 = inlined_call_operand.vmem [shape: f32[4,100], index: 1, kind: input, shape index: {}]
  %s2 = inlined_call_operand.vmem [shape: f32[8,100], index: 2, kind: input, shape index: {}]
  %s3 = inlined_call_operand.hbm [shape: f32[4,100], index: 3, kind: output, shape index: {}]
  %s4 = sld [smem:[#allocation0]]
  $region26: #{flexible_model_forward.9} parent=0
    _
  %s6 = ssub.s32 1, %s4
  %s7 = scalar_select 0, %s6, %s4
  $region1: #{flexible_model_forward.9} parent=0
    #allocation2 [shape = 'u8[2048]{0}', space=vmem, size = 0x800, scoped, tag = 'input window, operand 0, single buffered']
    #allocation3 [shape = 's32[1]{0}', space=sflag, size = 0x4, scoped, tag = 'scoped memory for flexible_model_forward.9']
    #allocation4 [shape = 's32[1]{0}', space=sflag, size = 0x4, scoped, tag = 'scoped memory for flexible_model_forward.9']
    #allocation5 [shape = 'u8[2048]{0}', space=vmem, size = 0x800, scoped, tag = 'output window, operand 0, single buffered']
    %8 = vsyncpa [#allocation3], 0
    %9 = vsyncpa [#allocation4], 0
    // Predicated region
    $region2: #{flexible_model_forward.9} parent=1 // pred_check
      _
    $region3: #{flexible_model_forward.9} parent=1 // pred_check_branch
      %11 = sbr.rel (0) target = $region5
    $region4: #{flexible_model_forward.9} parent=1 // pred_region
      %13 = vsyncadd [#allocation3], 0
      %s15 = sshll.u32 %s0, 4
      %s16 = int_to_ptr.hbm [resolvable:$true] %s15
      %s17 = sshll.u32 [#allocation2], 4
      %s18 = int_to_ptr.vmem [resolvable:$true] %s17
      %20 = dma.hbm_to_vmem [thread:$0]  %s16, 64, %s18, [#allocation3]
    $region5: #{flexible_model_forward.9} parent=1 // pred_fallthru
      _
    // Predicated region
    $region6: #{flexible_model_forward.9} parent=1 // pred_check
      _
    $region7: #{flexible_model_forward.9} parent=1 // pred_check_branch
      %22 = sbr.rel (0) target = $region9
    $region8: #{flexible_model_forward.9} parent=1 // pred_region
      _
    $region9: #{flexible_model_forward.9} parent=1 // pred_fallthru
      _
    // Predicated region
    $region10: #{flexible_model_forward.9} parent=1 // pred_check
      _
    $region11: #{flexible_model_forward.9} parent=1 // pred_check_branch
      %24 = sbr.rel (0) target = $region13
    $region12: #{flexible_model_forward.9} parent=1 // pred_region
      _
    $region13: #{flexible_model_forward.9} parent=1 // pred_fallthru
      _
    // Predicated region
    $region14: #{flexible_model_forward.9} parent=1 // pred_check
      _
    $region15: #{flexible_model_forward.9} parent=1 // pred_check_branch
      %26 = sbr.rel (0) target = $region17
    $region16: #{flexible_model_forward.9} parent=1 // pred_region
      %28 = dma.done [#allocation3], 64
    $region17: #{flexible_model_forward.9} parent=1 // pred_fallthru
      _
    %v29 = vld [vmem:[#allocation2] sm:$0xf]
    %v30 = vld [vmem:[%s1] sm:$0xf]
    %v31 = vld [vmem:[%s2] sm:$0xff]
    %32 = vxpose.xlu0.b32.start [1/16] %v29, 128
    %33 = vxpose.xlu0.b32.cont [2/16] 0.0, 128
    %34 = vxpose.xlu0.b32.cont [3/16] 0.0, 128
    %35 = vxpose.xlu0.b32.cont [4/16] 0.0, 128
    %36 = vxpose.xlu0.b32.cont [5/16] 0.0, 128
    %37 = vxpose.xlu0.b32.cont [6/16] 0.0, 128
    %38 = vxpose.xlu0.b32.cont [7/16] 0.0, 128
    %39 = vxpose.xlu0.b32.cont [8/16] 0.0, 128
    %40 = vxpose.xlu0.b32.cont [9/16] 0.0, 128
    %41 = vxpose.xlu0.b32.cont [10/16] 0.0, 128
    %42 = vxpose.xlu0.b32.cont [11/16] 0.0, 128
    %43 = vxpose.xlu0.b32.cont [12/16] 0.0, 128
    %44 = vxpose.xlu0.b32.cont [13/16] 0.0, 128
    %45 = vxpose.xlu0.b32.cont [14/16] 0.0, 128
    %46 = vxpose.xlu0.b32.cont [15/16] 0.0, 128
    %47 = vxpose.xlu0.b32.end [16/16] 0.0, 128
    %v48 = vpop.trf.xlu0
    %v49 = vpop.trf.xlu0
    %v50 = vpop.trf.xlu0
    %v51 = vpop.trf.xlu0
    %v52 = vpop.trf.xlu0
    %v53 = vpop.trf.xlu0
    %v54 = vpop.trf.xlu0
    %v55 = vpop.trf.xlu0
    %v56 = vpop.trf.xlu0
    %v57 = vpop.trf.xlu0
    %v58 = vpop.trf.xlu0
    %v59 = vpop.trf.xlu0
    %v60 = vpop.trf.xlu0
    %v61 = vpop.trf.xlu0
    %v62 = vpop.trf.xlu0
    %v63 = vpop.trf.xlu0
    %vm64 = vcmask 31744
    %v66 = vsel %vm64, %v48, 0
    %vm68 = vcmask 1043456
    %v70 = vsel %vm68, %v30, 0
    %72 = vmatpush.msra.mxu0 0.0
    %73 = vmatpush.msra.mxu0 0.0
    %74 = vmatpush.msra.mxu0 0.0
    %75 = vmatpush.msra.mxu0 0.0
    %76 = vmatpush.msra.mxu0 0.0
    %77 = vmatpush.msra.mxu0 0.0
    %78 = vmatpush.msra.mxu0 0.0
    %79 = vmatpush.msra.mxu0 0.0
    %80 = vmatpush.msra.mxu0 0.0
    %81 = vmatpush.msra.mxu0 0.0
    %82 = vmatpush.msra.mxu0 0.0
    %83 = vmatpush.msra.mxu0 0.0
    %84 = vmatpush.msra.mxu0 0.0
    %85 = vmatpush.msra.mxu0 0.0
    %86 = vmatpush.msra.mxu0 0.0
    %87 = vmatpush.msra.mxu0 %v70
    %88 = vmatmul.f32.gmra.mxu0 %v66
    %v89 = vpop.f32.mrf.mxu0
    %v90 = vadd.f32 0.0, %v89
    %91 = vdwg.mxu0
    %v92 = vmul.f32 %v90, %v31
    %vm93 = vcmask 818176
    %v94 = vsel %vm93, %v92, 0.0
    %95 = vadd.xlane.f32.xlu0 %v94
    %v96 = vpop.xlane.xlu0 %95
    %v97 = vmul.f32 %v96, 1.442695
    %v98 = vpow.pop %v97
    %vm99 = vcmask 64512
    %v101 = vsel %vm99, %v29, 0
    %103 = vmatpush.msra.mxu0 0.0
    %104 = vmatpush.msra.mxu0 0.0
    %105 = vmatpush.msra.mxu0 0.0
    %106 = vmatpush.msra.mxu0 0.0
    %107 = vmatpush.msra.mxu0 0.0
    %108 = vmatpush.msra.mxu0 0.0
    %109 = vmatpush.msra.mxu0 0.0
    %110 = vmatpush.msra.mxu0 0.0
    %111 = vmatpush.msra.mxu0 0.0
    %112 = vmatpush.msra.mxu0 0.0
    %113 = vmatpush.msra.mxu0 0.0
    %114 = vmatpush.msra.mxu0 0.0
    %115 = vmatpush.msra.mxu0 0.0
    %116 = vmatpush.msra.mxu0 0.0
    %117 = vmatpush.msra.mxu0 0.0
    %118 = vmatpush.msra.mxu0 %v98
    %119 = vmatmul.f32.gmra.mxu0 %v101
    %v120 = vpop.f32.mrf.mxu0
    %v121 = vadd.f32 0.0, %v120
    %122 = vdwg.mxu0
    %v124 = vsel %vm68, %v121, 0
    %126 = vmatpush.msra.mxu0 0.0
    %127 = vmatpush.msra.mxu0 0.0
    %128 = vmatpush.msra.mxu0 0.0
    %129 = vmatpush.msra.mxu0 0.0
    %130 = vmatpush.msra.mxu0 0.0
    %131 = vmatpush.msra.mxu0 0.0
    %132 = vmatpush.msra.mxu0 0.0
    %133 = vmatpush.msra.mxu0 0.0
    %134 = vmatpush.msra.mxu0 0.0
    %135 = vmatpush.msra.mxu0 0.0
    %136 = vmatpush.msra.mxu0 0.0
    %137 = vmatpush.msra.mxu0 0.0
    %138 = vmatpush.msra.mxu0 0.0
    %139 = vmatpush.msra.mxu0 0.0
    %140 = vmatpush.msra.mxu0 0.0
    %141 = vmatpush.msra.mxu0 %v124
    %142 = vmatmul.f32.gmra.mxu0 %v66
    %v143 = vpop.f32.mrf.mxu0
    %v144 = vadd.f32 0.0, %v143
    %145 = vdwg.mxu0
    %v146 = vrcp.pop %v144
    %v147 = vmul.f32 %v144, %v146
    %v148 = vsub.f32 1.0, %v147
    %v149 = vmul.f32 %v146, %v148
    %v150 = vadd.f32 %v146, %v149
    %vm151 = vweird.f32 %v144
    %vm152 = vweird.f32 %v146
    %vm153 = vmor %vm151, %vm152
    %v154 = vsel %vm153, %v146, %v150
    %v155 = vand.u32 2147483647, %v144
    %vm156 = vcmp.eq.f32.partialorder %v155, 8.507059e+37
    %v157 = vand.u32 %v144, 2147483648
    %v158 = vor.u32 1.1754944e-38, %v157
    %v159 = vsel %vm156, %v158, %v154
    %v160 = vmul.f32 %v98, %v159
    %162 = vset.pattern.permute.xlu0 0
    %163 = vperm.xlu0 %162, %v160
    %v164 = vpop.permute.xlu0 %163
    %v166 = vmul.f32 %v164, %v31
    %167 = vmatpush.msra.mxu0 0.0
    %168 = vmatpush.msra.mxu0 0.0
    %169 = vmatpush.msra.mxu0 0.0
    %170 = vmatpush.msra.mxu0 0.0
    %171 = vmatpush.msra.mxu0 0.0
    %172 = vmatpush.msra.mxu0 0.0
    %173 = vmatpush.msra.mxu0 0.0
    %174 = vmatpush.msra.mxu0 0.0
    %175 = vmatpush.msra.mxu0 0.0
    %176 = vmatpush.msra.mxu0 0.0
    %177 = vmatpush.msra.mxu0 0.0
    %178 = vmatpush.msra.mxu0 0.0
    %179 = vmatpush.msra.mxu0 0.0
    %180 = vmatpush.msra.mxu0 0.0
    %181 = vmatpush.msra.mxu0 0.0
    %182 = vmatpush.msra.mxu0 %v166
    %183 = vmatmul.f32.gmra.mxu0 %v101
    %v184 = vpop.f32.mrf.mxu0
    %v185 = vadd.f32 0.0, %v184
    %186 = vdwg.mxu0
    %vm187 = vcmask 814080
    %188 = vst.msk [vmem:[#allocation5] sm:$0xf] %vm187, %v185
    // Predicated region
    $region18: #{flexible_model_forward.9} parent=1 // pred_check
      _
    $region19: #{flexible_model_forward.9} parent=1 // pred_check_branch
      %190 = sbr.rel (0) target = $region21
    $region20: #{flexible_model_forward.9} parent=1 // pred_region
      %192 = vsyncadd [#allocation4], 0
      %s194 = sshll.u32 [#allocation5], 4
      %s195 = int_to_ptr.vmem [resolvable:$true] %s194
      %s196 = sshll.u32 %s3, 4
      %s197 = int_to_ptr.hbm [resolvable:$true] %s196
      %199 = dma.vmem_to_hbm [thread:$0]  %s195, 64, %s197, [#allocation4]
    $region21: #{flexible_model_forward.9} parent=1 // pred_fallthru
      _
    // Predicated region
    $region22: #{flexible_model_forward.9} parent=1 // pred_check
      _
    $region23: #{flexible_model_forward.9} parent=1 // pred_check_branch
      %201 = sbr.rel (0) target = $region25
    $region24: #{flexible_model_forward.9} parent=1 // pred_region
      %203 = dma.done [#allocation4], 64
    $region25: #{flexible_model_forward.9} parent=1 // pred_fallthru
      _
    %204 = vsyncpa [#allocation3], 1
    %205 = vsyncpa [#allocation4], 1

// kernel: flexible_model_forward.6
$region0: #{flexible_model_forward.6}
  #allocation0 [shape = 'u32[]', space=smem, size = 0x4, offset = 0x4, fixed_abs, tag = 'smem constant byte address 0x4 - core index']
  #allocation1 [shape = 'u32[72,128]{1,0:T(1,128)}', space=vmem, size = 0x9000, scoped, tag = 'internal scratch']
  %s0 = inlined_call_operand.hbm [shape: f32[4,32], index: 0, kind: input, shape index: {}]
  %s1 = inlined_call_operand.hbm [shape: f32[32,250], index: 1, kind: input, shape index: {}]
  %s2 = inlined_call_operand.hbm [shape: f32[1,250], index: 2, kind: input, shape index: {}]
  %s3 = inlined_call_operand.vmem [shape: f32[250,200], index: 3, kind: input, shape index: {}]
  %s4 = inlined_call_operand.hbm [shape: f32[1,200], index: 4, kind: input, shape index: {}]
  %s5 = inlined_call_operand.hbm [shape: f32[200,100], index: 5, kind: input, shape index: {}]
  %s6 = inlined_call_operand.hbm [shape: f32[1,100], index: 6, kind: input, shape index: {}]
  %s7 = inlined_call_operand.vmem [shape: f32[4,100], index: 7, kind: output, shape index: {}]
  %s8 = sld [smem:[#allocation0]]
  $region62: #{flexible_model_forward.6} parent=0
    _
  %s10 = ssub.s32 1, %s8
  %s11 = scalar_select 0, %s10, %s8
  $region1: #{flexible_model_forward.6} parent=0
    #allocation2 [shape = 'u8[2048]{0}', space=vmem, size = 0x800, scoped, tag = 'input window, operand 0, single buffered']
    #allocation3 [shape = 's32[1]{0}', space=sflag, size = 0x4, scoped, tag = 'scoped memory for flexible_model_forward.6']
    #allocation4 [shape = 'u8[32768]{0}', space=vmem, size = 0x8000, scoped, tag = 'input window, operand 1, single buffered']
    #allocation5 [shape = 's32[1]{0}', space=sflag, size = 0x4, scoped, tag = 'scoped memory for flexible_model_forward.6']
    #allocation6 [shape = 'u8[1024]{0}', space=vmem, size = 0x400, scoped, tag = 'input window, operand 2, single buffered']
    #allocation7 [shape = 'u8[1024]{0}', space=vmem, size = 0x400, scoped, tag = 'input window, operand 4, single buffered']
    #allocation8 [shape = 's32[1]{0}', space=sflag, size = 0x4, scoped, tag = 'scoped memory for flexible_model_forward.6']
    #allocation9 [shape = 'u8[102400]{0}', space=vmem, size = 0x19000, scoped, tag = 'input window, operand 5, single buffered']
    #allocation10 [shape = 'u8[512]{0}', space=vmem, size = 0x400, scoped, tag = 'input window, operand 6, single buffered']
    #allocation11 [shape = 's32[1]{0}', space=sflag, size = 0x4, scoped, tag = 'scoped memory for flexible_model_forward.6']
    %12 = vsyncpa [#allocation3], 0
    %13 = vsyncpa [#allocation5], 0
    %14 = vsyncpa [#allocation8], 0
    %15 = vsyncpa [#allocation11], 0
    // Predicated region
    $region2: #{flexible_model_forward.6} parent=1 // pred_check
      _
    $region3: #{flexible_model_forward.6} parent=1 // pred_check_branch
      %17 = sbr.rel (0) target = $region5
    $region4: #{flexible_model_forward.6} parent=1 // pred_region
      %19 = vsyncadd [#allocation3], 0
      %s21 = sshll.u32 %s0, 4
      %s22 = int_to_ptr.hbm [resolvable:$true] %s21
      %s23 = sshll.u32 [#allocation2], 4
      %s24 = int_to_ptr.vmem [resolvable:$true] %s23
      %26 = dma.hbm_to_vmem [thread:$0]  %s22, 64, %s24, [#allocation3]
    $region5: #{flexible_model_forward.6} parent=1 // pred_fallthru
      _
    // Predicated region
    $region6: #{flexible_model_forward.6} parent=1 // pred_check
      _
    $region7: #{flexible_model_forward.6} parent=1 // pred_check_branch
      %28 = sbr.rel (0) target = $region9
    $region8: #{flexible_model_forward.6} parent=1 // pred_region
      %30 = vsyncadd [#allocation5], 0
      %s31 = sshll.u32 %s1, 4
      %s32 = int_to_ptr.hbm [resolvable:$true] %s31
      %s33 = sshll.u32 [#allocation4], 4
      %s34 = int_to_ptr.vmem [resolvable:$true] %s33
      %39 = dma.hbm_to_vmem [thread:$0]  %s32, 1024, %s34, [#allocation5], 256, 256, 16
    $region9: #{flexible_model_forward.6} parent=1 // pred_fallthru
      _
    // Predicated region
    $region10: #{flexible_model_forward.6} parent=1 // pred_check
      _
    $region11: #{flexible_model_forward.6} parent=1 // pred_check_branch
      %41 = sbr.rel (0) target = $region13
    $region12: #{flexible_model_forward.6} parent=1 // pred_region
      %43 = vsyncadd [#allocation5], 0
      %s45 = sshll.u32 %s2, 4
      %s46 = int_to_ptr.hbm [resolvable:$true] %s45
      %s47 = sshll.u32 [#allocation6], 4
      %s48 = int_to_ptr.vmem [resolvable:$true] %s47
      %50 = dma.hbm_to_vmem [thread:$0]  %s46, 32, %s48, [#allocation5]
    $region13: #{flexible_model_forward.6} parent=1 // pred_fallthru
      _
    // Predicated region
    $region14: #{flexible_model_forward.6} parent=1 // pred_check
      _
    $region15: #{flexible_model_forward.6} parent=1 // pred_check_branch
      %52 = sbr.rel (0) target = $region17
    $region16: #{flexible_model_forward.6} parent=1 // pred_region
      _
    $region17: #{flexible_model_forward.6} parent=1 // pred_fallthru
      _
    // Predicated region
    $region18: #{flexible_model_forward.6} parent=1 // pred_check
      _
    $region19: #{flexible_model_forward.6} parent=1 // pred_check_branch
      %54 = sbr.rel (0) target = $region21
    $region20: #{flexible_model_forward.6} parent=1 // pred_region
      %56 = vsyncadd [#allocation8], 0
      %s58 = sshll.u32 %s4, 4
      %s59 = int_to_ptr.hbm [resolvable:$true] %s58
      %s60 = sshll.u32 [#allocation7], 4
      %s61 = int_to_ptr.vmem [resolvable:$true] %s60
      %63 = dma.hbm_to_vmem [thread:$0]  %s59, 32, %s61, [#allocation8]
    $region21: #{flexible_model_forward.6} parent=1 // pred_fallthru
      _
    // Predicated region
    $region22: #{flexible_model_forward.6} parent=1 // pred_check
      _
    $region23: #{flexible_model_forward.6} parent=1 // pred_check_branch
      %65 = sbr.rel (0) target = $region25
    $region24: #{flexible_model_forward.6} parent=1 // pred_region
      %67 = vsyncadd [#allocation8], 0
      %s68 = sshll.u32 %s5, 4
      %s69 = int_to_ptr.hbm [resolvable:$true] %s68
      %s70 = sshll.u32 [#allocation9], 4
      %s71 = int_to_ptr.vmem [resolvable:$true] %s70
      %76 = dma.hbm_to_vmem [thread:$0]  %s69, 3200, %s71, [#allocation8], 128, 128, 8
    $region25: #{flexible_model_forward.6} parent=1 // pred_fallthru
      _
    // Predicated region
    $region26: #{flexible_model_forward.6} parent=1 // pred_check
      _
    $region27: #{flexible_model_forward.6} parent=1 // pred_check_branch
      %78 = sbr.rel (0) target = $region29
    $region28: #{flexible_model_forward.6} parent=1 // pred_region
      %80 = vsyncadd [#allocation11], 0
      %s82 = sshll.u32 %s6, 4
      %s83 = int_to_ptr.hbm [resolvable:$true] %s82
      %s84 = sshll.u32 [#allocation10], 4
      %s85 = int_to_ptr.vmem [resolvable:$true] %s84
      %87 = dma.hbm_to_vmem [thread:$0]  %s83, 16, %s85, [#allocation11]
    $region29: #{flexible_model_forward.6} parent=1 // pred_fallthru
      _
    // Predicated region
    $region30: #{flexible_model_forward.6} parent=1 // pred_check
      _
    $region31: #{flexible_model_forward.6} parent=1 // pred_check_branch
      %89 = sbr.rel (0) target = $region33
    $region32: #{flexible_model_forward.6} parent=1 // pred_region
      %91 = dma.done [#allocation3], 64
    $region33: #{flexible_model_forward.6} parent=1 // pred_fallthru
      _
    // Predicated region
    $region34: #{flexible_model_forward.6} parent=1 // pred_check
      _
    $region35: #{flexible_model_forward.6} parent=1 // pred_check_branch
      %93 = sbr.rel (0) target = $region37
    $region36: #{flexible_model_forward.6} parent=1 // pred_region
      %95 = dma.done [#allocation5], 1024
    $region37: #{flexible_model_forward.6} parent=1 // pred_fallthru
      _
    // Predicated region
    $region38: #{flexible_model_forward.6} parent=1 // pred_check
      _
    $region39: #{flexible_model_forward.6} parent=1 // pred_check_branch
      %97 = sbr.rel (0) target = $region41
    $region40: #{flexible_model_forward.6} parent=1 // pred_region
      %99 = dma.done [#allocation5], 32
    $region41: #{flexible_model_forward.6} parent=1 // pred_fallthru
      _
    // Predicated region
    $region42: #{flexible_model_forward.6} parent=1 // pred_check
      _
    $region43: #{flexible_model_forward.6} parent=1 // pred_check_branch
      %101 = sbr.rel (0) target = $region45
    $region44: #{flexible_model_forward.6} parent=1 // pred_region
      %103 = dma.done [#allocation8], 32
    $region45: #{flexible_model_forward.6} parent=1 // pred_fallthru
      _
    // Predicated region
    $region46: #{flexible_model_forward.6} parent=1 // pred_check
      _
    $region47: #{flexible_model_forward.6} parent=1 // pred_check_branch
      %105 = sbr.rel (0) target = $region49
    $region48: #{flexible_model_forward.6} parent=1 // pred_region
      %107 = dma.done [#allocation8], 3200
    $region49: #{flexible_model_forward.6} parent=1 // pred_fallthru
      _
    // Predicated region
    $region50: #{flexible_model_forward.6} parent=1 // pred_check
      _
    $region51: #{flexible_model_forward.6} parent=1 // pred_check_branch
      %109 = sbr.rel (0) target = $region53
    $region52: #{flexible_model_forward.6} parent=1 // pred_region
      %111 = dma.done [#allocation11], 16
    $region53: #{flexible_model_forward.6} parent=1 // pred_fallthru
      _
    %v112 = vld [vmem:[#allocation2] sm:$0xf]
    %v113 = vld [vmem:[#allocation4] sm:$0xff]
    %v114 = vld [vmem:[#allocation4 + $0x8] sm:$0xff]
    %v115 = vld [vmem:[#allocation4 + $0x10] sm:$0xff]
    %v116 = vld [vmem:[#allocation4 + $0x18] sm:$0xff]
    %v117 = vld [vmem:[#allocation4 + $0x20] sm:$0xff]
    %v118 = vld [vmem:[#allocation4 + $0x28] sm:$0xff]
    %v119 = vld [vmem:[#allocation4 + $0x30] sm:$0xff]
    %v120 = vld [vmem:[#allocation4 + $0x38] sm:$0xff]
    %v121 = vld [vmem:[#allocation6] sm:$0x3]
    %v123 = vperm.slane %v121, 0
    %v124 = vperm.slane %v121, 1
    %vm127 = vcmask 261120
    %v129 = vsel %vm127, %v112, 0
    %131 = vmatpush.msra.mxu0 0.0
    %132 = vmatpush.msra.mxu0 0.0
    %133 = vmatpush.msra.mxu0 0.0
    %134 = vmatpush.msra.mxu0 0.0
    %135 = vmatpush.msra.mxu0 0.0
    %136 = vmatpush.msra.mxu0 0.0
    %137 = vmatpush.msra.mxu0 0.0
    %138 = vmatpush.msra.mxu0 0.0
    %139 = vmatpush.msra.mxu0 0.0
    %140 = vmatpush.msra.mxu0 0.0
    %141 = vmatpush.msra.mxu0 0.0
    %142 = vmatpush.msra.mxu0 0.0
    %143 = vmatpush.msra.mxu0 %v119
    %144 = vmatpush.msra.mxu0 %v117
    %145 = vmatpush.msra.mxu0 %v115
    %146 = vmatpush.msra.mxu0 %v113
    %147 = vmatmul.f32.gmra.mxu0 %v129
    %v148 = vpop.f32.mrf.mxu0
    %v149 = vadd.f32 %v123, %v148
    %150 = vdwg.mxu0
    %151 = vmatpush.msra.mxu0 0.0
    %152 = vmatpush.msra.mxu0 0.0
    %153 = vmatpush.msra.mxu0 0.0
    %154 = vmatpush.msra.mxu0 0.0
    %155 = vmatpush.msra.mxu0 0.0
    %156 = vmatpush.msra.mxu0 0.0
    %157 = vmatpush.msra.mxu0 0.0
    %158 = vmatpush.msra.mxu0 0.0
    %159 = vmatpush.msra.mxu0 0.0
    %160 = vmatpush.msra.mxu0 0.0
    %161 = vmatpush.msra.mxu0 0.0
    %162 = vmatpush.msra.mxu0 0.0
    %163 = vmatpush.msra.mxu0 %v120
    %164 = vmatpush.msra.mxu0 %v118
    %165 = vmatpush.msra.mxu0 %v116
    %166 = vmatpush.msra.mxu0 %v114
    %167 = vmatmul.f32.gmra.mxu0 %v129
    %v168 = vpop.f32.mrf.mxu0
    %v169 = vadd.f32 %v124, %v168
    %170 = vdwg.mxu0
    %v171 = vtanh.pop %v149
    %v172 = vtanh.pop %v169
    %v173 = vld [vmem:[%s3] sm:$0xff]
    %v174 = vld [vmem:[%s3 + $0x8] sm:$0xff]
    %v175 = vld [vmem:[%s3 + $0x10] sm:$0xff]
    %v176 = vld [vmem:[%s3 + $0x18] sm:$0xff]
    %v177 = vld [vmem:[%s3 + $0x20] sm:$0xff]
    %v178 = vld [vmem:[%s3 + $0x28] sm:$0xff]
    %v179 = vld [vmem:[%s3 + $0x30] sm:$0xff]
    %v180 = vld [vmem:[%s3 + $0x38] sm:$0xff]
    %v181 = vld [vmem:[%s3 + $0x40] sm:$0xff]
    %v182 = vld [vmem:[%s3 + $0x48] sm:$0xff]
    %v183 = vld [vmem:[%s3 + $0x50] sm:$0xff]
    %v184 = vld [vmem:[%s3 + $0x58] sm:$0xff]
    %v185 = vld [vmem:[%s3 + $0x60] sm:$0xff]
    %v186 = vld [vmem:[%s3 + $0x68] sm:$0xff]
    %v187 = vld [vmem:[%s3 + $0x70] sm:$0xff]
    %v188 = vld [vmem:[%s3 + $0x78] sm:$0xff]
    %v189 = vld [vmem:[%s3 + $0x80] sm:$0xff]
    %v190 = vld [vmem:[%s3 + $0x88] sm:$0xff]
    %v191 = vld [vmem:[%s3 + $0x90] sm:$0xff]
    %v192 = vld [vmem:[%s3 + $0x98] sm:$0xff]
    %v193 = vld [vmem:[%s3 + $0xa0] sm:$0xff]
    %v194 = vld [vmem:[%s3 + $0xa8] sm:$0xff]
    %v195 = vld [vmem:[%s3 + $0xb0] sm:$0xff]
    %v196 = vld [vmem:[%s3 + $0xb8] sm:$0xff]
    %v197 = vld [vmem:[%s3 + $0xc0] sm:$0xff]
    %v198 = vld [vmem:[%s3 + $0xc8] sm:$0xff]
    %v199 = vld [vmem:[%s3 + $0xd0] sm:$0xff]
    %v200 = vld [vmem:[%s3 + $0xd8] sm:$0xff]
    %v201 = vld [vmem:[%s3 + $0xe0] sm:$0xff]
    %v202 = vld [vmem:[%s3 + $0xe8] sm:$0xff]
    %v203 = vld [vmem:[%s3 + $0xf0] sm:$0xff]
    %v204 = vld [vmem:[%s3 + $0xf8] sm:$0xff]
    %v205 = vld [vmem:[%s3 + $0x100] sm:$0xff]
    %v206 = vld [vmem:[%s3 + $0x108] sm:$0xff]
    %v207 = vld [vmem:[%s3 + $0x110] sm:$0xff]
    %v208 = vld [vmem:[%s3 + $0x118] sm:$0xff]
    %v209 = vld [vmem:[%s3 + $0x120] sm:$0xff]
    %v210 = vld [vmem:[%s3 + $0x128] sm:$0xff]
    %v211 = vld [vmem:[%s3 + $0x130] sm:$0xff]
    %v212 = vld [vmem:[%s3 + $0x138] sm:$0xff]
    %v213 = vld [vmem:[%s3 + $0x140] sm:$0xff]
    %v214 = vld [vmem:[%s3 + $0x148] sm:$0xff]
    %v215 = vld [vmem:[%s3 + $0x150] sm:$0xff]
    %v216 = vld [vmem:[%s3 + $0x158] sm:$0xff]
    %v217 = vld [vmem:[%s3 + $0x160] sm:$0xff]
    %v218 = vld [vmem:[%s3 + $0x168] sm:$0xff]
    %v219 = vld [vmem:[%s3 + $0x170] sm:$0xff]
    %v220 = vld [vmem:[%s3 + $0x178] sm:$0xff]
    %v221 = vld [vmem:[%s3 + $0x180] sm:$0xff]
    %v222 = vld [vmem:[%s3 + $0x188] sm:$0xff]
    %v223 = vld [vmem:[%s3 + $0x190] sm:$0xff]
    %v224 = vld [vmem:[%s3 + $0x198] sm:$0xff]
    %v225 = vld [vmem:[%s3 + $0x1a0] sm:$0xff]
    %v226 = vld [vmem:[%s3 + $0x1a8] sm:$0xff]
    %v227 = vld [vmem:[%s3 + $0x1b0] sm:$0xff]
    %v228 = vld [vmem:[%s3 + $0x1b8] sm:$0xff]
    %v229 = vld [vmem:[%s3 + $0x1c0] sm:$0xff]
    %v230 = vld [vmem:[%s3 + $0x1c8] sm:$0xff]
    %v231 = vld [vmem:[%s3 + $0x1d0] sm:$0xff]
    %v232 = vld [vmem:[%s3 + $0x1d8] sm:$0xff]
    %v233 = vld [vmem:[%s3 + $0x1e0] sm:$0xff]
    %v234 = vld [vmem:[%s3 + $0x1e8] sm:$0xff]
    %v235 = vld [vmem:[%s3 + $0x1f0] sm:$0x3]
    %v236 = vld [vmem:[%s3 + $0x1f8] sm:$0x3]
    %v237 = vld [vmem:[#allocation7] sm:$0x3]
    %v239 = vperm.slane %v237, 0
    %v240 = vperm.slane %v237, 1
    %vm243 = vcmask 998400
    %v245 = vsel %vm243, %v172, 0
    %vm247 = vcmask 1041408
    %v249 = vsel %vm247, %v235, 0
    %v252 = vsel %vm247, %v236, 0
    %254 = vmatpush.msra.mxu0 %v203
    %255 = vmatpush.msra.mxu0 %v201
    %256 = vmatpush.msra.mxu0 %v199
    %257 = vmatpush.msra.mxu0 %v197
    %258 = vmatpush.msra.mxu0 %v195
    %259 = vmatpush.msra.mxu0 %v193
    %260 = vmatpush.msra.mxu0 %v191
    %261 = vmatpush.msra.mxu0 %v189
    %262 = vmatpush.msra.mxu0 %v187
    %263 = vmatpush.msra.mxu0 %v185
    %264 = vmatpush.msra.mxu0 %v183
    %265 = vmatpush.msra.mxu0 %v181
    %266 = vmatpush.msra.mxu0 %v179
    %267 = vmatpush.msra.mxu0 %v177
    %268 = vmatpush.msra.mxu0 %v175
    %269 = vmatpush.msra.mxu0 %v173
    %270 = vmatmul.f32.gmra.mxu0 %v171
    %v271 = vpop.f32.mrf.mxu0
    %v272 = vadd.f32 %v239, %v271
    %273 = vdwg.mxu0
    %274 = vmatpush.msra.mxu0 %v249
    %275 = vmatpush.msra.mxu0 %v233
    %276 = vmatpush.msra.mxu0 %v231
    %277 = vmatpush.msra.mxu0 %v229
    %278 = vmatpush.msra.mxu0 %v227
    %279 = vmatpush.msra.mxu0 %v225
    %280 = vmatpush.msra.mxu0 %v223
    %281 = vmatpush.msra.mxu0 %v221
    %282 = vmatpush.msra.mxu0 %v219
    %283 = vmatpush.msra.mxu0 %v217
    %284 = vmatpush.msra.mxu0 %v215
    %285 = vmatpush.msra.mxu0 %v213
    %286 = vmatpush.msra.mxu0 %v211
    %287 = vmatpush.msra.mxu0 %v209
    %288 = vmatpush.msra.mxu0 %v207
    %289 = vmatpush.msra.mxu0 %v205
    %290 = vmatmul.f32.gmra.mxu0 %v245
    %v291 = vpop.f32.mrf.mxu0
    %v292 = vadd.f32 %v272, %v291
    %293 = vdwg.mxu0
    %294 = vmatpush.msra.mxu0 %v204
    %295 = vmatpush.msra.mxu0 %v202
    %296 = vmatpush.msra.mxu0 %v200
    %297 = vmatpush.msra.mxu0 %v198
    %298 = vmatpush.msra.mxu0 %v196
    %299 = vmatpush.msra.mxu0 %v194
    %300 = vmatpush.msra.mxu0 %v192
    %301 = vmatpush.msra.mxu0 %v190
    %302 = vmatpush.msra.mxu0 %v188
    %303 = vmatpush.msra.mxu0 %v186
    %304 = vmatpush.msra.mxu0 %v184
    %305 = vmatpush.msra.mxu0 %v182
    %306 = vmatpush.msra.mxu0 %v180
    %307 = vmatpush.msra.mxu0 %v178
    %308 = vmatpush.msra.mxu0 %v176
    %309 = vmatpush.msra.mxu0 %v174
    %310 = vmatmul.f32.gmra.mxu0 %v171
    %v311 = vpop.f32.mrf.mxu0
    %v312 = vadd.f32 %v240, %v311
    %313 = vdwg.mxu0
    %314 = vmatpush.msra.mxu0 %v252
    %315 = vmatpush.msra.mxu0 %v234
    %316 = vmatpush.msra.mxu0 %v232
    %317 = vmatpush.msra.mxu0 %v230
    %318 = vmatpush.msra.mxu0 %v228
    %319 = vmatpush.msra.mxu0 %v226
    %320 = vmatpush.msra.mxu0 %v224
    %321 = vmatpush.msra.mxu0 %v222
    %322 = vmatpush.msra.mxu0 %v220
    %323 = vmatpush.msra.mxu0 %v218
    %324 = vmatpush.msra.mxu0 %v216
    %325 = vmatpush.msra.mxu0 %v214
    %326 = vmatpush.msra.mxu0 %v212
    %327 = vmatpush.msra.mxu0 %v210
    %328 = vmatpush.msra.mxu0 %v208
    %329 = vmatpush.msra.mxu0 %v206
    %330 = vmatmul.f32.gmra.mxu0 %v245
    %v331 = vpop.f32.mrf.mxu0
    %v332 = vadd.f32 %v312, %v331
    %333 = vdwg.mxu0
    %v334 = vtanh.pop %v292
    %v335 = vtanh.pop %v332
    %v336 = vld [vmem:[#allocation9] sm:$0xff]
    %v337 = vld [vmem:[#allocation9 + $0x8] sm:$0xff]
    %v338 = vld [vmem:[#allocation9 + $0x10] sm:$0xff]
    %v339 = vld [vmem:[#allocation9 + $0x18] sm:$0xff]
    %v340 = vld [vmem:[#allocation9 + $0x20] sm:$0xff]
    %v341 = vld [vmem:[#allocation9 + $0x28] sm:$0xff]
    %v342 = vld [vmem:[#allocation9 + $0x30] sm:$0xff]
    %v343 = vld [vmem:[#allocation9 + $0x38] sm:$0xff]
    %v344 = vld [vmem:[#allocation9 + $0x40] sm:$0xff]
    %v345 = vld [vmem:[#allocation9 + $0x48] sm:$0xff]
    %v346 = vld [vmem:[#allocation9 + $0x50] sm:$0xff]
    %v347 = vld [vmem:[#allocation9 + $0x58] sm:$0xff]
    %v348 = vld [vmem:[#allocation9 + $0x60] sm:$0xff]
    %v349 = vld [vmem:[#allocation9 + $0x68] sm:$0xff]
    %v350 = vld [vmem:[#allocation9 + $0x70] sm:$0xff]
    %v351 = vld [vmem:[#allocation9 + $0x78] sm:$0xff]
    %v352 = vld [vmem:[#allocation9 + $0x80] sm:$0xff]
    %v353 = vld [vmem:[#allocation9 + $0x88] sm:$0xff]
    %v354 = vld [vmem:[#allocation9 + $0x90] sm:$0xff]
    %v355 = vld [vmem:[#allocation9 + $0x98] sm:$0xff]
    %v356 = vld [vmem:[#allocation9 + $0xa0] sm:$0xff]
    %v357 = vld [vmem:[#allocation9 + $0xa8] sm:$0xff]
    %v358 = vld [vmem:[#allocation9 + $0xb0] sm:$0xff]
    %v359 = vld [vmem:[#allocation9 + $0xb8] sm:$0xff]
    %v360 = vld [vmem:[#allocation9 + $0xc0] sm:$0xff]
    %v361 = vld [vmem:[#allocation10] sm:$0x1]
    %v363 = vperm.slane %v361, 0
    %vm365 = vcmask 588800
    %v367 = vsel %vm365, %v335, 0
    %369 = vmatpush.msra.mxu0 %v351
    %370 = vmatpush.msra.mxu0 %v350
    %371 = vmatpush.msra.mxu0 %v349
    %372 = vmatpush.msra.mxu0 %v348
    %373 = vmatpush.msra.mxu0 %v347
    %374 = vmatpush.msra.mxu0 %v346
    %375 = vmatpush.msra.mxu0 %v345
    %376 = vmatpush.msra.mxu0 %v344
    %377 = vmatpush.msra.mxu0 %v343
    %378 = vmatpush.msra.mxu0 %v342
    %379 = vmatpush.msra.mxu0 %v341
    %380 = vmatpush.msra.mxu0 %v340
    %381 = vmatpush.msra.mxu0 %v339
    %382 = vmatpush.msra.mxu0 %v338
    %383 = vmatpush.msra.mxu0 %v337
    %384 = vmatpush.msra.mxu0 %v336
    %385 = vmatmul.f32.gmra.mxu0 %v334
    %v386 = vpop.f32.mrf.mxu0
    %v387 = vadd.f32 %v363, %v386
    %388 = vdwg.mxu0
    %389 = vmatpush.msra.mxu0 0.0
    %390 = vmatpush.msra.mxu0 0.0
    %391 = vmatpush.msra.mxu0 0.0
    %392 = vmatpush.msra.mxu0 0.0
    %393 = vmatpush.msra.mxu0 0.0
    %394 = vmatpush.msra.mxu0 0.0
    %395 = vmatpush.msra.mxu0 0.0
    %396 = vmatpush.msra.mxu0 %v360
    %397 = vmatpush.msra.mxu0 %v359
    %398 = vmatpush.msra.mxu0 %v358
    %399 = vmatpush.msra.mxu0 %v357
    %400 = vmatpush.msra.mxu0 %v356
    %401 = vmatpush.msra.mxu0 %v355
    %402 = vmatpush.msra.mxu0 %v354
    %403 = vmatpush.msra.mxu0 %v353
    %404 = vmatpush.msra.mxu0 %v352
    %405 = vmatmul.f32.gmra.mxu0 %v367
    %v406 = vpop.f32.mrf.mxu0
    %v407 = vadd.f32 %v387, %v406
    %408 = vdwg.mxu0
    %v409 = vtanh.pop %v407
    %vm410 = vcmask 814080
    %411 = vst.msk [vmem:[%s7] sm:$0xf] %vm410, %v409
    // Predicated region
    $region54: #{flexible_model_forward.6} parent=1 // pred_check
      _
    $region55: #{flexible_model_forward.6} parent=1 // pred_check_branch
      %413 = sbr.rel (0) target = $region57
    $region56: #{flexible_model_forward.6} parent=1 // pred_region
      _
    $region57: #{flexible_model_forward.6} parent=1 // pred_fallthru
      _
    // Predicated region
    $region58: #{flexible_model_forward.6} parent=1 // pred_check
      _
    $region59: #{flexible_model_forward.6} parent=1 // pred_check_branch
      %415 = sbr.rel (0) target = $region61
    $region60: #{flexible_model_forward.6} parent=1 // pred_region
      _
    $region61: #{flexible_model_forward.6} parent=1 // pred_fallthru
      _
    %416 = vsyncpa [#allocation3], 1
    %417 = vsyncpa [#allocation5], 1
    %418 = vsyncpa [#allocation8], 1
    %419 = vsyncpa [#allocation11], 1

// kernel: flexible_model_forward.5
$region0: #{flexible_model_forward.5}
  #allocation0 [shape = 'u32[]', space=smem, size = 0x4, offset = 0x4, fixed_abs, tag = 'smem constant byte address 0x4 - core index']
  #allocation1 [shape = 'u32[72,128]{1,0:T(1,128)}', space=vmem, size = 0x9000, scoped, tag = 'internal scratch']
  %s0 = inlined_call_operand.hbm [shape: f32[8,32], index: 0, kind: input, shape index: {}]
  %s1 = inlined_call_operand.hbm [shape: f32[32,250], index: 1, kind: input, shape index: {}]
  %s2 = inlined_call_operand.hbm [shape: f32[1,250], index: 2, kind: input, shape index: {}]
  %s3 = inlined_call_operand.vmem [shape: f32[250,200], index: 3, kind: input, shape index: {}]
  %s4 = inlined_call_operand.hbm [shape: f32[1,200], index: 4, kind: input, shape index: {}]
  %s5 = inlined_call_operand.hbm [shape: f32[200,100], index: 5, kind: input, shape index: {}]
  %s6 = inlined_call_operand.hbm [shape: f32[1,100], index: 6, kind: input, shape index: {}]
  %s7 = inlined_call_operand.vmem [shape: f32[8,100], index: 7, kind: output, shape index: {}]
  %s8 = sld [smem:[#allocation0]]
  $region62: #{flexible_model_forward.5} parent=0
    _
  %s10 = ssub.s32 1, %s8
  %s11 = scalar_select 0, %s10, %s8
  $region1: #{flexible_model_forward.5} parent=0
    #allocation2 [shape = 'u8[4096]{0}', space=vmem, size = 0x1000, scoped, tag = 'input window, operand 0, single buffered']
    #allocation3 [shape = 's32[1]{0}', space=sflag, size = 0x4, scoped, tag = 'scoped memory for flexible_model_forward.5']
    #allocation4 [shape = 'u8[32768]{0}', space=vmem, size = 0x8000, scoped, tag = 'input window, operand 1, single buffered']
    #allocation5 [shape = 's32[1]{0}', space=sflag, size = 0x4, scoped, tag = 'scoped memory for flexible_model_forward.5']
    #allocation6 [shape = 'u8[1024]{0}', space=vmem, size = 0x400, scoped, tag = 'input window, operand 2, single buffered']
    #allocation7 [shape = 'u8[1024]{0}', space=vmem, size = 0x400, scoped, tag = 'input window, operand 4, single buffered']
    #allocation8 [shape = 's32[1]{0}', space=sflag, size = 0x4, scoped, tag = 'scoped memory for flexible_model_forward.5']
    #allocation9 [shape = 'u8[102400]{0}', space=vmem, size = 0x19000, scoped, tag = 'input window, operand 5, single buffered']
    #allocation10 [shape = 'u8[512]{0}', space=vmem, size = 0x400, scoped, tag = 'input window, operand 6, single buffered']
    #allocation11 [shape = 's32[1]{0}', space=sflag, size = 0x4, scoped, tag = 'scoped memory for flexible_model_forward.5']
    %12 = vsyncpa [#allocation3], 0
    %13 = vsyncpa [#allocation5], 0
    %14 = vsyncpa [#allocation8], 0
    %15 = vsyncpa [#allocation11], 0
    // Predicated region
    $region2: #{flexible_model_forward.5} parent=1 // pred_check
      _
    $region3: #{flexible_model_forward.5} parent=1 // pred_check_branch
      %17 = sbr.rel (0) target = $region5
    $region4: #{flexible_model_forward.5} parent=1 // pred_region
      %19 = vsyncadd [#allocation3], 0
      %s21 = sshll.u32 %s0, 4
      %s22 = int_to_ptr.hbm [resolvable:$true] %s21
      %s23 = sshll.u32 [#allocation2], 4
      %s24 = int_to_ptr.vmem [resolvable:$true] %s23
      %26 = dma.hbm_to_vmem [thread:$0]  %s22, 128, %s24, [#allocation3]
    $region5: #{flexible_model_forward.5} parent=1 // pred_fallthru
      _
    // Predicated region
    $region6: #{flexible_model_forward.5} parent=1 // pred_check
      _
    $region7: #{flexible_model_forward.5} parent=1 // pred_check_branch
      %28 = sbr.rel (0) target = $region9
    $region8: #{flexible_model_forward.5} parent=1 // pred_region
      %30 = vsyncadd [#allocation5], 0
      %s31 = sshll.u32 %s1, 4
      %s32 = int_to_ptr.hbm [resolvable:$true] %s31
      %s33 = sshll.u32 [#allocation4], 4
      %s34 = int_to_ptr.vmem [resolvable:$true] %s33
      %39 = dma.hbm_to_vmem [thread:$0]  %s32, 1024, %s34, [#allocation5], 256, 256, 16
    $region9: #{flexible_model_forward.5} parent=1 // pred_fallthru
      _
    // Predicated region
    $region10: #{flexible_model_forward.5} parent=1 // pred_check
      _
    $region11: #{flexible_model_forward.5} parent=1 // pred_check_branch
      %41 = sbr.rel (0) target = $region13
    $region12: #{flexible_model_forward.5} parent=1 // pred_region
      %43 = vsyncadd [#allocation5], 0
      %s45 = sshll.u32 %s2, 4
      %s46 = int_to_ptr.hbm [resolvable:$true] %s45
      %s47 = sshll.u32 [#allocation6], 4
      %s48 = int_to_ptr.vmem [resolvable:$true] %s47
      %50 = dma.hbm_to_vmem [thread:$0]  %s46, 32, %s48, [#allocation5]
    $region13: #{flexible_model_forward.5} parent=1 // pred_fallthru
      _
    // Predicated region
    $region14: #{flexible_model_forward.5} parent=1 // pred_check
      _
    $region15: #{flexible_model_forward.5} parent=1 // pred_check_branch
      %52 = sbr.rel (0) target = $region17
    $region16: #{flexible_model_forward.5} parent=1 // pred_region
      _
    $region17: #{flexible_model_forward.5} parent=1 // pred_fallthru
      _
    // Predicated region
    $region18: #{flexible_model_forward.5} parent=1 // pred_check
      _
    $region19: #{flexible_model_forward.5} parent=1 // pred_check_branch
      %54 = sbr.rel (0) target = $region21
    $region20: #{flexible_model_forward.5} parent=1 // pred_region
      %56 = vsyncadd [#allocation8], 0
      %s58 = sshll.u32 %s4, 4
      %s59 = int_to_ptr.hbm [resolvable:$true] %s58
      %s60 = sshll.u32 [#allocation7], 4
      %s61 = int_to_ptr.vmem [resolvable:$true] %s60
      %63 = dma.hbm_to_vmem [thread:$0]  %s59, 32, %s61, [#allocation8]
    $region21: #{flexible_model_forward.5} parent=1 // pred_fallthru
      _
    // Predicated region
    $region22: #{flexible_model_forward.5} parent=1 // pred_check
      _
    $region23: #{flexible_model_forward.5} parent=1 // pred_check_branch
      %65 = sbr.rel (0) target = $region25
    $region24: #{flexible_model_forward.5} parent=1 // pred_region
      %67 = vsyncadd [#allocation8], 0
      %s68 = sshll.u32 %s5, 4
      %s69 = int_to_ptr.hbm [resolvable:$true] %s68
      %s70 = sshll.u32 [#allocation9], 4
      %s71 = int_to_ptr.vmem [resolvable:$true] %s70
      %76 = dma.hbm_to_vmem [thread:$0]  %s69, 3200, %s71, [#allocation8], 128, 128, 8
    $region25: #{flexible_model_forward.5} parent=1 // pred_fallthru
      _
    // Predicated region
    $region26: #{flexible_model_forward.5} parent=1 // pred_check
      _
    $region27: #{flexible_model_forward.5} parent=1 // pred_check_branch
      %78 = sbr.rel (0) target = $region29
    $region28: #{flexible_model_forward.5} parent=1 // pred_region
      %80 = vsyncadd [#allocation11], 0
      %s82 = sshll.u32 %s6, 4
      %s83 = int_to_ptr.hbm [resolvable:$true] %s82
      %s84 = sshll.u32 [#allocation10], 4
      %s85 = int_to_ptr.vmem [resolvable:$true] %s84
      %87 = dma.hbm_to_vmem [thread:$0]  %s83, 16, %s85, [#allocation11]
    $region29: #{flexible_model_forward.5} parent=1 // pred_fallthru
      _
    // Predicated region
    $region30: #{flexible_model_forward.5} parent=1 // pred_check
      _
    $region31: #{flexible_model_forward.5} parent=1 // pred_check_branch
      %89 = sbr.rel (0) target = $region33
    $region32: #{flexible_model_forward.5} parent=1 // pred_region
      %91 = dma.done [#allocation3], 128
    $region33: #{flexible_model_forward.5} parent=1 // pred_fallthru
      _
    // Predicated region
    $region34: #{flexible_model_forward.5} parent=1 // pred_check
      _
    $region35: #{flexible_model_forward.5} parent=1 // pred_check_branch
      %93 = sbr.rel (0) target = $region37
    $region36: #{flexible_model_forward.5} parent=1 // pred_region
      %95 = dma.done [#allocation5], 1024
    $region37: #{flexible_model_forward.5} parent=1 // pred_fallthru
      _
    // Predicated region
    $region38: #{flexible_model_forward.5} parent=1 // pred_check
      _
    $region39: #{flexible_model_forward.5} parent=1 // pred_check_branch
      %97 = sbr.rel (0) target = $region41
    $region40: #{flexible_model_forward.5} parent=1 // pred_region
      %99 = dma.done [#allocation5], 32
    $region41: #{flexible_model_forward.5} parent=1 // pred_fallthru
      _
    // Predicated region
    $region42: #{flexible_model_forward.5} parent=1 // pred_check
      _
    $region43: #{flexible_model_forward.5} parent=1 // pred_check_branch
      %101 = sbr.rel (0) target = $region45
    $region44: #{flexible_model_forward.5} parent=1 // pred_region
      %103 = dma.done [#allocation8], 32
    $region45: #{flexible_model_forward.5} parent=1 // pred_fallthru
      _
    // Predicated region
    $region46: #{flexible_model_forward.5} parent=1 // pred_check
      _
    $region47: #{flexible_model_forward.5} parent=1 // pred_check_branch
      %105 = sbr.rel (0) target = $region49
    $region48: #{flexible_model_forward.5} parent=1 // pred_region
      %107 = dma.done [#allocation8], 3200
    $region49: #{flexible_model_forward.5} parent=1 // pred_fallthru
      _
    // Predicated region
    $region50: #{flexible_model_forward.5} parent=1 // pred_check
      _
    $region51: #{flexible_model_forward.5} parent=1 // pred_check_branch
      %109 = sbr.rel (0) target = $region53
    $region52: #{flexible_model_forward.5} parent=1 // pred_region
      %111 = dma.done [#allocation11], 16
    $region53: #{flexible_model_forward.5} parent=1 // pred_fallthru
      _
    %v112 = vld [vmem:[#allocation2] sm:$0xff]
    %v113 = vld [vmem:[#allocation4] sm:$0xff]
    %v114 = vld [vmem:[#allocation4 + $0x8] sm:$0xff]
    %v115 = vld [vmem:[#allocation4 + $0x10] sm:$0xff]
    %v116 = vld [vmem:[#allocation4 + $0x18] sm:$0xff]
    %v117 = vld [vmem:[#allocation4 + $0x20] sm:$0xff]
    %v118 = vld [vmem:[#allocation4 + $0x28] sm:$0xff]
    %v119 = vld [vmem:[#allocation4 + $0x30] sm:$0xff]
    %v120 = vld [vmem:[#allocation4 + $0x38] sm:$0xff]
    %v121 = vld [vmem:[#allocation6] sm:$0x3]
    %v123 = vperm.slane %v121, 0
    %v124 = vperm.slane %v121, 1
    %vm127 = vcmask 261120
    %v129 = vsel %vm127, %v112, 0
    %131 = vmatpush.msra.mxu0 0.0
    %132 = vmatpush.msra.mxu0 0.0
    %133 = vmatpush.msra.mxu0 0.0
    %134 = vmatpush.msra.mxu0 0.0
    %135 = vmatpush.msra.mxu0 0.0
    %136 = vmatpush.msra.mxu0 0.0
    %137 = vmatpush.msra.mxu0 0.0
    %138 = vmatpush.msra.mxu0 0.0
    %139 = vmatpush.msra.mxu0 0.0
    %140 = vmatpush.msra.mxu0 0.0
    %141 = vmatpush.msra.mxu0 0.0
    %142 = vmatpush.msra.mxu0 0.0
    %143 = vmatpush.msra.mxu0 %v119
    %144 = vmatpush.msra.mxu0 %v117
    %145 = vmatpush.msra.mxu0 %v115
    %146 = vmatpush.msra.mxu0 %v113
    %147 = vmatmul.f32.gmra.mxu0 %v129
    %v148 = vpop.f32.mrf.mxu0
    %v149 = vadd.f32 %v123, %v148
    %150 = vdwg.mxu0
    %151 = vmatpush.msra.mxu0 0.0
    %152 = vmatpush.msra.mxu0 0.0
    %153 = vmatpush.msra.mxu0 0.0
    %154 = vmatpush.msra.mxu0 0.0
    %155 = vmatpush.msra.mxu0 0.0
    %156 = vmatpush.msra.mxu0 0.0
    %157 = vmatpush.msra.mxu0 0.0
    %158 = vmatpush.msra.mxu0 0.0
    %159 = vmatpush.msra.mxu0 0.0
    %160 = vmatpush.msra.mxu0 0.0
    %161 = vmatpush.msra.mxu0 0.0
    %162 = vmatpush.msra.mxu0 0.0
    %163 = vmatpush.msra.mxu0 %v120
    %164 = vmatpush.msra.mxu0 %v118
    %165 = vmatpush.msra.mxu0 %v116
    %166 = vmatpush.msra.mxu0 %v114
    %167 = vmatmul.f32.gmra.mxu0 %v129
    %v168 = vpop.f32.mrf.mxu0
    %v169 = vadd.f32 %v124, %v168
    %170 = vdwg.mxu0
    %v171 = vtanh.pop %v149
    %v172 = vtanh.pop %v169
    %v173 = vld [vmem:[%s3] sm:$0xff]
    %v174 = vld [vmem:[%s3 + $0x8] sm:$0xff]
    %v175 = vld [vmem:[%s3 + $0x10] sm:$0xff]
    %v176 = vld [vmem:[%s3 + $0x18] sm:$0xff]
    %v177 = vld [vmem:[%s3 + $0x20] sm:$0xff]
    %v178 = vld [vmem:[%s3 + $0x28] sm:$0xff]
    %v179 = vld [vmem:[%s3 + $0x30] sm:$0xff]
    %v180 = vld [vmem:[%s3 + $0x38] sm:$0xff]
    %v181 = vld [vmem:[%s3 + $0x40] sm:$0xff]
    %v182 = vld [vmem:[%s3 + $0x48] sm:$0xff]
    %v183 = vld [vmem:[%s3 + $0x50] sm:$0xff]
    %v184 = vld [vmem:[%s3 + $0x58] sm:$0xff]
    %v185 = vld [vmem:[%s3 + $0x60] sm:$0xff]
    %v186 = vld [vmem:[%s3 + $0x68] sm:$0xff]
    %v187 = vld [vmem:[%s3 + $0x70] sm:$0xff]
    %v188 = vld [vmem:[%s3 + $0x78] sm:$0xff]
    %v189 = vld [vmem:[%s3 + $0x80] sm:$0xff]
    %v190 = vld [vmem:[%s3 + $0x88] sm:$0xff]
    %v191 = vld [vmem:[%s3 + $0x90] sm:$0xff]
    %v192 = vld [vmem:[%s3 + $0x98] sm:$0xff]
    %v193 = vld [vmem:[%s3 + $0xa0] sm:$0xff]
    %v194 = vld [vmem:[%s3 + $0xa8] sm:$0xff]
    %v195 = vld [vmem:[%s3 + $0xb0] sm:$0xff]
    %v196 = vld [vmem:[%s3 + $0xb8] sm:$0xff]
    %v197 = vld [vmem:[%s3 + $0xc0] sm:$0xff]
    %v198 = vld [vmem:[%s3 + $0xc8] sm:$0xff]
    %v199 = vld [vmem:[%s3 + $0xd0] sm:$0xff]
    %v200 = vld [vmem:[%s3 + $0xd8] sm:$0xff]
    %v201 = vld [vmem:[%s3 + $0xe0] sm:$0xff]
    %v202 = vld [vmem:[%s3 + $0xe8] sm:$0xff]
    %v203 = vld [vmem:[%s3 + $0xf0] sm:$0xff]
    %v204 = vld [vmem:[%s3 + $0xf8] sm:$0xff]
    %v205 = vld [vmem:[%s3 + $0x100] sm:$0xff]
    %v206 = vld [vmem:[%s3 + $0x108] sm:$0xff]
    %v207 = vld [vmem:[%s3 + $0x110] sm:$0xff]
    %v208 = vld [vmem:[%s3 + $0x118] sm:$0xff]
    %v209 = vld [vmem:[%s3 + $0x120] sm:$0xff]
    %v210 = vld [vmem:[%s3 + $0x128] sm:$0xff]
    %v211 = vld [vmem:[%s3 + $0x130] sm:$0xff]
    %v212 = vld [vmem:[%s3 + $0x138] sm:$0xff]
    %v213 = vld [vmem:[%s3 + $0x140] sm:$0xff]
    %v214 = vld [vmem:[%s3 + $0x148] sm:$0xff]
    %v215 = vld [vmem:[%s3 + $0x150] sm:$0xff]
    %v216 = vld [vmem:[%s3 + $0x158] sm:$0xff]
    %v217 = vld [vmem:[%s3 + $0x160] sm:$0xff]
    %v218 = vld [vmem:[%s3 + $0x168] sm:$0xff]
    %v219 = vld [vmem:[%s3 + $0x170] sm:$0xff]
    %v220 = vld [vmem:[%s3 + $0x178] sm:$0xff]
    %v221 = vld [vmem:[%s3 + $0x180] sm:$0xff]
    %v222 = vld [vmem:[%s3 + $0x188] sm:$0xff]
    %v223 = vld [vmem:[%s3 + $0x190] sm:$0xff]
    %v224 = vld [vmem:[%s3 + $0x198] sm:$0xff]
    %v225 = vld [vmem:[%s3 + $0x1a0] sm:$0xff]
    %v226 = vld [vmem:[%s3 + $0x1a8] sm:$0xff]
    %v227 = vld [vmem:[%s3 + $0x1b0] sm:$0xff]
    %v228 = vld [vmem:[%s3 + $0x1b8] sm:$0xff]
    %v229 = vld [vmem:[%s3 + $0x1c0] sm:$0xff]
    %v230 = vld [vmem:[%s3 + $0x1c8] sm:$0xff]
    %v231 = vld [vmem:[%s3 + $0x1d0] sm:$0xff]
    %v232 = vld [vmem:[%s3 + $0x1d8] sm:$0xff]
    %v233 = vld [vmem:[%s3 + $0x1e0] sm:$0xff]
    %v234 = vld [vmem:[%s3 + $0x1e8] sm:$0xff]
    %v235 = vld [vmem:[%s3 + $0x1f0] sm:$0x3]
    %v236 = vld [vmem:[%s3 + $0x1f8] sm:$0x3]
    %v237 = vld [vmem:[#allocation7] sm:$0x3]
    %v239 = vperm.slane %v237, 0
    %v240 = vperm.slane %v237, 1
    %vm243 = vcmask 998400
    %v245 = vsel %vm243, %v172, 0
    %vm247 = vcmask 1041408
    %v249 = vsel %vm247, %v235, 0
    %v252 = vsel %vm247, %v236, 0
    %254 = vmatpush.msra.mxu0 %v203
    %255 = vmatpush.msra.mxu0 %v201
    %256 = vmatpush.msra.mxu0 %v199
    %257 = vmatpush.msra.mxu0 %v197
    %258 = vmatpush.msra.mxu0 %v195
    %259 = vmatpush.msra.mxu0 %v193
    %260 = vmatpush.msra.mxu0 %v191
    %261 = vmatpush.msra.mxu0 %v189
    %262 = vmatpush.msra.mxu0 %v187
    %263 = vmatpush.msra.mxu0 %v185
    %264 = vmatpush.msra.mxu0 %v183
    %265 = vmatpush.msra.mxu0 %v181
    %266 = vmatpush.msra.mxu0 %v179
    %267 = vmatpush.msra.mxu0 %v177
    %268 = vmatpush.msra.mxu0 %v175
    %269 = vmatpush.msra.mxu0 %v173
    %270 = vmatmul.f32.gmra.mxu0 %v171
    %v271 = vpop.f32.mrf.mxu0
    %v272 = vadd.f32 %v239, %v271
    %273 = vdwg.mxu0
    %274 = vmatpush.msra.mxu0 %v249
    %275 = vmatpush.msra.mxu0 %v233
    %276 = vmatpush.msra.mxu0 %v231
    %277 = vmatpush.msra.mxu0 %v229
    %278 = vmatpush.msra.mxu0 %v227
    %279 = vmatpush.msra.mxu0 %v225
    %280 = vmatpush.msra.mxu0 %v223
    %281 = vmatpush.msra.mxu0 %v221
    %282 = vmatpush.msra.mxu0 %v219
    %283 = vmatpush.msra.mxu0 %v217
    %284 = vmatpush.msra.mxu0 %v215
    %285 = vmatpush.msra.mxu0 %v213
    %286 = vmatpush.msra.mxu0 %v211
    %287 = vmatpush.msra.mxu0 %v209
    %288 = vmatpush.msra.mxu0 %v207
    %289 = vmatpush.msra.mxu0 %v205
    %290 = vmatmul.f32.gmra.mxu0 %v245
    %v291 = vpop.f32.mrf.mxu0
    %v292 = vadd.f32 %v272, %v291
    %293 = vdwg.mxu0
    %294 = vmatpush.msra.mxu0 %v204
    %295 = vmatpush.msra.mxu0 %v202
    %296 = vmatpush.msra.mxu0 %v200
    %297 = vmatpush.msra.mxu0 %v198
    %298 = vmatpush.msra.mxu0 %v196
    %299 = vmatpush.msra.mxu0 %v194
    %300 = vmatpush.msra.mxu0 %v192
    %301 = vmatpush.msra.mxu0 %v190
    %302 = vmatpush.msra.mxu0 %v188
    %303 = vmatpush.msra.mxu0 %v186
    %304 = vmatpush.msra.mxu0 %v184
    %305 = vmatpush.msra.mxu0 %v182
    %306 = vmatpush.msra.mxu0 %v180
    %307 = vmatpush.msra.mxu0 %v178
    %308 = vmatpush.msra.mxu0 %v176
    %309 = vmatpush.msra.mxu0 %v174
    %310 = vmatmul.f32.gmra.mxu0 %v171
    %v311 = vpop.f32.mrf.mxu0
    %v312 = vadd.f32 %v240, %v311
    %313 = vdwg.mxu0
    %314 = vmatpush.msra.mxu0 %v252
    %315 = vmatpush.msra.mxu0 %v234
    %316 = vmatpush.msra.mxu0 %v232
    %317 = vmatpush.msra.mxu0 %v230
    %318 = vmatpush.msra.mxu0 %v228
    %319 = vmatpush.msra.mxu0 %v226
    %320 = vmatpush.msra.mxu0 %v224
    %321 = vmatpush.msra.mxu0 %v222
    %322 = vmatpush.msra.mxu0 %v220
    %323 = vmatpush.msra.mxu0 %v218
    %324 = vmatpush.msra.mxu0 %v216
    %325 = vmatpush.msra.mxu0 %v214
    %326 = vmatpush.msra.mxu0 %v212
    %327 = vmatpush.msra.mxu0 %v210
    %328 = vmatpush.msra.mxu0 %v208
    %329 = vmatpush.msra.mxu0 %v206
    %330 = vmatmul.f32.gmra.mxu0 %v245
    %v331 = vpop.f32.mrf.mxu0
    %v332 = vadd.f32 %v312, %v331
    %333 = vdwg.mxu0
    %v334 = vtanh.pop %v292
    %v335 = vtanh.pop %v332
    %v336 = vld [vmem:[#allocation9] sm:$0xff]
    %v337 = vld [vmem:[#allocation9 + $0x8] sm:$0xff]
    %v338 = vld [vmem:[#allocation9 + $0x10] sm:$0xff]
    %v339 = vld [vmem:[#allocation9 + $0x18] sm:$0xff]
    %v340 = vld [vmem:[#allocation9 + $0x20] sm:$0xff]
    %v341 = vld [vmem:[#allocation9 + $0x28] sm:$0xff]
    %v342 = vld [vmem:[#allocation9 + $0x30] sm:$0xff]
    %v343 = vld [vmem:[#allocation9 + $0x38] sm:$0xff]
    %v344 = vld [vmem:[#allocation9 + $0x40] sm:$0xff]
    %v345 = vld [vmem:[#allocation9 + $0x48] sm:$0xff]
    %v346 = vld [vmem:[#allocation9 + $0x50] sm:$0xff]
    %v347 = vld [vmem:[#allocation9 + $0x58] sm:$0xff]
    %v348 = vld [vmem:[#allocation9 + $0x60] sm:$0xff]
    %v349 = vld [vmem:[#allocation9 + $0x68] sm:$0xff]
    %v350 = vld [vmem:[#allocation9 + $0x70] sm:$0xff]
    %v351 = vld [vmem:[#allocation9 + $0x78] sm:$0xff]
    %v352 = vld [vmem:[#allocation9 + $0x80] sm:$0xff]
    %v353 = vld [vmem:[#allocation9 + $0x88] sm:$0xff]
    %v354 = vld [vmem:[#allocation9 + $0x90] sm:$0xff]
    %v355 = vld [vmem:[#allocation9 + $0x98] sm:$0xff]
    %v356 = vld [vmem:[#allocation9 + $0xa0] sm:$0xff]
    %v357 = vld [vmem:[#allocation9 + $0xa8] sm:$0xff]
    %v358 = vld [vmem:[#allocation9 + $0xb0] sm:$0xff]
    %v359 = vld [vmem:[#allocation9 + $0xb8] sm:$0xff]
    %v360 = vld [vmem:[#allocation9 + $0xc0] sm:$0xff]
    %v361 = vld [vmem:[#allocation10] sm:$0x1]
    %v363 = vperm.slane %v361, 0
    %vm365 = vcmask 588800
    %v367 = vsel %vm365, %v335, 0
    %369 = vmatpush.msra.mxu0 %v351
    %370 = vmatpush.msra.mxu0 %v350
    %371 = vmatpush.msra.mxu0 %v349
    %372 = vmatpush.msra.mxu0 %v348
    %373 = vmatpush.msra.mxu0 %v347
    %374 = vmatpush.msra.mxu0 %v346
    %375 = vmatpush.msra.mxu0 %v345
    %376 = vmatpush.msra.mxu0 %v344
    %377 = vmatpush.msra.mxu0 %v343
    %378 = vmatpush.msra.mxu0 %v342
    %379 = vmatpush.msra.mxu0 %v341
    %380 = vmatpush.msra.mxu0 %v340
    %381 = vmatpush.msra.mxu0 %v339
    %382 = vmatpush.msra.mxu0 %v338
    %383 = vmatpush.msra.mxu0 %v337
    %384 = vmatpush.msra.mxu0 %v336
    %385 = vmatmul.f32.gmra.mxu0 %v334
    %v386 = vpop.f32.mrf.mxu0
    %v387 = vadd.f32 %v363, %v386
    %388 = vdwg.mxu0
    %389 = vmatpush.msra.mxu0 0.0
    %390 = vmatpush.msra.mxu0 0.0
    %391 = vmatpush.msra.mxu0 0.0
    %392 = vmatpush.msra.mxu0 0.0
    %393 = vmatpush.msra.mxu0 0.0
    %394 = vmatpush.msra.mxu0 0.0
    %395 = vmatpush.msra.mxu0 0.0
    %396 = vmatpush.msra.mxu0 %v360
    %397 = vmatpush.msra.mxu0 %v359
    %398 = vmatpush.msra.mxu0 %v358
    %399 = vmatpush.msra.mxu0 %v357
    %400 = vmatpush.msra.mxu0 %v356
    %401 = vmatpush.msra.mxu0 %v355
    %402 = vmatpush.msra.mxu0 %v354
    %403 = vmatpush.msra.mxu0 %v353
    %404 = vmatpush.msra.mxu0 %v352
    %405 = vmatmul.f32.gmra.mxu0 %v367
    %v406 = vpop.f32.mrf.mxu0
    %v407 = vadd.f32 %v387, %v406
    %408 = vdwg.mxu0
    %v409 = vtanh.pop %v407
    %vm410 = vcmask 818176
    %411 = vst.msk [vmem:[%s7] sm:$0xff] %vm410, %v409
    // Predicated region
    $region54: #{flexible_model_forward.5} parent=1 // pred_check
      _
    $region55: #{flexible_model_forward.5} parent=1 // pred_check_branch
      %413 = sbr.rel (0) target = $region57
    $region56: #{flexible_model_forward.5} parent=1 // pred_region
      _
    $region57: #{flexible_model_forward.5} parent=1 // pred_fallthru
      _
    // Predicated region
    $region58: #{flexible_model_forward.5} parent=1 // pred_check
      _
    $region59: #{flexible_model_forward.5} parent=1 // pred_check_branch
      %415 = sbr.rel (0) target = $region61
    $region60: #{flexible_model_forward.5} parent=1 // pred_region
      _
    $region61: #{flexible_model_forward.5} parent=1 // pred_fallthru
      _
    %416 = vsyncpa [#allocation3], 1
    %417 = vsyncpa [#allocation5], 1
    %418 = vsyncpa [#allocation8], 1
    %419 = vsyncpa [#allocation11], 1

// kernel: flexible_model_forward.8
$region0: #{flexible_model_forward.8}
  #allocation0 [shape = 'u32[]', space=smem, size = 0x4, offset = 0x4, fixed_abs, tag = 'smem constant byte address 0x4 - core index']
  #allocation1 [shape = 'u32[72,128]{1,0:T(1,128)}', space=vmem, size = 0x9000, scoped, tag = 'internal scratch']
  %s0 = inlined_call_operand.vmem [shape: f32[4,100], index: 0, kind: input, shape index: {}]
  %s1 = inlined_call_operand.vmem [shape: f32[4,100], index: 1, kind: input, shape index: {}]
  %s2 = inlined_call_operand.vmem [shape: f32[100,80], index: 2, kind: input, shape index: {}]
  %s3 = inlined_call_operand.hbm [shape: f32[1,80], index: 3, kind: input, shape index: {}]
  %s4 = inlined_call_operand.vmem [shape: f32[80,60], index: 4, kind: input, shape index: {}]
  %s5 = inlined_call_operand.hbm [shape: f32[1,60], index: 5, kind: input, shape index: {}]
  %s6 = inlined_call_operand.vmem [shape: f32[60,40], index: 6, kind: input, shape index: {}]
  %s7 = inlined_call_operand.hbm [shape: f32[1,40], index: 7, kind: input, shape index: {}]
  %s8 = inlined_call_operand.hbm [shape: f32[1,4], index: 8, kind: output, shape index: {}]
  %s9 = sld [smem:[#allocation0]]
  $region54: #{flexible_model_forward.8} parent=0
    _
  %s11 = ssub.s32 1, %s9
  %s12 = scalar_select 0, %s11, %s9
  $region1: #{flexible_model_forward.8} parent=0
    #allocation2 [shape = 'u8[512]{0}', space=vmem, size = 0x400, scoped, tag = 'input window, operand 3, single buffered']
    #allocation3 [shape = 's32[1]{0}', space=sflag, size = 0x4, scoped, tag = 'scoped memory for flexible_model_forward.8']
    #allocation4 [shape = 's32[1]{0}', space=sflag, size = 0x4, scoped, tag = 'scoped memory for flexible_model_forward.8']
    #allocation5 [shape = 'u8[512]{0}', space=vmem, size = 0x400, scoped, tag = 'input window, operand 5, single buffered']
    #allocation6 [shape = 's32[1]{0}', space=sflag, size = 0x4, scoped, tag = 'scoped memory for flexible_model_forward.8']
    #allocation7 [shape = 'u8[512]{0}', space=vmem, size = 0x400, scoped, tag = 'input window, operand 7, single buffered']
    #allocation8 [shape = 'u8[512]{0}', space=vmem, size = 0x400, scoped, tag = 'output window, operand 0, single buffered']
    %13 = vsyncpa [#allocation3], 0
    %14 = vsyncpa [#allocation6], 0
    %15 = vsyncpa [#allocation4], 0
    // Predicated region
    $region2: #{flexible_model_forward.8} parent=1 // pred_check
      _
    $region3: #{flexible_model_forward.8} parent=1 // pred_check_branch
      %17 = sbr.rel (0) target = $region5
    $region4: #{flexible_model_forward.8} parent=1 // pred_region
      _
    $region5: #{flexible_model_forward.8} parent=1 // pred_fallthru
      _
    // Predicated region
    $region6: #{flexible_model_forward.8} parent=1 // pred_check
      _
    $region7: #{flexible_model_forward.8} parent=1 // pred_check_branch
      %19 = sbr.rel (0) target = $region9
    $region8: #{flexible_model_forward.8} parent=1 // pred_region
      _
    $region9: #{flexible_model_forward.8} parent=1 // pred_fallthru
      _
    // Predicated region
    $region10: #{flexible_model_forward.8} parent=1 // pred_check
      _
    $region11: #{flexible_model_forward.8} parent=1 // pred_check_branch
      %21 = sbr.rel (0) target = $region13
    $region12: #{flexible_model_forward.8} parent=1 // pred_region
      _
    $region13: #{flexible_model_forward.8} parent=1 // pred_fallthru
      _
    // Predicated region
    $region14: #{flexible_model_forward.8} parent=1 // pred_check
      _
    $region15: #{flexible_model_forward.8} parent=1 // pred_check_branch
      %23 = sbr.rel (0) target = $region17
    $region16: #{flexible_model_forward.8} parent=1 // pred_region
      %25 = vsyncadd [#allocation3], 0
      %s27 = sshll.u32 %s3, 4
      %s28 = int_to_ptr.hbm [resolvable:$true] %s27
      %s29 = sshll.u32 [#allocation2], 4
      %s30 = int_to_ptr.vmem [resolvable:$true] %s29
      %32 = dma.hbm_to_vmem [thread:$0]  %s28, 16, %s30, [#allocation3]
    $region17: #{flexible_model_forward.8} parent=1 // pred_fallthru
      _
    // Predicated region
    $region18: #{flexible_model_forward.8} parent=1 // pred_check
      _
    $region19: #{flexible_model_forward.8} parent=1 // pred_check_branch
      %34 = sbr.rel (0) target = $region21
    $region20: #{flexible_model_forward.8} parent=1 // pred_region
      _
    $region21: #{flexible_model_forward.8} parent=1 // pred_fallthru
      _
    // Predicated region
    $region22: #{flexible_model_forward.8} parent=1 // pred_check
      _
    $region23: #{flexible_model_forward.8} parent=1 // pred_check_branch
      %36 = sbr.rel (0) target = $region25
    $region24: #{flexible_model_forward.8} parent=1 // pred_region
      %38 = vsyncadd [#allocation6], 0
      %s40 = sshll.u32 %s5, 4
      %s41 = int_to_ptr.hbm [resolvable:$true] %s40
      %s42 = sshll.u32 [#allocation5], 4
      %s43 = int_to_ptr.vmem [resolvable:$true] %s42
      %45 = dma.hbm_to_vmem [thread:$0]  %s41, 16, %s43, [#allocation6]
    $region25: #{flexible_model_forward.8} parent=1 // pred_fallthru
      _
    // Predicated region
    $region26: #{flexible_model_forward.8} parent=1 // pred_check
      _
    $region27: #{flexible_model_forward.8} parent=1 // pred_check_branch
      %47 = sbr.rel (0) target = $region29
    $region28: #{flexible_model_forward.8} parent=1 // pred_region
      _
    $region29: #{flexible_model_forward.8} parent=1 // pred_fallthru
      _
    // Predicated region
    $region30: #{flexible_model_forward.8} parent=1 // pred_check
      _
    $region31: #{flexible_model_forward.8} parent=1 // pred_check_branch
      %49 = sbr.rel (0) target = $region33
    $region32: #{flexible_model_forward.8} parent=1 // pred_region
      %51 = vsyncadd [#allocation6], 0
      %s53 = sshll.u32 %s7, 4
      %s54 = int_to_ptr.hbm [resolvable:$true] %s53
      %s55 = sshll.u32 [#allocation7], 4
      %s56 = int_to_ptr.vmem [resolvable:$true] %s55
      %58 = dma.hbm_to_vmem [thread:$0]  %s54, 16, %s56, [#allocation6]
    $region33: #{flexible_model_forward.8} parent=1 // pred_fallthru
      _
    // Predicated region
    $region34: #{flexible_model_forward.8} parent=1 // pred_check
      _
    $region35: #{flexible_model_forward.8} parent=1 // pred_check_branch
      %60 = sbr.rel (0) target = $region37
    $region36: #{flexible_model_forward.8} parent=1 // pred_region
      %62 = dma.done [#allocation3], 16
    $region37: #{flexible_model_forward.8} parent=1 // pred_fallthru
      _
    // Predicated region
    $region38: #{flexible_model_forward.8} parent=1 // pred_check
      _
    $region39: #{flexible_model_forward.8} parent=1 // pred_check_branch
      %64 = sbr.rel (0) target = $region41
    $region40: #{flexible_model_forward.8} parent=1 // pred_region
      %66 = dma.done [#allocation6], 16
    $region41: #{flexible_model_forward.8} parent=1 // pred_fallthru
      _
    // Predicated region
    $region42: #{flexible_model_forward.8} parent=1 // pred_check
      _
    $region43: #{flexible_model_forward.8} parent=1 // pred_check_branch
      %68 = sbr.rel (0) target = $region45
    $region44: #{flexible_model_forward.8} parent=1 // pred_region
      %70 = dma.done [#allocation6], 16
    $region45: #{flexible_model_forward.8} parent=1 // pred_fallthru
      _
    %v71 = vld [vmem:[%s0] sm:$0xf]
    %v72 = vld [vmem:[%s1] sm:$0xf]
    %v73 = vmul.f32 %v71, %v72
    %v74 = vld [vmem:[%s2] sm:$0xff]
    %v75 = vld [vmem:[%s2 + $0x8] sm:$0xff]
    %v76 = vld [vmem:[%s2 + $0x10] sm:$0xff]
    %v77 = vld [vmem:[%s2 + $0x18] sm:$0xff]
    %v78 = vld [vmem:[%s2 + $0x20] sm:$0xff]
    %v79 = vld [vmem:[%s2 + $0x28] sm:$0xff]
    %v80 = vld [vmem:[%s2 + $0x30] sm:$0xff]
    %v81 = vld [vmem:[%s2 + $0x38] sm:$0xff]
    %v82 = vld [vmem:[%s2 + $0x40] sm:$0xff]
    %v83 = vld [vmem:[%s2 + $0x48] sm:$0xff]
    %v84 = vld [vmem:[%s2 + $0x50] sm:$0xff]
    %v85 = vld [vmem:[%s2 + $0x58] sm:$0xff]
    %v86 = vld [vmem:[%s2 + $0x60] sm:$0xf]
    %v87 = vld [vmem:[#allocation2] sm:$0x1]
    %v89 = vperm.slane %v87, 0
    %vm91 = vcmask 818176
    %v93 = vsel %vm91, %v73, 0
    %vm95 = vcmask 1043456
    %v97 = vsel %vm95, %v86, 0
    %99 = vmatpush.msra.mxu0 0.0
    %100 = vmatpush.msra.mxu0 0.0
    %101 = vmatpush.msra.mxu0 0.0
    %102 = vmatpush.msra.mxu0 %v97
    %103 = vmatpush.msra.mxu0 %v85
    %104 = vmatpush.msra.mxu0 %v84
    %105 = vmatpush.msra.mxu0 %v83
    %106 = vmatpush.msra.mxu0 %v82
    %107 = vmatpush.msra.mxu0 %v81
    %108 = vmatpush.msra.mxu0 %v80
    %109 = vmatpush.msra.mxu0 %v79
    %110 = vmatpush.msra.mxu0 %v78
    %111 = vmatpush.msra.mxu0 %v77
    %112 = vmatpush.msra.mxu0 %v76
    %113 = vmatpush.msra.mxu0 %v75
    %114 = vmatpush.msra.mxu0 %v74
    %115 = vmatmul.f32.gmra.mxu0 %v93
    %v116 = vpop.f32.mrf.mxu0
    %v117 = vadd.f32 %v89, %v116
    %118 = vdwg.mxu0
    %v119 = vmax.f32 %v117, 0.0
    %v120 = vld [vmem:[%s4] sm:$0xff]
    %v121 = vld [vmem:[%s4 + $0x8] sm:$0xff]
    %v122 = vld [vmem:[%s4 + $0x10] sm:$0xff]
    %v123 = vld [vmem:[%s4 + $0x18] sm:$0xff]
    %v124 = vld [vmem:[%s4 + $0x20] sm:$0xff]
    %v125 = vld [vmem:[%s4 + $0x28] sm:$0xff]
    %v126 = vld [vmem:[%s4 + $0x30] sm:$0xff]
    %v127 = vld [vmem:[%s4 + $0x38] sm:$0xff]
    %v128 = vld [vmem:[%s4 + $0x40] sm:$0xff]
    %v129 = vld [vmem:[%s4 + $0x48] sm:$0xff]
    %v130 = vld [vmem:[#allocation5] sm:$0x1]
    %v132 = vperm.slane %v130, 0
    %vm134 = vcmask 654336
    %v136 = vsel %vm134, %v119, 0
    %138 = vmatpush.msra.mxu0 0.0
    %139 = vmatpush.msra.mxu0 0.0
    %140 = vmatpush.msra.mxu0 0.0
    %141 = vmatpush.msra.mxu0 0.0
    %142 = vmatpush.msra.mxu0 0.0
    %143 = vmatpush.msra.mxu0 0.0
    %144 = vmatpush.msra.mxu0 %v129
    %145 = vmatpush.msra.mxu0 %v128
    %146 = vmatpush.msra.mxu0 %v127
    %147 = vmatpush.msra.mxu0 %v126
    %148 = vmatpush.msra.mxu0 %v125
    %149 = vmatpush.msra.mxu0 %v124
    %150 = vmatpush.msra.mxu0 %v123
    %151 = vmatpush.msra.mxu0 %v122
    %152 = vmatpush.msra.mxu0 %v121
    %153 = vmatpush.msra.mxu0 %v120
    %154 = vmatmul.f32.gmra.mxu0 %v136
    %v155 = vpop.f32.mrf.mxu0
    %v156 = vadd.f32 %v132, %v155
    %157 = vdwg.mxu0
    %v158 = vmax.f32 %v156, 0.0
    %v159 = vld [vmem:[%s6] sm:$0xff]
    %v160 = vld [vmem:[%s6 + $0x8] sm:$0xff]
    %v161 = vld [vmem:[%s6 + $0x10] sm:$0xff]
    %v162 = vld [vmem:[%s6 + $0x18] sm:$0xff]
    %v163 = vld [vmem:[%s6 + $0x20] sm:$0xff]
    %v164 = vld [vmem:[%s6 + $0x28] sm:$0xff]
    %v165 = vld [vmem:[%s6 + $0x30] sm:$0xff]
    %v166 = vld [vmem:[%s6 + $0x38] sm:$0xf]
    %v167 = vld [vmem:[#allocation7] sm:$0x1]
    %v169 = vperm.slane %v167, 0
    %vm171 = vcmask 490496
    %v173 = vsel %vm171, %v158, 0
    %v176 = vsel %vm95, %v166, 0
    %178 = vmatpush.msra.mxu0 0.0
    %179 = vmatpush.msra.mxu0 0.0
    %180 = vmatpush.msra.mxu0 0.0
    %181 = vmatpush.msra.mxu0 0.0
    %182 = vmatpush.msra.mxu0 0.0
    %183 = vmatpush.msra.mxu0 0.0
    %184 = vmatpush.msra.mxu0 0.0
    %185 = vmatpush.msra.mxu0 0.0
    %186 = vmatpush.msra.mxu0 %v176
    %187 = vmatpush.msra.mxu0 %v165
    %188 = vmatpush.msra.mxu0 %v164
    %189 = vmatpush.msra.mxu0 %v163
    %190 = vmatpush.msra.mxu0 %v162
    %191 = vmatpush.msra.mxu0 %v161
    %192 = vmatpush.msra.mxu0 %v160
    %193 = vmatpush.msra.mxu0 %v159
    %194 = vmatmul.f32.gmra.mxu0 %v173
    %v195 = vpop.f32.mrf.mxu0
    %v196 = vadd.f32 %v169, %v195
    %197 = vdwg.mxu0
    %v198 = vmax.f32 %v196, 0.0
    %vm199 = vcmask 322560
    %v200 = vsel %vm199, %v198, 0.0
    %201 = vadd.xlane.f32.xlu0 %v200
    %v202 = vpop.xlane.xlu0 %201
    %v204 = vlaneseq
    %v205 = vand.u32 %v204, 127
    %v206 = vperm.slane %v202, %v205
    %vm208 = vcmask 24576
    %209 = vst.msk [vmem:[#allocation8] sm:$0x1] %vm208, %v206
    // Predicated region
    $region46: #{flexible_model_forward.8} parent=1 // pred_check
      _
    $region47: #{flexible_model_forward.8} parent=1 // pred_check_branch
      %211 = sbr.rel (0) target = $region49
    $region48: #{flexible_model_forward.8} parent=1 // pred_region
      %213 = vsyncadd [#allocation4], 0
      %s215 = sshll.u32 [#allocation8], 4
      %s216 = int_to_ptr.vmem [resolvable:$true] %s215
      %s217 = sshll.u32 %s8, 4
      %s218 = int_to_ptr.hbm [resolvable:$true] %s217
      %220 = dma.vmem_to_hbm [thread:$0]  %s216, 16, %s218, [#allocation4]
    $region49: #{flexible_model_forward.8} parent=1 // pred_fallthru
      _
    // Predicated region
    $region50: #{flexible_model_forward.8} parent=1 // pred_check
      _
    $region51: #{flexible_model_forward.8} parent=1 // pred_check_branch
      %222 = sbr.rel (0) target = $region53
    $region52: #{flexible_model_forward.8} parent=1 // pred_region
      %224 = dma.done [#allocation4], 16
    $region53: #{flexible_model_forward.8} parent=1 // pred_fallthru
      _
    %225 = vsyncpa [#allocation3], 1
    %226 = vsyncpa [#allocation6], 1
    %227 = vsyncpa [#allocation4], 1

// kernel: flexible_model_forward.7
$region0: #{flexible_model_forward.7}
  #allocation0 [shape = 'u32[]', space=smem, size = 0x4, offset = 0x4, fixed_abs, tag = 'smem constant byte address 0x4 - core index']
  #allocation1 [shape = 'u32[72,128]{1,0:T(1,128)}', space=vmem, size = 0x9000, scoped, tag = 'internal scratch']
  %s0 = inlined_call_operand.hbm [shape: f32[4,64], index: 0, kind: input, shape index: {}]
  %s1 = inlined_call_operand.hbm [shape: f32[64,1000], index: 1, kind: input, shape index: {}]
  %s2 = inlined_call_operand.hbm [shape: f32[1,1000], index: 2, kind: input, shape index: {}]
  %s3 = inlined_call_operand.hbm [shape: f32[1000,500], index: 3, kind: input, shape index: {}]
  %s4 = inlined_call_operand.hbm [shape: f32[1,500], index: 4, kind: input, shape index: {}]
  %s5 = inlined_call_operand.vmem [shape: f32[500,100], index: 5, kind: input, shape index: {}]
  %s6 = inlined_call_operand.hbm [shape: f32[1,100], index: 6, kind: input, shape index: {}]
  %s7 = inlined_call_operand.vmem [shape: f32[4,100], index: 7, kind: output, shape index: {}]
  %s8 = sld [smem:[#allocation0]]
  $region62: #{flexible_model_forward.7} parent=0
    _
  %s10 = ssub.s32 1, %s8
  %s11 = scalar_select 0, %s10, %s8
  $region1: #{flexible_model_forward.7} parent=0
    #allocation2 [shape = 'u8[2048]{0}', space=vmem, size = 0x800, scoped, tag = 'input window, operand 0, single buffered']
    #allocation3 [shape = 's32[1]{0}', space=sflag, size = 0x4, scoped, tag = 'scoped memory for flexible_model_forward.7']
    #allocation4 [shape = 'u8[262144]{0}', space=vmem, size = 0x40000, scoped, tag = 'input window, operand 1, single buffered']
    #allocation5 [shape = 's32[1]{0}', space=sflag, size = 0x4, scoped, tag = 'scoped memory for flexible_model_forward.7']
    #allocation6 [shape = 'u8[4096]{0}', space=vmem, size = 0x1000, scoped, tag = 'input window, operand 2, single buffered']
    #allocation7 [shape = 'u8[2048000]{0}', space=vmem, size = 0x1f4000, scoped, tag = 'input window, operand 3, single buffered']
    #allocation8 [shape = 's32[1]{0}', space=sflag, size = 0x4, scoped, tag = 'scoped memory for flexible_model_forward.7']
    #allocation9 [shape = 'u8[2048]{0}', space=vmem, size = 0x800, scoped, tag = 'input window, operand 4, single buffered']
    #allocation10 [shape = 'u8[512]{0}', space=vmem, size = 0x400, scoped, tag = 'input window, operand 6, single buffered']
    #allocation11 [shape = 's32[1]{0}', space=sflag, size = 0x4, scoped, tag = 'scoped memory for flexible_model_forward.7']
    %12 = vsyncpa [#allocation3], 0
    %13 = vsyncpa [#allocation5], 0
    %14 = vsyncpa [#allocation8], 0
    %15 = vsyncpa [#allocation11], 0
    // Predicated region
    $region2: #{flexible_model_forward.7} parent=1 // pred_check
      _
    $region3: #{flexible_model_forward.7} parent=1 // pred_check_branch
      %17 = sbr.rel (0) target = $region5
    $region4: #{flexible_model_forward.7} parent=1 // pred_region
      %19 = vsyncadd [#allocation3], 0
      %s21 = sshll.u32 %s0, 4
      %s22 = int_to_ptr.hbm [resolvable:$true] %s21
      %s23 = sshll.u32 [#allocation2], 4
      %s24 = int_to_ptr.vmem [resolvable:$true] %s23
      %26 = dma.hbm_to_vmem [thread:$0]  %s22, 64, %s24, [#allocation3]
    $region5: #{flexible_model_forward.7} parent=1 // pred_fallthru
      _
    // Predicated region
    $region6: #{flexible_model_forward.7} parent=1 // pred_check
      _
    $region7: #{flexible_model_forward.7} parent=1 // pred_check_branch
      %28 = sbr.rel (0) target = $region9
    $region8: #{flexible_model_forward.7} parent=1 // pred_region
      %30 = vsyncadd [#allocation5], 0
      %s31 = sshll.u32 %s1, 4
      %s32 = int_to_ptr.hbm [resolvable:$true] %s31
      %s33 = sshll.u32 [#allocation4], 4
      %s34 = int_to_ptr.vmem [resolvable:$true] %s33
      %39 = dma.hbm_to_vmem [thread:$0]  %s32, 8192, %s34, [#allocation5], 1024, 1024, 64
    $region9: #{flexible_model_forward.7} parent=1 // pred_fallthru
      _
    // Predicated region
    $region10: #{flexible_model_forward.7} parent=1 // pred_check
      _
    $region11: #{flexible_model_forward.7} parent=1 // pred_check_branch
      %41 = sbr.rel (0) target = $region13
    $region12: #{flexible_model_forward.7} parent=1 // pred_region
      %43 = vsyncadd [#allocation5], 0
      %s45 = sshll.u32 %s2, 4
      %s46 = int_to_ptr.hbm [resolvable:$true] %s45
      %s47 = sshll.u32 [#allocation6], 4
      %s48 = int_to_ptr.vmem [resolvable:$true] %s47
      %50 = dma.hbm_to_vmem [thread:$0]  %s46, 128, %s48, [#allocation5]
    $region13: #{flexible_model_forward.7} parent=1 // pred_fallthru
      _
    // Predicated region
    $region14: #{flexible_model_forward.7} parent=1 // pred_check
      _
    $region15: #{flexible_model_forward.7} parent=1 // pred_check_branch
      %52 = sbr.rel (0) target = $region17
    $region16: #{flexible_model_forward.7} parent=1 // pred_region
      %54 = vsyncadd [#allocation8], 0
      %s55 = sshll.u32 %s3, 4
      %s56 = int_to_ptr.hbm [resolvable:$true] %s55
      %s57 = sshll.u32 [#allocation7], 4
      %s58 = int_to_ptr.vmem [resolvable:$true] %s57
      %63 = dma.hbm_to_vmem [thread:$0]  %s56, 64000, %s58, [#allocation8], 512, 512, 32
    $region17: #{flexible_model_forward.7} parent=1 // pred_fallthru
      _
    // Predicated region
    $region18: #{flexible_model_forward.7} parent=1 // pred_check
      _
    $region19: #{flexible_model_forward.7} parent=1 // pred_check_branch
      %65 = sbr.rel (0) target = $region21
    $region20: #{flexible_model_forward.7} parent=1 // pred_region
      %67 = vsyncadd [#allocation8], 0
      %s69 = sshll.u32 %s4, 4
      %s70 = int_to_ptr.hbm [resolvable:$true] %s69
      %s71 = sshll.u32 [#allocation9], 4
      %s72 = int_to_ptr.vmem [resolvable:$true] %s71
      %74 = dma.hbm_to_vmem [thread:$0]  %s70, 64, %s72, [#allocation8]
    $region21: #{flexible_model_forward.7} parent=1 // pred_fallthru
      _
    // Predicated region
    $region22: #{flexible_model_forward.7} parent=1 // pred_check
      _
    $region23: #{flexible_model_forward.7} parent=1 // pred_check_branch
      %76 = sbr.rel (0) target = $region25
    $region24: #{flexible_model_forward.7} parent=1 // pred_region
      _
    $region25: #{flexible_model_forward.7} parent=1 // pred_fallthru
      _
    // Predicated region
    $region26: #{flexible_model_forward.7} parent=1 // pred_check
      _
    $region27: #{flexible_model_forward.7} parent=1 // pred_check_branch
      %78 = sbr.rel (0) target = $region29
    $region28: #{flexible_model_forward.7} parent=1 // pred_region
      %80 = vsyncadd [#allocation11], 0
      %s82 = sshll.u32 %s6, 4
      %s83 = int_to_ptr.hbm [resolvable:$true] %s82
      %s84 = sshll.u32 [#allocation10], 4
      %s85 = int_to_ptr.vmem [resolvable:$true] %s84
      %87 = dma.hbm_to_vmem [thread:$0]  %s83, 16, %s85, [#allocation11]
    $region29: #{flexible_model_forward.7} parent=1 // pred_fallthru
      _
    // Predicated region
    $region30: #{flexible_model_forward.7} parent=1 // pred_check
      _
    $region31: #{flexible_model_forward.7} parent=1 // pred_check_branch
      %89 = sbr.rel (0) target = $region33
    $region32: #{flexible_model_forward.7} parent=1 // pred_region
      %91 = dma.done [#allocation3], 64
    $region33: #{flexible_model_forward.7} parent=1 // pred_fallthru
      _
    // Predicated region
    $region34: #{flexible_model_forward.7} parent=1 // pred_check
      _
    $region35: #{flexible_model_forward.7} parent=1 // pred_check_branch
      %93 = sbr.rel (0) target = $region37
    $region36: #{flexible_model_forward.7} parent=1 // pred_region
      %95 = dma.done [#allocation5], 8192
    $region37: #{flexible_model_forward.7} parent=1 // pred_fallthru
      _
    // Predicated region
    $region38: #{flexible_model_forward.7} parent=1 // pred_check
      _
    $region39: #{flexible_model_forward.7} parent=1 // pred_check_branch
      %97 = sbr.rel (0) target = $region41
    $region40: #{flexible_model_forward.7} parent=1 // pred_region
      %99 = dma.done [#allocation5], 128
    $region41: #{flexible_model_forward.7} parent=1 // pred_fallthru
      _
    // Predicated region
    $region42: #{flexible_model_forward.7} parent=1 // pred_check
      _
    $region43: #{flexible_model_forward.7} parent=1 // pred_check_branch
      %101 = sbr.rel (0) target = $region45
    $region44: #{flexible_model_forward.7} parent=1 // pred_region
      %103 = dma.done [#allocation8], 64000
    $region45: #{flexible_model_forward.7} parent=1 // pred_fallthru
      _
    // Predicated region
    $region46: #{flexible_model_forward.7} parent=1 // pred_check
      _
    $region47: #{flexible_model_forward.7} parent=1 // pred_check_branch
      %105 = sbr.rel (0) target = $region49
    $region48: #{flexible_model_forward.7} parent=1 // pred_region
      %107 = dma.done [#allocation8], 64
    $region49: #{flexible_model_forward.7} parent=1 // pred_fallthru
      _
    // Predicated region
    $region50: #{flexible_model_forward.7} parent=1 // pred_check
      _
    $region51: #{flexible_model_forward.7} parent=1 // pred_check_branch
      %109 = sbr.rel (0) target = $region53
    $region52: #{flexible_model_forward.7} parent=1 // pred_region
      %111 = dma.done [#allocation11], 16
    $region53: #{flexible_model_forward.7} parent=1 // pred_fallthru
      _
    %v112 = vld [vmem:[#allocation2] sm:$0xf]
    %v113 = vld [vmem:[#allocation4] sm:$0xff]
    %v114 = vld [vmem:[#allocation4 + $0x8] sm:$0xff]
    %v115 = vld [vmem:[#allocation4 + $0x10] sm:$0xff]
    %v116 = vld [vmem:[#allocation4 + $0x18] sm:$0xff]
    %v117 = vld [vmem:[#allocation4 + $0x20] sm:$0xff]
    %v118 = vld [vmem:[#allocation4 + $0x28] sm:$0xff]
    %v119 = vld [vmem:[#allocation4 + $0x30] sm:$0xff]
    %v120 = vld [vmem:[#allocation4 + $0x38] sm:$0xff]
    %v121 = vld [vmem:[#allocation4 + $0x40] sm:$0xff]
    %v122 = vld [vmem:[#allocation4 + $0x48] sm:$0xff]
    %v123 = vld [vmem:[#allocation4 + $0x50] sm:$0xff]
    %v124 = vld [vmem:[#allocation4 + $0x58] sm:$0xff]
    %v125 = vld [vmem:[#allocation4 + $0x60] sm:$0xff]
    %v126 = vld [vmem:[#allocation4 + $0x68] sm:$0xff]
    %v127 = vld [vmem:[#allocation4 + $0x70] sm:$0xff]
    %v128 = vld [vmem:[#allocation4 + $0x78] sm:$0xff]
    %v129 = vld [vmem:[#allocation4 + $0x80] sm:$0xff]
    %v130 = vld [vmem:[#allocation4 + $0x88] sm:$0xff]
    %v131 = vld [vmem:[#allocation4 + $0x90] sm:$0xff]
    %v132 = vld [vmem:[#allocation4 + $0x98] sm:$0xff]
    %v133 = vld [vmem:[#allocation4 + $0xa0] sm:$0xff]
    %v134 = vld [vmem:[#allocation4 + $0xa8] sm:$0xff]
    %v135 = vld [vmem:[#allocation4 + $0xb0] sm:$0xff]
    %v136 = vld [vmem:[#allocation4 + $0xb8] sm:$0xff]
    %v137 = vld [vmem:[#allocation4 + $0xc0] sm:$0xff]
    %v138 = vld [vmem:[#allocation4 + $0xc8] sm:$0xff]
    %v139 = vld [vmem:[#allocation4 + $0xd0] sm:$0xff]
    %v140 = vld [vmem:[#allocation4 + $0xd8] sm:$0xff]
    %v141 = vld [vmem:[#allocation4 + $0xe0] sm:$0xff]
    %v142 = vld [vmem:[#allocation4 + $0xe8] sm:$0xff]
    %v143 = vld [vmem:[#allocation4 + $0xf0] sm:$0xff]
    %v144 = vld [vmem:[#allocation4 + $0xf8] sm:$0xff]
    %v145 = vld [vmem:[#allocation4 + $0x100] sm:$0xff]
    %v146 = vld [vmem:[#allocation4 + $0x108] sm:$0xff]
    %v147 = vld [vmem:[#allocation4 + $0x110] sm:$0xff]
    %v148 = vld [vmem:[#allocation4 + $0x118] sm:$0xff]
    %v149 = vld [vmem:[#allocation4 + $0x120] sm:$0xff]
    %v150 = vld [vmem:[#allocation4 + $0x128] sm:$0xff]
    %v151 = vld [vmem:[#allocation4 + $0x130] sm:$0xff]
    %v152 = vld [vmem:[#allocation4 + $0x138] sm:$0xff]
    %v153 = vld [vmem:[#allocation4 + $0x140] sm:$0xff]
    %v154 = vld [vmem:[#allocation4 + $0x148] sm:$0xff]
    %v155 = vld [vmem:[#allocation4 + $0x150] sm:$0xff]
    %v156 = vld [vmem:[#allocation4 + $0x158] sm:$0xff]
    %v157 = vld [vmem:[#allocation4 + $0x160] sm:$0xff]
    %v158 = vld [vmem:[#allocation4 + $0x168] sm:$0xff]
    %v159 = vld [vmem:[#allocation4 + $0x170] sm:$0xff]
    %v160 = vld [vmem:[#allocation4 + $0x178] sm:$0xff]
    %v161 = vld [vmem:[#allocation4 + $0x180] sm:$0xff]
    %v162 = vld [vmem:[#allocation4 + $0x188] sm:$0xff]
    %v163 = vld [vmem:[#allocation4 + $0x190] sm:$0xff]
    %v164 = vld [vmem:[#allocation4 + $0x198] sm:$0xff]
    %v165 = vld [vmem:[#allocation4 + $0x1a0] sm:$0xff]
    %v166 = vld [vmem:[#allocation4 + $0x1a8] sm:$0xff]
    %v167 = vld [vmem:[#allocation4 + $0x1b0] sm:$0xff]
    %v168 = vld [vmem:[#allocation4 + $0x1b8] sm:$0xff]
    %v169 = vld [vmem:[#allocation4 + $0x1c0] sm:$0xff]
    %v170 = vld [vmem:[#allocation4 + $0x1c8] sm:$0xff]
    %v171 = vld [vmem:[#allocation4 + $0x1d0] sm:$0xff]
    %v172 = vld [vmem:[#allocation4 + $0x1d8] sm:$0xff]
    %v173 = vld [vmem:[#allocation4 + $0x1e0] sm:$0xff]
    %v174 = vld [vmem:[#allocation4 + $0x1e8] sm:$0xff]
    %v175 = vld [vmem:[#allocation4 + $0x1f0] sm:$0xff]
    %v176 = vld [vmem:[#allocation4 + $0x1f8] sm:$0xff]
    %v177 = vld [vmem:[#allocation6] sm:$0xff]
    %v179 = vperm.slane %v177, 0
    %v180 = vperm.slane %v177, 1
    %v181 = vperm.slane %v177, 2
    %v182 = vperm.slane %v177, 3
    %v183 = vperm.slane %v177, 4
    %v184 = vperm.slane %v177, 5
    %v185 = vperm.slane %v177, 6
    %v186 = vperm.slane %v177, 7
    %vm195 = vcmask 523264
    %v197 = vsel %vm195, %v112, 0
    %199 = vmatpush.msra.mxu0 0.0
    %200 = vmatpush.msra.mxu0 0.0
    %201 = vmatpush.msra.mxu0 0.0
    %202 = vmatpush.msra.mxu0 0.0
    %203 = vmatpush.msra.mxu0 0.0
    %204 = vmatpush.msra.mxu0 0.0
    %205 = vmatpush.msra.mxu0 0.0
    %206 = vmatpush.msra.mxu0 0.0
    %207 = vmatpush.msra.mxu0 %v169
    %208 = vmatpush.msra.mxu0 %v161
    %209 = vmatpush.msra.mxu0 %v153
    %210 = vmatpush.msra.mxu0 %v145
    %211 = vmatpush.msra.mxu0 %v137
    %212 = vmatpush.msra.mxu0 %v129
    %213 = vmatpush.msra.mxu0 %v121
    %214 = vmatpush.msra.mxu0 %v113
    %215 = vmatmul.f32.gmra.mxu0 %v197
    %v216 = vpop.f32.mrf.mxu0
    %v217 = vadd.f32 %v179, %v216
    %218 = vdwg.mxu0
    %219 = vmatpush.msra.mxu0 0.0
    %220 = vmatpush.msra.mxu0 0.0
    %221 = vmatpush.msra.mxu0 0.0
    %222 = vmatpush.msra.mxu0 0.0
    %223 = vmatpush.msra.mxu0 0.0
    %224 = vmatpush.msra.mxu0 0.0
    %225 = vmatpush.msra.mxu0 0.0
    %226 = vmatpush.msra.mxu0 0.0
    %227 = vmatpush.msra.mxu0 %v170
    %228 = vmatpush.msra.mxu0 %v162
    %229 = vmatpush.msra.mxu0 %v154
    %230 = vmatpush.msra.mxu0 %v146
    %231 = vmatpush.msra.mxu0 %v138
    %232 = vmatpush.msra.mxu0 %v130
    %233 = vmatpush.msra.mxu0 %v122
    %234 = vmatpush.msra.mxu0 %v114
    %235 = vmatmul.f32.gmra.mxu0 %v197
    %v236 = vpop.f32.mrf.mxu0
    %v237 = vadd.f32 %v180, %v236
    %238 = vdwg.mxu0
    %239 = vmatpush.msra.mxu0 0.0
    %240 = vmatpush.msra.mxu0 0.0
    %241 = vmatpush.msra.mxu0 0.0
    %242 = vmatpush.msra.mxu0 0.0
    %243 = vmatpush.msra.mxu0 0.0
    %244 = vmatpush.msra.mxu0 0.0
    %245 = vmatpush.msra.mxu0 0.0
    %246 = vmatpush.msra.mxu0 0.0
    %247 = vmatpush.msra.mxu0 %v171
    %248 = vmatpush.msra.mxu0 %v163
    %249 = vmatpush.msra.mxu0 %v155
    %250 = vmatpush.msra.mxu0 %v147
    %251 = vmatpush.msra.mxu0 %v139
    %252 = vmatpush.msra.mxu0 %v131
    %253 = vmatpush.msra.mxu0 %v123
    %254 = vmatpush.msra.mxu0 %v115
    %255 = vmatmul.f32.gmra.mxu0 %v197
    %v256 = vpop.f32.mrf.mxu0
    %v257 = vadd.f32 %v181, %v256
    %258 = vdwg.mxu0
    %259 = vmatpush.msra.mxu0 0.0
    %260 = vmatpush.msra.mxu0 0.0
    %261 = vmatpush.msra.mxu0 0.0
    %262 = vmatpush.msra.mxu0 0.0
    %263 = vmatpush.msra.mxu0 0.0
    %264 = vmatpush.msra.mxu0 0.0
    %265 = vmatpush.msra.mxu0 0.0
    %266 = vmatpush.msra.mxu0 0.0
    %267 = vmatpush.msra.mxu0 %v172
    %268 = vmatpush.msra.mxu0 %v164
    %269 = vmatpush.msra.mxu0 %v156
    %270 = vmatpush.msra.mxu0 %v148
    %271 = vmatpush.msra.mxu0 %v140
    %272 = vmatpush.msra.mxu0 %v132
    %273 = vmatpush.msra.mxu0 %v124
    %274 = vmatpush.msra.mxu0 %v116
    %275 = vmatmul.f32.gmra.mxu0 %v197
    %v276 = vpop.f32.mrf.mxu0
    %v277 = vadd.f32 %v182, %v276
    %278 = vdwg.mxu0
    %279 = vmatpush.msra.mxu0 0.0
    %280 = vmatpush.msra.mxu0 0.0
    %281 = vmatpush.msra.mxu0 0.0
    %282 = vmatpush.msra.mxu0 0.0
    %283 = vmatpush.msra.mxu0 0.0
    %284 = vmatpush.msra.mxu0 0.0
    %285 = vmatpush.msra.mxu0 0.0
    %286 = vmatpush.msra.mxu0 0.0
    %287 = vmatpush.msra.mxu0 %v173
    %288 = vmatpush.msra.mxu0 %v165
    %289 = vmatpush.msra.mxu0 %v157
    %290 = vmatpush.msra.mxu0 %v149
    %291 = vmatpush.msra.mxu0 %v141
    %292 = vmatpush.msra.mxu0 %v133
    %293 = vmatpush.msra.mxu0 %v125
    %294 = vmatpush.msra.mxu0 %v117
    %295 = vmatmul.f32.gmra.mxu0 %v197
    %v296 = vpop.f32.mrf.mxu0
    %v297 = vadd.f32 %v183, %v296
    %298 = vdwg.mxu0
    %299 = vmatpush.msra.mxu0 0.0
    %300 = vmatpush.msra.mxu0 0.0
    %301 = vmatpush.msra.mxu0 0.0
    %302 = vmatpush.msra.mxu0 0.0
    %303 = vmatpush.msra.mxu0 0.0
    %304 = vmatpush.msra.mxu0 0.0
    %305 = vmatpush.msra.mxu0 0.0
    %306 = vmatpush.msra.mxu0 0.0
    %307 = vmatpush.msra.mxu0 %v174
    %308 = vmatpush.msra.mxu0 %v166
    %309 = vmatpush.msra.mxu0 %v158
    %310 = vmatpush.msra.mxu0 %v150
    %311 = vmatpush.msra.mxu0 %v142
    %312 = vmatpush.msra.mxu0 %v134
    %313 = vmatpush.msra.mxu0 %v126
    %314 = vmatpush.msra.mxu0 %v118
    %315 = vmatmul.f32.gmra.mxu0 %v197
    %v316 = vpop.f32.mrf.mxu0
    %v317 = vadd.f32 %v184, %v316
    %318 = vdwg.mxu0
    %319 = vmatpush.msra.mxu0 0.0
    %320 = vmatpush.msra.mxu0 0.0
    %321 = vmatpush.msra.mxu0 0.0
    %322 = vmatpush.msra.mxu0 0.0
    %323 = vmatpush.msra.mxu0 0.0
    %324 = vmatpush.msra.mxu0 0.0
    %325 = vmatpush.msra.mxu0 0.0
    %326 = vmatpush.msra.mxu0 0.0
    %327 = vmatpush.msra.mxu0 %v175
    %328 = vmatpush.msra.mxu0 %v167
    %329 = vmatpush.msra.mxu0 %v159
    %330 = vmatpush.msra.mxu0 %v151
    %331 = vmatpush.msra.mxu0 %v143
    %332 = vmatpush.msra.mxu0 %v135
    %333 = vmatpush.msra.mxu0 %v127
    %334 = vmatpush.msra.mxu0 %v119
    %335 = vmatmul.f32.gmra.mxu0 %v197
    %v336 = vpop.f32.mrf.mxu0
    %v337 = vadd.f32 %v185, %v336
    %338 = vdwg.mxu0
    %339 = vmatpush.msra.mxu0 0.0
    %340 = vmatpush.msra.mxu0 0.0
    %341 = vmatpush.msra.mxu0 0.0
    %342 = vmatpush.msra.mxu0 0.0
    %343 = vmatpush.msra.mxu0 0.0
    %344 = vmatpush.msra.mxu0 0.0
    %345 = vmatpush.msra.mxu0 0.0
    %346 = vmatpush.msra.mxu0 0.0
    %347 = vmatpush.msra.mxu0 %v176
    %348 = vmatpush.msra.mxu0 %v168
    %349 = vmatpush.msra.mxu0 %v160
    %350 = vmatpush.msra.mxu0 %v152
    %351 = vmatpush.msra.mxu0 %v144
    %352 = vmatpush.msra.mxu0 %v136
    %353 = vmatpush.msra.mxu0 %v128
    %354 = vmatpush.msra.mxu0 %v120
    %355 = vmatmul.f32.gmra.mxu0 %v197
    %v356 = vpop.f32.mrf.mxu0
    %v357 = vadd.f32 %v186, %v356
    %358 = vdwg.mxu0
    %v359 = vmax.f32 %v217, 0.0
    %v360 = vmax.f32 %v237, 0.0
    %v361 = vmax.f32 %v257, 0.0
    %v362 = vmax.f32 %v277, 0.0
    %v363 = vmax.f32 %v297, 0.0
    %v364 = vmax.f32 %v317, 0.0
    %v365 = vmax.f32 %v337, 0.0
    %v366 = vmax.f32 %v357, 0.0
    %v367 = vld [vmem:[#allocation7] sm:$0xff]
    %v368 = vld [vmem:[#allocation7 + $0x8] sm:$0xff]
    %v369 = vld [vmem:[#allocation7 + $0x10] sm:$0xff]
    %v370 = vld [vmem:[#allocation7 + $0x18] sm:$0xff]
    %v371 = vld [vmem:[#allocation7 + $0x20] sm:$0xff]
    %v372 = vld [vmem:[#allocation7 + $0x28] sm:$0xff]
    %v373 = vld [vmem:[#allocation7 + $0x30] sm:$0xff]
    %v374 = vld [vmem:[#allocation7 + $0x38] sm:$0xff]
    %v375 = vld [vmem:[#allocation7 + $0x40] sm:$0xff]
    %v376 = vld [vmem:[#allocation7 + $0x48] sm:$0xff]
    %v377 = vld [vmem:[#allocation7 + $0x50] sm:$0xff]
    %v378 = vld [vmem:[#allocation7 + $0x58] sm:$0xff]
    %v379 = vld [vmem:[#allocation7 + $0x60] sm:$0xff]
    %v380 = vld [vmem:[#allocation7 + $0x68] sm:$0xff]
    %v381 = vld [vmem:[#allocation7 + $0x70] sm:$0xff]
    %v382 = vld [vmem:[#allocation7 + $0x78] sm:$0xff]
    %v383 = vld [vmem:[#allocation7 + $0x80] sm:$0xff]
    %v384 = vld [vmem:[#allocation7 + $0x88] sm:$0xff]
    %v385 = vld [vmem:[#allocation7 + $0x90] sm:$0xff]
    %v386 = vld [vmem:[#allocation7 + $0x98] sm:$0xff]
    %v387 = vld [vmem:[#allocation7 + $0xa0] sm:$0xff]
    %v388 = vld [vmem:[#allocation7 + $0xa8] sm:$0xff]
    %v389 = vld [vmem:[#allocation7 + $0xb0] sm:$0xff]
    %v390 = vld [vmem:[#allocation7 + $0xb8] sm:$0xff]
    %v391 = vld [vmem:[#allocation7 + $0xc0] sm:$0xff]
    %v392 = vld [vmem:[#allocation7 + $0xc8] sm:$0xff]
    %v393 = vld [vmem:[#allocation7 + $0xd0] sm:$0xff]
    %v394 = vld [vmem:[#allocation7 + $0xd8] sm:$0xff]
    %v395 = vld [vmem:[#allocation7 + $0xe0] sm:$0xff]
    %v396 = vld [vmem:[#allocation7 + $0xe8] sm:$0xff]
    %v397 = vld [vmem:[#allocation7 + $0xf0] sm:$0xff]
    %v398 = vld [vmem:[#allocation7 + $0xf8] sm:$0xff]
    %v399 = vld [vmem:[#allocation7 + $0x100] sm:$0xff]
    %v400 = vld [vmem:[#allocation7 + $0x108] sm:$0xff]
    %v401 = vld [vmem:[#allocation7 + $0x110] sm:$0xff]
    %v402 = vld [vmem:[#allocation7 + $0x118] sm:$0xff]
    %v403 = vld [vmem:[#allocation7 + $0x120] sm:$0xff]
    %v404 = vld [vmem:[#allocation7 + $0x128] sm:$0xff]
    %v405 = vld [vmem:[#allocation7 + $0x130] sm:$0xff]
    %v406 = vld [vmem:[#allocation7 + $0x138] sm:$0xff]
    %v407 = vld [vmem:[#allocation7 + $0x140] sm:$0xff]
    %v408 = vld [vmem:[#allocation7 + $0x148] sm:$0xff]
    %v409 = vld [vmem:[#allocation7 + $0x150] sm:$0xff]
    %v410 = vld [vmem:[#allocation7 + $0x158] sm:$0xff]
    %v411 = vld [vmem:[#allocation7 + $0x160] sm:$0xff]
    %v412 = vld [vmem:[#allocation7 + $0x168] sm:$0xff]
    %v413 = vld [vmem:[#allocation7 + $0x170] sm:$0xff]
    %v414 = vld [vmem:[#allocation7 + $0x178] sm:$0xff]
    %v415 = vld [vmem:[#allocation7 + $0x180] sm:$0xff]
    %v416 = vld [vmem:[#allocation7 + $0x188] sm:$0xff]
    %v417 = vld [vmem:[#allocation7 + $0x190] sm:$0xff]
    %v418 = vld [vmem:[#allocation7 + $0x198] sm:$0xff]
    %v419 = vld [vmem:[#allocation7 + $0x1a0] sm:$0xff]
    %v420 = vld [vmem:[#allocation7 + $0x1a8] sm:$0xff]
    %v421 = vld [vmem:[#allocation7 + $0x1b0] sm:$0xff]
    %v422 = vld [vmem:[#allocation7 + $0x1b8] sm:$0xff]
    %v423 = vld [vmem:[#allocation7 + $0x1c0] sm:$0xff]
    %v424 = vld [vmem:[#allocation7 + $0x1c8] sm:$0xff]
    %v425 = vld [vmem:[#allocation7 + $0x1d0] sm:$0xff]
    %v426 = vld [vmem:[#allocation7 + $0x1d8] sm:$0xff]
    %v427 = vld [vmem:[#allocation7 + $0x1e0] sm:$0xff]
    %v428 = vld [vmem:[#allocation7 + $0x1e8] sm:$0xff]
    %v429 = vld [vmem:[#allocation7 + $0x1f0] sm:$0xff]
    %v430 = vld [vmem:[#allocation7 + $0x1f8] sm:$0xff]
    %v431 = vld [vmem:[#allocation7 + $0x200] sm:$0xff]
    %v432 = vld [vmem:[#allocation7 + $0x208] sm:$0xff]
    %v433 = vld [vmem:[#allocation7 + $0x210] sm:$0xff]
    %v434 = vld [vmem:[#allocation7 + $0x218] sm:$0xff]
    %v435 = vld [vmem:[#allocation7 + $0x220] sm:$0xff]
    %v436 = vld [vmem:[#allocation7 + $0x228] sm:$0xff]
    %v437 = vld [vmem:[#allocation7 + $0x230] sm:$0xff]
    %v438 = vld [vmem:[#allocation7 + $0x238] sm:$0xff]
    %v439 = vld [vmem:[#allocation7 + $0x240] sm:$0xff]
    %v440 = vld [vmem:[#allocation7 + $0x248] sm:$0xff]
    %v441 = vld [vmem:[#allocation7 + $0x250] sm:$0xff]
    %v442 = vld [vmem:[#allocation7 + $0x258] sm:$0xff]
    %v443 = vld [vmem:[#allocation7 + $0x260] sm:$0xff]
    %v444 = vld [vmem:[#allocation7 + $0x268] sm:$0xff]
    %v445 = vld [vmem:[#allocation7 + $0x270] sm:$0xff]
    %v446 = vld [vmem:[#allocation7 + $0x278] sm:$0xff]
    %v447 = vld [vmem:[#allocation7 + $0x280] sm:$0xff]
    %v448 = vld [vmem:[#allocation7 + $0x288] sm:$0xff]
    %v449 = vld [vmem:[#allocation7 + $0x290] sm:$0xff]
    %v450 = vld [vmem:[#allocation7 + $0x298] sm:$0xff]
    %v451 = vld [vmem:[#allocation7 + $0x2a0] sm:$0xff]
    %v452 = vld [vmem:[#allocation7 + $0x2a8] sm:$0xff]
    %v453 = vld [vmem:[#allocation7 + $0x2b0] sm:$0xff]
    %v454 = vld [vmem:[#allocation7 + $0x2b8] sm:$0xff]
    %v455 = vld [vmem:[#allocation7 + $0x2c0] sm:$0xff]
    %v456 = vld [vmem:[#allocation7 + $0x2c8] sm:$0xff]
    %v457 = vld [vmem:[#allocation7 + $0x2d0] sm:$0xff]
    %v458 = vld [vmem:[#allocation7 + $0x2d8] sm:$0xff]
    %v459 = vld [vmem:[#allocation7 + $0x2e0] sm:$0xff]
    %v460 = vld [vmem:[#allocation7 + $0x2e8] sm:$0xff]
    %v461 = vld [vmem:[#allocation7 + $0x2f0] sm:$0xff]
    %v462 = vld [vmem:[#allocation7 + $0x2f8] sm:$0xff]
    %v463 = vld [vmem:[#allocation7 + $0x300] sm:$0xff]
    %v464 = vld [vmem:[#allocation7 + $0x308] sm:$0xff]
    %v465 = vld [vmem:[#allocation7 + $0x310] sm:$0xff]
    %v466 = vld [vmem:[#allocation7 + $0x318] sm:$0xff]
    %v467 = vld [vmem:[#allocation7 + $0x320] sm:$0xff]
    %v468 = vld [vmem:[#allocation7 + $0x328] sm:$0xff]
    %v469 = vld [vmem:[#allocation7 + $0x330] sm:$0xff]
    %v470 = vld [vmem:[#allocation7 + $0x338] sm:$0xff]
    %v471 = vld [vmem:[#allocation7 + $0x340] sm:$0xff]
    %v472 = vld [vmem:[#allocation7 + $0x348] sm:$0xff]
    %v473 = vld [vmem:[#allocation7 + $0x350] sm:$0xff]
    %v474 = vld [vmem:[#allocation7 + $0x358] sm:$0xff]
    %v475 = vld [vmem:[#allocation7 + $0x360] sm:$0xff]
    %v476 = vld [vmem:[#allocation7 + $0x368] sm:$0xff]
    %v477 = vld [vmem:[#allocation7 + $0x370] sm:$0xff]
    %v478 = vld [vmem:[#allocation7 + $0x378] sm:$0xff]
    %v479 = vld [vmem:[#allocation7 + $0x380] sm:$0xff]
    %v480 = vld [vmem:[#allocation7 + $0x388] sm:$0xff]
    %v481 = vld [vmem:[#allocation7 + $0x390] sm:$0xff]
    %v482 = vld [vmem:[#allocation7 + $0x398] sm:$0xff]
    %v483 = vld [vmem:[#allocation7 + $0x3a0] sm:$0xff]
    %v484 = vld [vmem:[#allocation7 + $0x3a8] sm:$0xff]
    %v485 = vld [vmem:[#allocation7 + $0x3b0] sm:$0xff]
    %v486 = vld [vmem:[#allocation7 + $0x3b8] sm:$0xff]
    %v487 = vld [vmem:[#allocation7 + $0x3c0] sm:$0xff]
    %v488 = vld [vmem:[#allocation7 + $0x3c8] sm:$0xff]
    %v489 = vld [vmem:[#allocation7 + $0x3d0] sm:$0xff]
    %v490 = vld [vmem:[#allocation7 + $0x3d8] sm:$0xff]
    %v491 = vld [vmem:[#allocation7 + $0x3e0] sm:$0xff]
    %v492 = vld [vmem:[#allocation7 + $0x3e8] sm:$0xff]
    %v493 = vld [vmem:[#allocation7 + $0x3f0] sm:$0xff]
    %v494 = vld [vmem:[#allocation7 + $0x3f8] sm:$0xff]
    %v495 = vld [vmem:[#allocation7 + $0x400] sm:$0xff]
    %v496 = vld [vmem:[#allocation7 + $0x408] sm:$0xff]
    %v497 = vld [vmem:[#allocation7 + $0x410] sm:$0xff]
    %v498 = vld [vmem:[#allocation7 + $0x418] sm:$0xff]
    %v499 = vld [vmem:[#allocation7 + $0x420] sm:$0xff]
    %v500 = vld [vmem:[#allocation7 + $0x428] sm:$0xff]
    %v501 = vld [vmem:[#allocation7 + $0x430] sm:$0xff]
    %v502 = vld [vmem:[#allocation7 + $0x438] sm:$0xff]
    %v503 = vld [vmem:[#allocation7 + $0x440] sm:$0xff]
    %v504 = vld [vmem:[#allocation7 + $0x448] sm:$0xff]
    %v505 = vld [vmem:[#allocation7 + $0x450] sm:$0xff]
    %v506 = vld [vmem:[#allocation7 + $0x458] sm:$0xff]
    %v507 = vld [vmem:[#allocation7 + $0x460] sm:$0xff]
    %v508 = vld [vmem:[#allocation7 + $0x468] sm:$0xff]
    %v509 = vld [vmem:[#allocation7 + $0x470] sm:$0xff]
    %v510 = vld [vmem:[#allocation7 + $0x478] sm:$0xff]
    %v511 = vld [vmem:[#allocation7 + $0x480] sm:$0xff]
    %v512 = vld [vmem:[#allocation7 + $0x488] sm:$0xff]
    %v513 = vld [vmem:[#allocation7 + $0x490] sm:$0xff]
    %v514 = vld [vmem:[#allocation7 + $0x498] sm:$0xff]
    %v515 = vld [vmem:[#allocation7 + $0x4a0] sm:$0xff]
    %v516 = vld [vmem:[#allocation7 + $0x4a8] sm:$0xff]
    %v517 = vld [vmem:[#allocation7 + $0x4b0] sm:$0xff]
    %v518 = vld [vmem:[#allocation7 + $0x4b8] sm:$0xff]
    %v519 = vld [vmem:[#allocation7 + $0x4c0] sm:$0xff]
    %v520 = vld [vmem:[#allocation7 + $0x4c8] sm:$0xff]
    %v521 = vld [vmem:[#allocation7 + $0x4d0] sm:$0xff]
    %v522 = vld [vmem:[#allocation7 + $0x4d8] sm:$0xff]
    %v523 = vld [vmem:[#allocation7 + $0x4e0] sm:$0xff]
    %v524 = vld [vmem:[#allocation7 + $0x4e8] sm:$0xff]
    %v525 = vld [vmem:[#allocation7 + $0x4f0] sm:$0xff]
    %v526 = vld [vmem:[#allocation7 + $0x4f8] sm:$0xff]
    %v527 = vld [vmem:[#allocation7 + $0x500] sm:$0xff]
    %v528 = vld [vmem:[#allocation7 + $0x508] sm:$0xff]
    %v529 = vld [vmem:[#allocation7 + $0x510] sm:$0xff]
    %v530 = vld [vmem:[#allocation7 + $0x518] sm:$0xff]
    %v531 = vld [vmem:[#allocation7 + $0x520] sm:$0xff]
    %v532 = vld [vmem:[#allocation7 + $0x528] sm:$0xff]
    %v533 = vld [vmem:[#allocation7 + $0x530] sm:$0xff]
    %v534 = vld [vmem:[#allocation7 + $0x538] sm:$0xff]
    %v535 = vld [vmem:[#allocation7 + $0x540] sm:$0xff]
    %v536 = vld [vmem:[#allocation7 + $0x548] sm:$0xff]
    %v537 = vld [vmem:[#allocation7 + $0x550] sm:$0xff]
    %v538 = vld [vmem:[#allocation7 + $0x558] sm:$0xff]
    %v539 = vld [vmem:[#allocation7 + $0x560] sm:$0xff]
    %v540 = vld [vmem:[#allocation7 + $0x568] sm:$0xff]
    %v541 = vld [vmem:[#allocation7 + $0x570] sm:$0xff]
    %v542 = vld [vmem:[#allocation7 + $0x578] sm:$0xff]
    %v543 = vld [vmem:[#allocation7 + $0x580] sm:$0xff]
    %v544 = vld [vmem:[#allocation7 + $0x588] sm:$0xff]
    %v545 = vld [vmem:[#allocation7 + $0x590] sm:$0xff]
    %v546 = vld [vmem:[#allocation7 + $0x598] sm:$0xff]
    %v547 = vld [vmem:[#allocation7 + $0x5a0] sm:$0xff]
    %v548 = vld [vmem:[#allocation7 + $0x5a8] sm:$0xff]
    %v549 = vld [vmem:[#allocation7 + $0x5b0] sm:$0xff]
    %v550 = vld [vmem:[#allocation7 + $0x5b8] sm:$0xff]
    %v551 = vld [vmem:[#allocation7 + $0x5c0] sm:$0xff]
    %v552 = vld [vmem:[#allocation7 + $0x5c8] sm:$0xff]
    %v553 = vld [vmem:[#allocation7 + $0x5d0] sm:$0xff]
    %v554 = vld [vmem:[#allocation7 + $0x5d8] sm:$0xff]
    %v555 = vld [vmem:[#allocation7 + $0x5e0] sm:$0xff]
    %v556 = vld [vmem:[#allocation7 + $0x5e8] sm:$0xff]
    %v557 = vld [vmem:[#allocation7 + $0x5f0] sm:$0xff]
    %v558 = vld [vmem:[#allocation7 + $0x5f8] sm:$0xff]
    %v559 = vld [vmem:[#allocation7 + $0x600] sm:$0xff]
    %v560 = vld [vmem:[#allocation7 + $0x608] sm:$0xff]
    %v561 = vld [vmem:[#allocation7 + $0x610] sm:$0xff]
    %v562 = vld [vmem:[#allocation7 + $0x618] sm:$0xff]
    %v563 = vld [vmem:[#allocation7 + $0x620] sm:$0xff]
    %v564 = vld [vmem:[#allocation7 + $0x628] sm:$0xff]
    %v565 = vld [vmem:[#allocation7 + $0x630] sm:$0xff]
    %v566 = vld [vmem:[#allocation7 + $0x638] sm:$0xff]
    %v567 = vld [vmem:[#allocation7 + $0x640] sm:$0xff]
    %v568 = vld [vmem:[#allocation7 + $0x648] sm:$0xff]
    %v569 = vld [vmem:[#allocation7 + $0x650] sm:$0xff]
    %v570 = vld [vmem:[#allocation7 + $0x658] sm:$0xff]
    %v571 = vld [vmem:[#allocation7 + $0x660] sm:$0xff]
    %v572 = vld [vmem:[#allocation7 + $0x668] sm:$0xff]
    %v573 = vld [vmem:[#allocation7 + $0x670] sm:$0xff]
    %v574 = vld [vmem:[#allocation7 + $0x678] sm:$0xff]
    %v575 = vld [vmem:[#allocation7 + $0x680] sm:$0xff]
    %v576 = vld [vmem:[#allocation7 + $0x688] sm:$0xff]
    %v577 = vld [vmem:[#allocation7 + $0x690] sm:$0xff]
    %v578 = vld [vmem:[#allocation7 + $0x698] sm:$0xff]
    %v579 = vld [vmem:[#allocation7 + $0x6a0] sm:$0xff]
    %v580 = vld [vmem:[#allocation7 + $0x6a8] sm:$0xff]
    %v581 = vld [vmem:[#allocation7 + $0x6b0] sm:$0xff]
    %v582 = vld [vmem:[#allocation7 + $0x6b8] sm:$0xff]
    %v583 = vld [vmem:[#allocation7 + $0x6c0] sm:$0xff]
    %v584 = vld [vmem:[#allocation7 + $0x6c8] sm:$0xff]
    %v585 = vld [vmem:[#allocation7 + $0x6d0] sm:$0xff]
    %v586 = vld [vmem:[#allocation7 + $0x6d8] sm:$0xff]
    %v587 = vld [vmem:[#allocation7 + $0x6e0] sm:$0xff]
    %v588 = vld [vmem:[#allocation7 + $0x6e8] sm:$0xff]
    %v589 = vld [vmem:[#allocation7 + $0x6f0] sm:$0xff]
    %v590 = vld [vmem:[#allocation7 + $0x6f8] sm:$0xff]
    %v591 = vld [vmem:[#allocation7 + $0x700] sm:$0xff]
    %v592 = vld [vmem:[#allocation7 + $0x708] sm:$0xff]
    %v593 = vld [vmem:[#allocation7 + $0x710] sm:$0xff]
    %v594 = vld [vmem:[#allocation7 + $0x718] sm:$0xff]
    %v595 = vld [vmem:[#allocation7 + $0x720] sm:$0xff]
    %v596 = vld [vmem:[#allocation7 + $0x728] sm:$0xff]
    %v597 = vld [vmem:[#allocation7 + $0x730] sm:$0xff]
    %v598 = vld [vmem:[#allocation7 + $0x738] sm:$0xff]
    %v599 = vld [vmem:[#allocation7 + $0x740] sm:$0xff]
    %v600 = vld [vmem:[#allocation7 + $0x748] sm:$0xff]
    %v601 = vld [vmem:[#allocation7 + $0x750] sm:$0xff]
    %v602 = vld [vmem:[#allocation7 + $0x758] sm:$0xff]
    %v603 = vld [vmem:[#allocation7 + $0x760] sm:$0xff]
    %v604 = vld [vmem:[#allocation7 + $0x768] sm:$0xff]
    %v605 = vld [vmem:[#allocation7 + $0x770] sm:$0xff]
    %v606 = vld [vmem:[#allocation7 + $0x778] sm:$0xff]
    %v607 = vld [vmem:[#allocation7 + $0x780] sm:$0xff]
    %v608 = vld [vmem:[#allocation7 + $0x788] sm:$0xff]
    %v609 = vld [vmem:[#allocation7 + $0x790] sm:$0xff]
    %v610 = vld [vmem:[#allocation7 + $0x798] sm:$0xff]
    %v611 = vld [vmem:[#allocation7 + $0x7a0] sm:$0xff]
    %v612 = vld [vmem:[#allocation7 + $0x7a8] sm:$0xff]
    %v613 = vld [vmem:[#allocation7 + $0x7b0] sm:$0xff]
    %v614 = vld [vmem:[#allocation7 + $0x7b8] sm:$0xff]
    %v615 = vld [vmem:[#allocation7 + $0x7c0] sm:$0xff]
    %v616 = vld [vmem:[#allocation7 + $0x7c8] sm:$0xff]
    %v617 = vld [vmem:[#allocation7 + $0x7d0] sm:$0xff]
    %v618 = vld [vmem:[#allocation7 + $0x7d8] sm:$0xff]
    %v619 = vld [vmem:[#allocation7 + $0x7e0] sm:$0xff]
    %v620 = vld [vmem:[#allocation7 + $0x7e8] sm:$0xff]
    %v621 = vld [vmem:[#allocation7 + $0x7f0] sm:$0xff]
    %v622 = vld [vmem:[#allocation7 + $0x7f8] sm:$0xff]
    %v623 = vld [vmem:[#allocation7 + $0x800] sm:$0xff]
    %v624 = vld [vmem:[#allocation7 + $0x808] sm:$0xff]
    %v625 = vld [vmem:[#allocation7 + $0x810] sm:$0xff]
    %v626 = vld [vmem:[#allocation7 + $0x818] sm:$0xff]
    %v627 = vld [vmem:[#allocation7 + $0x820] sm:$0xff]
    %v628 = vld [vmem:[#allocation7 + $0x828] sm:$0xff]
    %v629 = vld [vmem:[#allocation7 + $0x830] sm:$0xff]
    %v630 = vld [vmem:[#allocation7 + $0x838] sm:$0xff]
    %v631 = vld [vmem:[#allocation7 + $0x840] sm:$0xff]
    %v632 = vld [vmem:[#allocation7 + $0x848] sm:$0xff]
    %v633 = vld [vmem:[#allocation7 + $0x850] sm:$0xff]
    %v634 = vld [vmem:[#allocation7 + $0x858] sm:$0xff]
    %v635 = vld [vmem:[#allocation7 + $0x860] sm:$0xff]
    %v636 = vld [vmem:[#allocation7 + $0x868] sm:$0xff]
    %v637 = vld [vmem:[#allocation7 + $0x870] sm:$0xff]
    %v638 = vld [vmem:[#allocation7 + $0x878] sm:$0xff]
    %v639 = vld [vmem:[#allocation7 + $0x880] sm:$0xff]
    %v640 = vld [vmem:[#allocation7 + $0x888] sm:$0xff]
    %v641 = vld [vmem:[#allocation7 + $0x890] sm:$0xff]
    %v642 = vld [vmem:[#allocation7 + $0x898] sm:$0xff]
    %v643 = vld [vmem:[#allocation7 + $0x8a0] sm:$0xff]
    %v644 = vld [vmem:[#allocation7 + $0x8a8] sm:$0xff]
    %v645 = vld [vmem:[#allocation7 + $0x8b0] sm:$0xff]
    %v646 = vld [vmem:[#allocation7 + $0x8b8] sm:$0xff]
    %v647 = vld [vmem:[#allocation7 + $0x8c0] sm:$0xff]
    %v648 = vld [vmem:[#allocation7 + $0x8c8] sm:$0xff]
    %v649 = vld [vmem:[#allocation7 + $0x8d0] sm:$0xff]
    %v650 = vld [vmem:[#allocation7 + $0x8d8] sm:$0xff]
    %v651 = vld [vmem:[#allocation7 + $0x8e0] sm:$0xff]
    %v652 = vld [vmem:[#allocation7 + $0x8e8] sm:$0xff]
    %v653 = vld [vmem:[#allocation7 + $0x8f0] sm:$0xff]
    %v654 = vld [vmem:[#allocation7 + $0x8f8] sm:$0xff]
    %v655 = vld [vmem:[#allocation7 + $0x900] sm:$0xff]
    %v656 = vld [vmem:[#allocation7 + $0x908] sm:$0xff]
    %v657 = vld [vmem:[#allocation7 + $0x910] sm:$0xff]
    %v658 = vld [vmem:[#allocation7 + $0x918] sm:$0xff]
    %v659 = vld [vmem:[#allocation7 + $0x920] sm:$0xff]
    %v660 = vld [vmem:[#allocation7 + $0x928] sm:$0xff]
    %v661 = vld [vmem:[#allocation7 + $0x930] sm:$0xff]
    %v662 = vld [vmem:[#allocation7 + $0x938] sm:$0xff]
    %v663 = vld [vmem:[#allocation7 + $0x940] sm:$0xff]
    %v664 = vld [vmem:[#allocation7 + $0x948] sm:$0xff]
    %v665 = vld [vmem:[#allocation7 + $0x950] sm:$0xff]
    %v666 = vld [vmem:[#allocation7 + $0x958] sm:$0xff]
    %v667 = vld [vmem:[#allocation7 + $0x960] sm:$0xff]
    %v668 = vld [vmem:[#allocation7 + $0x968] sm:$0xff]
    %v669 = vld [vmem:[#allocation7 + $0x970] sm:$0xff]
    %v670 = vld [vmem:[#allocation7 + $0x978] sm:$0xff]
    %v671 = vld [vmem:[#allocation7 + $0x980] sm:$0xff]
    %v672 = vld [vmem:[#allocation7 + $0x988] sm:$0xff]
    %v673 = vld [vmem:[#allocation7 + $0x990] sm:$0xff]
    %v674 = vld [vmem:[#allocation7 + $0x998] sm:$0xff]
    %v675 = vld [vmem:[#allocation7 + $0x9a0] sm:$0xff]
    %v676 = vld [vmem:[#allocation7 + $0x9a8] sm:$0xff]
    %v677 = vld [vmem:[#allocation7 + $0x9b0] sm:$0xff]
    %v678 = vld [vmem:[#allocation7 + $0x9b8] sm:$0xff]
    %v679 = vld [vmem:[#allocation7 + $0x9c0] sm:$0xff]
    %v680 = vld [vmem:[#allocation7 + $0x9c8] sm:$0xff]
    %v681 = vld [vmem:[#allocation7 + $0x9d0] sm:$0xff]
    %v682 = vld [vmem:[#allocation7 + $0x9d8] sm:$0xff]
    %v683 = vld [vmem:[#allocation7 + $0x9e0] sm:$0xff]
    %v684 = vld [vmem:[#allocation7 + $0x9e8] sm:$0xff]
    %v685 = vld [vmem:[#allocation7 + $0x9f0] sm:$0xff]
    %v686 = vld [vmem:[#allocation7 + $0x9f8] sm:$0xff]
    %v687 = vld [vmem:[#allocation7 + $0xa00] sm:$0xff]
    %v688 = vld [vmem:[#allocation7 + $0xa08] sm:$0xff]
    %v689 = vld [vmem:[#allocation7 + $0xa10] sm:$0xff]
    %v690 = vld [vmem:[#allocation7 + $0xa18] sm:$0xff]
    %v691 = vld [vmem:[#allocation7 + $0xa20] sm:$0xff]
    %v692 = vld [vmem:[#allocation7 + $0xa28] sm:$0xff]
    %v693 = vld [vmem:[#allocation7 + $0xa30] sm:$0xff]
    %v694 = vld [vmem:[#allocation7 + $0xa38] sm:$0xff]
    %v695 = vld [vmem:[#allocation7 + $0xa40] sm:$0xff]
    %v696 = vld [vmem:[#allocation7 + $0xa48] sm:$0xff]
    %v697 = vld [vmem:[#allocation7 + $0xa50] sm:$0xff]
    %v698 = vld [vmem:[#allocation7 + $0xa58] sm:$0xff]
    %v699 = vld [vmem:[#allocation7 + $0xa60] sm:$0xff]
    %v700 = vld [vmem:[#allocation7 + $0xa68] sm:$0xff]
    %v701 = vld [vmem:[#allocation7 + $0xa70] sm:$0xff]
    %v702 = vld [vmem:[#allocation7 + $0xa78] sm:$0xff]
    %v703 = vld [vmem:[#allocation7 + $0xa80] sm:$0xff]
    %v704 = vld [vmem:[#allocation7 + $0xa88] sm:$0xff]
    %v705 = vld [vmem:[#allocation7 + $0xa90] sm:$0xff]
    %v706 = vld [vmem:[#allocation7 + $0xa98] sm:$0xff]
    %v707 = vld [vmem:[#allocation7 + $0xaa0] sm:$0xff]
    %v708 = vld [vmem:[#allocation7 + $0xaa8] sm:$0xff]
    %v709 = vld [vmem:[#allocation7 + $0xab0] sm:$0xff]
    %v710 = vld [vmem:[#allocation7 + $0xab8] sm:$0xff]
    %v711 = vld [vmem:[#allocation7 + $0xac0] sm:$0xff]
    %v712 = vld [vmem:[#allocation7 + $0xac8] sm:$0xff]
    %v713 = vld [vmem:[#allocation7 + $0xad0] sm:$0xff]
    %v714 = vld [vmem:[#allocation7 + $0xad8] sm:$0xff]
    %v715 = vld [vmem:[#allocation7 + $0xae0] sm:$0xff]
    %v716 = vld [vmem:[#allocation7 + $0xae8] sm:$0xff]
    %v717 = vld [vmem:[#allocation7 + $0xaf0] sm:$0xff]
    %v718 = vld [vmem:[#allocation7 + $0xaf8] sm:$0xff]
    %v719 = vld [vmem:[#allocation7 + $0xb00] sm:$0xff]
    %v720 = vld [vmem:[#allocation7 + $0xb08] sm:$0xff]
    %v721 = vld [vmem:[#allocation7 + $0xb10] sm:$0xff]
    %v722 = vld [vmem:[#allocation7 + $0xb18] sm:$0xff]
    %v723 = vld [vmem:[#allocation7 + $0xb20] sm:$0xff]
    %v724 = vld [vmem:[#allocation7 + $0xb28] sm:$0xff]
    %v725 = vld [vmem:[#allocation7 + $0xb30] sm:$0xff]
    %v726 = vld [vmem:[#allocation7 + $0xb38] sm:$0xff]
    %v727 = vld [vmem:[#allocation7 + $0xb40] sm:$0xff]
    %v728 = vld [vmem:[#allocation7 + $0xb48] sm:$0xff]
    %v729 = vld [vmem:[#allocation7 + $0xb50] sm:$0xff]
    %v730 = vld [vmem:[#allocation7 + $0xb58] sm:$0xff]
    %v731 = vld [vmem:[#allocation7 + $0xb60] sm:$0xff]
    %v732 = vld [vmem:[#allocation7 + $0xb68] sm:$0xff]
    %v733 = vld [vmem:[#allocation7 + $0xb70] sm:$0xff]
    %v734 = vld [vmem:[#allocation7 + $0xb78] sm:$0xff]
    %v735 = vld [vmem:[#allocation7 + $0xb80] sm:$0xff]
    %v736 = vld [vmem:[#allocation7 + $0xb88] sm:$0xff]
    %v737 = vld [vmem:[#allocation7 + $0xb90] sm:$0xff]
    %v738 = vld [vmem:[#allocation7 + $0xb98] sm:$0xff]
    %v739 = vld [vmem:[#allocation7 + $0xba0] sm:$0xff]
    %v740 = vld [vmem:[#allocation7 + $0xba8] sm:$0xff]
    %v741 = vld [vmem:[#allocation7 + $0xbb0] sm:$0xff]
    %v742 = vld [vmem:[#allocation7 + $0xbb8] sm:$0xff]
    %v743 = vld [vmem:[#allocation7 + $0xbc0] sm:$0xff]
    %v744 = vld [vmem:[#allocation7 + $0xbc8] sm:$0xff]
    %v745 = vld [vmem:[#allocation7 + $0xbd0] sm:$0xff]
    %v746 = vld [vmem:[#allocation7 + $0xbd8] sm:$0xff]
    %v747 = vld [vmem:[#allocation7 + $0xbe0] sm:$0xff]
    %v748 = vld [vmem:[#allocation7 + $0xbe8] sm:$0xff]
    %v749 = vld [vmem:[#allocation7 + $0xbf0] sm:$0xff]
    %v750 = vld [vmem:[#allocation7 + $0xbf8] sm:$0xff]
    %v751 = vld [vmem:[#allocation7 + $0xc00] sm:$0xff]
    %v752 = vld [vmem:[#allocation7 + $0xc08] sm:$0xff]
    %v753 = vld [vmem:[#allocation7 + $0xc10] sm:$0xff]
    %v754 = vld [vmem:[#allocation7 + $0xc18] sm:$0xff]
    %v755 = vld [vmem:[#allocation7 + $0xc20] sm:$0xff]
    %v756 = vld [vmem:[#allocation7 + $0xc28] sm:$0xff]
    %v757 = vld [vmem:[#allocation7 + $0xc30] sm:$0xff]
    %v758 = vld [vmem:[#allocation7 + $0xc38] sm:$0xff]
    %v759 = vld [vmem:[#allocation7 + $0xc40] sm:$0xff]
    %v760 = vld [vmem:[#allocation7 + $0xc48] sm:$0xff]
    %v761 = vld [vmem:[#allocation7 + $0xc50] sm:$0xff]
    %v762 = vld [vmem:[#allocation7 + $0xc58] sm:$0xff]
    %v763 = vld [vmem:[#allocation7 + $0xc60] sm:$0xff]
    %v764 = vld [vmem:[#allocation7 + $0xc68] sm:$0xff]
    %v765 = vld [vmem:[#allocation7 + $0xc70] sm:$0xff]
    %v766 = vld [vmem:[#allocation7 + $0xc78] sm:$0xff]
    %v767 = vld [vmem:[#allocation7 + $0xc80] sm:$0xff]
    %v768 = vld [vmem:[#allocation7 + $0xc88] sm:$0xff]
    %v769 = vld [vmem:[#allocation7 + $0xc90] sm:$0xff]
    %v770 = vld [vmem:[#allocation7 + $0xc98] sm:$0xff]
    %v771 = vld [vmem:[#allocation7 + $0xca0] sm:$0xff]
    %v772 = vld [vmem:[#allocation7 + $0xca8] sm:$0xff]
    %v773 = vld [vmem:[#allocation7 + $0xcb0] sm:$0xff]
    %v774 = vld [vmem:[#allocation7 + $0xcb8] sm:$0xff]
    %v775 = vld [vmem:[#allocation7 + $0xcc0] sm:$0xff]
    %v776 = vld [vmem:[#allocation7 + $0xcc8] sm:$0xff]
    %v777 = vld [vmem:[#allocation7 + $0xcd0] sm:$0xff]
    %v778 = vld [vmem:[#allocation7 + $0xcd8] sm:$0xff]
    %v779 = vld [vmem:[#allocation7 + $0xce0] sm:$0xff]
    %v780 = vld [vmem:[#allocation7 + $0xce8] sm:$0xff]
    %v781 = vld [vmem:[#allocation7 + $0xcf0] sm:$0xff]
    %v782 = vld [vmem:[#allocation7 + $0xcf8] sm:$0xff]
    %v783 = vld [vmem:[#allocation7 + $0xd00] sm:$0xff]
    %v784 = vld [vmem:[#allocation7 + $0xd08] sm:$0xff]
    %v785 = vld [vmem:[#allocation7 + $0xd10] sm:$0xff]
    %v786 = vld [vmem:[#allocation7 + $0xd18] sm:$0xff]
    %v787 = vld [vmem:[#allocation7 + $0xd20] sm:$0xff]
    %v788 = vld [vmem:[#allocation7 + $0xd28] sm:$0xff]
    %v789 = vld [vmem:[#allocation7 + $0xd30] sm:$0xff]
    %v790 = vld [vmem:[#allocation7 + $0xd38] sm:$0xff]
    %v791 = vld [vmem:[#allocation7 + $0xd40] sm:$0xff]
    %v792 = vld [vmem:[#allocation7 + $0xd48] sm:$0xff]
    %v793 = vld [vmem:[#allocation7 + $0xd50] sm:$0xff]
    %v794 = vld [vmem:[#allocation7 + $0xd58] sm:$0xff]
    %v795 = vld [vmem:[#allocation7 + $0xd60] sm:$0xff]
    %v796 = vld [vmem:[#allocation7 + $0xd68] sm:$0xff]
    %v797 = vld [vmem:[#allocation7 + $0xd70] sm:$0xff]
    %v798 = vld [vmem:[#allocation7 + $0xd78] sm:$0xff]
    %v799 = vld [vmem:[#allocation7 + $0xd80] sm:$0xff]
    %v800 = vld [vmem:[#allocation7 + $0xd88] sm:$0xff]
    %v801 = vld [vmem:[#allocation7 + $0xd90] sm:$0xff]
    %v802 = vld [vmem:[#allocation7 + $0xd98] sm:$0xff]
    %v803 = vld [vmem:[#allocation7 + $0xda0] sm:$0xff]
    %v804 = vld [vmem:[#allocation7 + $0xda8] sm:$0xff]
    %v805 = vld [vmem:[#allocation7 + $0xdb0] sm:$0xff]
    %v806 = vld [vmem:[#allocation7 + $0xdb8] sm:$0xff]
    %v807 = vld [vmem:[#allocation7 + $0xdc0] sm:$0xff]
    %v808 = vld [vmem:[#allocation7 + $0xdc8] sm:$0xff]
    %v809 = vld [vmem:[#allocation7 + $0xdd0] sm:$0xff]
    %v810 = vld [vmem:[#allocation7 + $0xdd8] sm:$0xff]
    %v811 = vld [vmem:[#allocation7 + $0xde0] sm:$0xff]
    %v812 = vld [vmem:[#allocation7 + $0xde8] sm:$0xff]
    %v813 = vld [vmem:[#allocation7 + $0xdf0] sm:$0xff]
    %v814 = vld [vmem:[#allocation7 + $0xdf8] sm:$0xff]
    %v815 = vld [vmem:[#allocation7 + $0xe00] sm:$0xff]
    %v816 = vld [vmem:[#allocation7 + $0xe08] sm:$0xff]
    %v817 = vld [vmem:[#allocation7 + $0xe10] sm:$0xff]
    %v818 = vld [vmem:[#allocation7 + $0xe18] sm:$0xff]
    %v819 = vld [vmem:[#allocation7 + $0xe20] sm:$0xff]
    %v820 = vld [vmem:[#allocation7 + $0xe28] sm:$0xff]
    %v821 = vld [vmem:[#allocation7 + $0xe30] sm:$0xff]
    %v822 = vld [vmem:[#allocation7 + $0xe38] sm:$0xff]
    %v823 = vld [vmem:[#allocation7 + $0xe40] sm:$0xff]
    %v824 = vld [vmem:[#allocation7 + $0xe48] sm:$0xff]
    %v825 = vld [vmem:[#allocation7 + $0xe50] sm:$0xff]
    %v826 = vld [vmem:[#allocation7 + $0xe58] sm:$0xff]
    %v827 = vld [vmem:[#allocation7 + $0xe60] sm:$0xff]
    %v828 = vld [vmem:[#allocation7 + $0xe68] sm:$0xff]
    %v829 = vld [vmem:[#allocation7 + $0xe70] sm:$0xff]
    %v830 = vld [vmem:[#allocation7 + $0xe78] sm:$0xff]
    %v831 = vld [vmem:[#allocation7 + $0xe80] sm:$0xff]
    %v832 = vld [vmem:[#allocation7 + $0xe88] sm:$0xff]
    %v833 = vld [vmem:[#allocation7 + $0xe90] sm:$0xff]
    %v834 = vld [vmem:[#allocation7 + $0xe98] sm:$0xff]
    %v835 = vld [vmem:[#allocation7 + $0xea0] sm:$0xff]
    %v836 = vld [vmem:[#allocation7 + $0xea8] sm:$0xff]
    %v837 = vld [vmem:[#allocation7 + $0xeb0] sm:$0xff]
    %v838 = vld [vmem:[#allocation7 + $0xeb8] sm:$0xff]
    %v839 = vld [vmem:[#allocation7 + $0xec0] sm:$0xff]
    %v840 = vld [vmem:[#allocation7 + $0xec8] sm:$0xff]
    %v841 = vld [vmem:[#allocation7 + $0xed0] sm:$0xff]
    %v842 = vld [vmem:[#allocation7 + $0xed8] sm:$0xff]
    %v843 = vld [vmem:[#allocation7 + $0xee0] sm:$0xff]
    %v844 = vld [vmem:[#allocation7 + $0xee8] sm:$0xff]
    %v845 = vld [vmem:[#allocation7 + $0xef0] sm:$0xff]
    %v846 = vld [vmem:[#allocation7 + $0xef8] sm:$0xff]
    %v847 = vld [vmem:[#allocation7 + $0xf00] sm:$0xff]
    %v848 = vld [vmem:[#allocation7 + $0xf08] sm:$0xff]
    %v849 = vld [vmem:[#allocation7 + $0xf10] sm:$0xff]
    %v850 = vld [vmem:[#allocation7 + $0xf18] sm:$0xff]
    %v851 = vld [vmem:[#allocation7 + $0xf20] sm:$0xff]
    %v852 = vld [vmem:[#allocation7 + $0xf28] sm:$0xff]
    %v853 = vld [vmem:[#allocation7 + $0xf30] sm:$0xff]
    %v854 = vld [vmem:[#allocation7 + $0xf38] sm:$0xff]
    %v855 = vld [vmem:[#allocation7 + $0xf40] sm:$0xff]
    %v856 = vld [vmem:[#allocation7 + $0xf48] sm:$0xff]
    %v857 = vld [vmem:[#allocation7 + $0xf50] sm:$0xff]
    %v858 = vld [vmem:[#allocation7 + $0xf58] sm:$0xff]
    %v859 = vld [vmem:[#allocation7 + $0xf60] sm:$0xff]
    %v860 = vld [vmem:[#allocation7 + $0xf68] sm:$0xff]
    %v861 = vld [vmem:[#allocation7 + $0xf70] sm:$0xff]
    %v862 = vld [vmem:[#allocation7 + $0xf78] sm:$0xff]
    %v863 = vld [vmem:[#allocation7 + $0xf80] sm:$0xff]
    %v864 = vld [vmem:[#allocation7 + $0xf88] sm:$0xff]
    %v865 = vld [vmem:[#allocation7 + $0xf90] sm:$0xff]
    %v866 = vld [vmem:[#allocation7 + $0xf98] sm:$0xff]
    %v867 = vld [vmem:[#allocation9] sm:$0xf]
    %v869 = vperm.slane %v867, 0
    %v870 = vperm.slane %v867, 1
    %v871 = vperm.slane %v867, 2
    %v872 = vperm.slane %v867, 3
    %vm877 = vcmask 850944
    %v879 = vsel %vm877, %v366, 0
    %881 = vmatpush.msra.mxu0 %v427
    %882 = vmatpush.msra.mxu0 %v423
    %883 = vmatpush.msra.mxu0 %v419
    %884 = vmatpush.msra.mxu0 %v415
    %885 = vmatpush.msra.mxu0 %v411
    %886 = vmatpush.msra.mxu0 %v407
    %887 = vmatpush.msra.mxu0 %v403
    %888 = vmatpush.msra.mxu0 %v399
    %889 = vmatpush.msra.mxu0 %v395
    %890 = vmatpush.msra.mxu0 %v391
    %891 = vmatpush.msra.mxu0 %v387
    %892 = vmatpush.msra.mxu0 %v383
    %893 = vmatpush.msra.mxu0 %v379
    %894 = vmatpush.msra.mxu0 %v375
    %895 = vmatpush.msra.mxu0 %v371
    %896 = vmatpush.msra.mxu0 %v367
    %897 = vmatmul.f32.gmra.mxu0 %v359
    %v898 = vpop.f32.mrf.mxu0
    %v899 = vadd.f32 %v869, %v898
    %900 = vdwg.mxu0
    %901 = vmatpush.msra.mxu0 %v491
    %902 = vmatpush.msra.mxu0 %v487
    %903 = vmatpush.msra.mxu0 %v483
    %904 = vmatpush.msra.mxu0 %v479
    %905 = vmatpush.msra.mxu0 %v475
    %906 = vmatpush.msra.mxu0 %v471
    %907 = vmatpush.msra.mxu0 %v467
    %908 = vmatpush.msra.mxu0 %v463
    %909 = vmatpush.msra.mxu0 %v459
    %910 = vmatpush.msra.mxu0 %v455
    %911 = vmatpush.msra.mxu0 %v451
    %912 = vmatpush.msra.mxu0 %v447
    %913 = vmatpush.msra.mxu0 %v443
    %914 = vmatpush.msra.mxu0 %v439
    %915 = vmatpush.msra.mxu0 %v435
    %916 = vmatpush.msra.mxu0 %v431
    %917 = vmatmul.f32.gmra.mxu0 %v360
    %v918 = vpop.f32.mrf.mxu0
    %v919 = vadd.f32 %v899, %v918
    %920 = vdwg.mxu0
    %921 = vmatpush.msra.mxu0 %v555
    %922 = vmatpush.msra.mxu0 %v551
    %923 = vmatpush.msra.mxu0 %v547
    %924 = vmatpush.msra.mxu0 %v543
    %925 = vmatpush.msra.mxu0 %v539
    %926 = vmatpush.msra.mxu0 %v535
    %927 = vmatpush.msra.mxu0 %v531
    %928 = vmatpush.msra.mxu0 %v527
    %929 = vmatpush.msra.mxu0 %v523
    %930 = vmatpush.msra.mxu0 %v519
    %931 = vmatpush.msra.mxu0 %v515
    %932 = vmatpush.msra.mxu0 %v511
    %933 = vmatpush.msra.mxu0 %v507
    %934 = vmatpush.msra.mxu0 %v503
    %935 = vmatpush.msra.mxu0 %v499
    %936 = vmatpush.msra.mxu0 %v495
    %937 = vmatmul.f32.gmra.mxu0 %v361
    %v938 = vpop.f32.mrf.mxu0
    %v939 = vadd.f32 %v919, %v938
    %940 = vdwg.mxu0
    %941 = vmatpush.msra.mxu0 %v619
    %942 = vmatpush.msra.mxu0 %v615
    %943 = vmatpush.msra.mxu0 %v611
    %944 = vmatpush.msra.mxu0 %v607
    %945 = vmatpush.msra.mxu0 %v603
    %946 = vmatpush.msra.mxu0 %v599
    %947 = vmatpush.msra.mxu0 %v595
    %948 = vmatpush.msra.mxu0 %v591
    %949 = vmatpush.msra.mxu0 %v587
    %950 = vmatpush.msra.mxu0 %v583
    %951 = vmatpush.msra.mxu0 %v579
    %952 = vmatpush.msra.mxu0 %v575
    %953 = vmatpush.msra.mxu0 %v571
    %954 = vmatpush.msra.mxu0 %v567
    %955 = vmatpush.msra.mxu0 %v563
    %956 = vmatpush.msra.mxu0 %v559
    %957 = vmatmul.f32.gmra.mxu0 %v362
    %v958 = vpop.f32.mrf.mxu0
    %v959 = vadd.f32 %v939, %v958
    %960 = vdwg.mxu0
    %961 = vmatpush.msra.mxu0 %v683
    %962 = vmatpush.msra.mxu0 %v679
    %963 = vmatpush.msra.mxu0 %v675
    %964 = vmatpush.msra.mxu0 %v671
    %965 = vmatpush.msra.mxu0 %v667
    %966 = vmatpush.msra.mxu0 %v663
    %967 = vmatpush.msra.mxu0 %v659
    %968 = vmatpush.msra.mxu0 %v655
    %969 = vmatpush.msra.mxu0 %v651
    %970 = vmatpush.msra.mxu0 %v647
    %971 = vmatpush.msra.mxu0 %v643
    %972 = vmatpush.msra.mxu0 %v639
    %973 = vmatpush.msra.mxu0 %v635
    %974 = vmatpush.msra.mxu0 %v631
    %975 = vmatpush.msra.mxu0 %v627
    %976 = vmatpush.msra.mxu0 %v623
    %977 = vmatmul.f32.gmra.mxu0 %v363
    %v978 = vpop.f32.mrf.mxu0
    %v979 = vadd.f32 %v959, %v978
    %980 = vdwg.mxu0
    %981 = vmatpush.msra.mxu0 %v747
    %982 = vmatpush.msra.mxu0 %v743
    %983 = vmatpush.msra.mxu0 %v739
    %984 = vmatpush.msra.mxu0 %v735
    %985 = vmatpush.msra.mxu0 %v731
    %986 = vmatpush.msra.mxu0 %v727
    %987 = vmatpush.msra.mxu0 %v723
    %988 = vmatpush.msra.mxu0 %v719
    %989 = vmatpush.msra.mxu0 %v715
    %990 = vmatpush.msra.mxu0 %v711
    %991 = vmatpush.msra.mxu0 %v707
    %992 = vmatpush.msra.mxu0 %v703
    %993 = vmatpush.msra.mxu0 %v699
    %994 = vmatpush.msra.mxu0 %v695
    %995 = vmatpush.msra.mxu0 %v691
    %996 = vmatpush.msra.mxu0 %v687
    %997 = vmatmul.f32.gmra.mxu0 %v364
    %v998 = vpop.f32.mrf.mxu0
    %v999 = vadd.f32 %v979, %v998
    %1000 = vdwg.mxu0
    %1001 = vmatpush.msra.mxu0 %v811
    %1002 = vmatpush.msra.mxu0 %v807
    %1003 = vmatpush.msra.mxu0 %v803
    %1004 = vmatpush.msra.mxu0 %v799
    %1005 = vmatpush.msra.mxu0 %v795
    %1006 = vmatpush.msra.mxu0 %v791
    %1007 = vmatpush.msra.mxu0 %v787
    %1008 = vmatpush.msra.mxu0 %v783
    %1009 = vmatpush.msra.mxu0 %v779
    %1010 = vmatpush.msra.mxu0 %v775
    %1011 = vmatpush.msra.mxu0 %v771
    %1012 = vmatpush.msra.mxu0 %v767
    %1013 = vmatpush.msra.mxu0 %v763
    %1014 = vmatpush.msra.mxu0 %v759
    %1015 = vmatpush.msra.mxu0 %v755
    %1016 = vmatpush.msra.mxu0 %v751
    %1017 = vmatmul.f32.gmra.mxu0 %v365
    %v1018 = vpop.f32.mrf.mxu0
    %v1019 = vadd.f32 %v999, %v1018
    %1020 = vdwg.mxu0
    %1021 = vmatpush.msra.mxu0 0.0
    %1022 = vmatpush.msra.mxu0 0.0
    %1023 = vmatpush.msra.mxu0 0.0
    %1024 = vmatpush.msra.mxu0 %v863
    %1025 = vmatpush.msra.mxu0 %v859
    %1026 = vmatpush.msra.mxu0 %v855
    %1027 = vmatpush.msra.mxu0 %v851
    %1028 = vmatpush.msra.mxu0 %v847
    %1029 = vmatpush.msra.mxu0 %v843
    %1030 = vmatpush.msra.mxu0 %v839
    %1031 = vmatpush.msra.mxu0 %v835
    %1032 = vmatpush.msra.mxu0 %v831
    %1033 = vmatpush.msra.mxu0 %v827
    %1034 = vmatpush.msra.mxu0 %v823
    %1035 = vmatpush.msra.mxu0 %v819
    %1036 = vmatpush.msra.mxu0 %v815
    %1037 = vmatmul.f32.gmra.mxu0 %v879
    %v1038 = vpop.f32.mrf.mxu0
    %v1039 = vadd.f32 %v1019, %v1038
    %1040 = vdwg.mxu0
    %1041 = vmatpush.msra.mxu0 %v428
    %1042 = vmatpush.msra.mxu0 %v424
    %1043 = vmatpush.msra.mxu0 %v420
    %1044 = vmatpush.msra.mxu0 %v416
    %1045 = vmatpush.msra.mxu0 %v412
    %1046 = vmatpush.msra.mxu0 %v408
    %1047 = vmatpush.msra.mxu0 %v404
    %1048 = vmatpush.msra.mxu0 %v400
    %1049 = vmatpush.msra.mxu0 %v396
    %1050 = vmatpush.msra.mxu0 %v392
    %1051 = vmatpush.msra.mxu0 %v388
    %1052 = vmatpush.msra.mxu0 %v384
    %1053 = vmatpush.msra.mxu0 %v380
    %1054 = vmatpush.msra.mxu0 %v376
    %1055 = vmatpush.msra.mxu0 %v372
    %1056 = vmatpush.msra.mxu0 %v368
    %1057 = vmatmul.f32.gmra.mxu0 %v359
    %v1058 = vpop.f32.mrf.mxu0
    %v1059 = vadd.f32 %v870, %v1058
    %1060 = vdwg.mxu0
    %1061 = vmatpush.msra.mxu0 %v492
    %1062 = vmatpush.msra.mxu0 %v488
    %1063 = vmatpush.msra.mxu0 %v484
    %1064 = vmatpush.msra.mxu0 %v480
    %1065 = vmatpush.msra.mxu0 %v476
    %1066 = vmatpush.msra.mxu0 %v472
    %1067 = vmatpush.msra.mxu0 %v468
    %1068 = vmatpush.msra.mxu0 %v464
    %1069 = vmatpush.msra.mxu0 %v460
    %1070 = vmatpush.msra.mxu0 %v456
    %1071 = vmatpush.msra.mxu0 %v452
    %1072 = vmatpush.msra.mxu0 %v448
    %1073 = vmatpush.msra.mxu0 %v444
    %1074 = vmatpush.msra.mxu0 %v440
    %1075 = vmatpush.msra.mxu0 %v436
    %1076 = vmatpush.msra.mxu0 %v432
    %1077 = vmatmul.f32.gmra.mxu0 %v360
    %v1078 = vpop.f32.mrf.mxu0
    %v1079 = vadd.f32 %v1059, %v1078
    %1080 = vdwg.mxu0
    %1081 = vmatpush.msra.mxu0 %v556
    %1082 = vmatpush.msra.mxu0 %v552
    %1083 = vmatpush.msra.mxu0 %v548
    %1084 = vmatpush.msra.mxu0 %v544
    %1085 = vmatpush.msra.mxu0 %v540
    %1086 = vmatpush.msra.mxu0 %v536
    %1087 = vmatpush.msra.mxu0 %v532
    %1088 = vmatpush.msra.mxu0 %v528
    %1089 = vmatpush.msra.mxu0 %v524
    %1090 = vmatpush.msra.mxu0 %v520
    %1091 = vmatpush.msra.mxu0 %v516
    %1092 = vmatpush.msra.mxu0 %v512
    %1093 = vmatpush.msra.mxu0 %v508
    %1094 = vmatpush.msra.mxu0 %v504
    %1095 = vmatpush.msra.mxu0 %v500
    %1096 = vmatpush.msra.mxu0 %v496
    %1097 = vmatmul.f32.gmra.mxu0 %v361
    %v1098 = vpop.f32.mrf.mxu0
    %v1099 = vadd.f32 %v1079, %v1098
    %1100 = vdwg.mxu0
    %1101 = vmatpush.msra.mxu0 %v620
    %1102 = vmatpush.msra.mxu0 %v616
    %1103 = vmatpush.msra.mxu0 %v612
    %1104 = vmatpush.msra.mxu0 %v608
    %1105 = vmatpush.msra.mxu0 %v604
    %1106 = vmatpush.msra.mxu0 %v600
    %1107 = vmatpush.msra.mxu0 %v596
    %1108 = vmatpush.msra.mxu0 %v592
    %1109 = vmatpush.msra.mxu0 %v588
    %1110 = vmatpush.msra.mxu0 %v584
    %1111 = vmatpush.msra.mxu0 %v580
    %1112 = vmatpush.msra.mxu0 %v576
    %1113 = vmatpush.msra.mxu0 %v572
    %1114 = vmatpush.msra.mxu0 %v568
    %1115 = vmatpush.msra.mxu0 %v564
    %1116 = vmatpush.msra.mxu0 %v560
    %1117 = vmatmul.f32.gmra.mxu0 %v362
    %v1118 = vpop.f32.mrf.mxu0
    %v1119 = vadd.f32 %v1099, %v1118
    %1120 = vdwg.mxu0
    %1121 = vmatpush.msra.mxu0 %v684
    %1122 = vmatpush.msra.mxu0 %v680
    %1123 = vmatpush.msra.mxu0 %v676
    %1124 = vmatpush.msra.mxu0 %v672
    %1125 = vmatpush.msra.mxu0 %v668
    %1126 = vmatpush.msra.mxu0 %v664
    %1127 = vmatpush.msra.mxu0 %v660
    %1128 = vmatpush.msra.mxu0 %v656
    %1129 = vmatpush.msra.mxu0 %v652
    %1130 = vmatpush.msra.mxu0 %v648
    %1131 = vmatpush.msra.mxu0 %v644
    %1132 = vmatpush.msra.mxu0 %v640
    %1133 = vmatpush.msra.mxu0 %v636
    %1134 = vmatpush.msra.mxu0 %v632
    %1135 = vmatpush.msra.mxu0 %v628
    %1136 = vmatpush.msra.mxu0 %v624
    %1137 = vmatmul.f32.gmra.mxu0 %v363
    %v1138 = vpop.f32.mrf.mxu0
    %v1139 = vadd.f32 %v1119, %v1138
    %1140 = vdwg.mxu0
    %1141 = vmatpush.msra.mxu0 %v748
    %1142 = vmatpush.msra.mxu0 %v744
    %1143 = vmatpush.msra.mxu0 %v740
    %1144 = vmatpush.msra.mxu0 %v736
    %1145 = vmatpush.msra.mxu0 %v732
    %1146 = vmatpush.msra.mxu0 %v728
    %1147 = vmatpush.msra.mxu0 %v724
    %1148 = vmatpush.msra.mxu0 %v720
    %1149 = vmatpush.msra.mxu0 %v716
    %1150 = vmatpush.msra.mxu0 %v712
    %1151 = vmatpush.msra.mxu0 %v708
    %1152 = vmatpush.msra.mxu0 %v704
    %1153 = vmatpush.msra.mxu0 %v700
    %1154 = vmatpush.msra.mxu0 %v696
    %1155 = vmatpush.msra.mxu0 %v692
    %1156 = vmatpush.msra.mxu0 %v688
    %1157 = vmatmul.f32.gmra.mxu0 %v364
    %v1158 = vpop.f32.mrf.mxu0
    %v1159 = vadd.f32 %v1139, %v1158
    %1160 = vdwg.mxu0
    %1161 = vmatpush.msra.mxu0 %v812
    %1162 = vmatpush.msra.mxu0 %v808
    %1163 = vmatpush.msra.mxu0 %v804
    %1164 = vmatpush.msra.mxu0 %v800
    %1165 = vmatpush.msra.mxu0 %v796
    %1166 = vmatpush.msra.mxu0 %v792
    %1167 = vmatpush.msra.mxu0 %v788
    %1168 = vmatpush.msra.mxu0 %v784
    %1169 = vmatpush.msra.mxu0 %v780
    %1170 = vmatpush.msra.mxu0 %v776
    %1171 = vmatpush.msra.mxu0 %v772
    %1172 = vmatpush.msra.mxu0 %v768
    %1173 = vmatpush.msra.mxu0 %v764
    %1174 = vmatpush.msra.mxu0 %v760
    %1175 = vmatpush.msra.mxu0 %v756
    %1176 = vmatpush.msra.mxu0 %v752
    %1177 = vmatmul.f32.gmra.mxu0 %v365
    %v1178 = vpop.f32.mrf.mxu0
    %v1179 = vadd.f32 %v1159, %v1178
    %1180 = vdwg.mxu0
    %1181 = vmatpush.msra.mxu0 0.0
    %1182 = vmatpush.msra.mxu0 0.0
    %1183 = vmatpush.msra.mxu0 0.0
    %1184 = vmatpush.msra.mxu0 %v864
    %1185 = vmatpush.msra.mxu0 %v860
    %1186 = vmatpush.msra.mxu0 %v856
    %1187 = vmatpush.msra.mxu0 %v852
    %1188 = vmatpush.msra.mxu0 %v848
    %1189 = vmatpush.msra.mxu0 %v844
    %1190 = vmatpush.msra.mxu0 %v840
    %1191 = vmatpush.msra.mxu0 %v836
    %1192 = vmatpush.msra.mxu0 %v832
    %1193 = vmatpush.msra.mxu0 %v828
    %1194 = vmatpush.msra.mxu0 %v824
    %1195 = vmatpush.msra.mxu0 %v820
    %1196 = vmatpush.msra.mxu0 %v816
    %1197 = vmatmul.f32.gmra.mxu0 %v879
    %v1198 = vpop.f32.mrf.mxu0
    %v1199 = vadd.f32 %v1179, %v1198
    %1200 = vdwg.mxu0
    %1201 = vmatpush.msra.mxu0 %v429
    %1202 = vmatpush.msra.mxu0 %v425
    %1203 = vmatpush.msra.mxu0 %v421
    %1204 = vmatpush.msra.mxu0 %v417
    %1205 = vmatpush.msra.mxu0 %v413
    %1206 = vmatpush.msra.mxu0 %v409
    %1207 = vmatpush.msra.mxu0 %v405
    %1208 = vmatpush.msra.mxu0 %v401
    %1209 = vmatpush.msra.mxu0 %v397
    %1210 = vmatpush.msra.mxu0 %v393
    %1211 = vmatpush.msra.mxu0 %v389
    %1212 = vmatpush.msra.mxu0 %v385
    %1213 = vmatpush.msra.mxu0 %v381
    %1214 = vmatpush.msra.mxu0 %v377
    %1215 = vmatpush.msra.mxu0 %v373
    %1216 = vmatpush.msra.mxu0 %v369
    %1217 = vmatmul.f32.gmra.mxu0 %v359
    %v1218 = vpop.f32.mrf.mxu0
    %v1219 = vadd.f32 %v871, %v1218
    %1220 = vdwg.mxu0
    %1221 = vmatpush.msra.mxu0 %v493
    %1222 = vmatpush.msra.mxu0 %v489
    %1223 = vmatpush.msra.mxu0 %v485
    %1224 = vmatpush.msra.mxu0 %v481
    %1225 = vmatpush.msra.mxu0 %v477
    %1226 = vmatpush.msra.mxu0 %v473
    %1227 = vmatpush.msra.mxu0 %v469
    %1228 = vmatpush.msra.mxu0 %v465
    %1229 = vmatpush.msra.mxu0 %v461
    %1230 = vmatpush.msra.mxu0 %v457
    %1231 = vmatpush.msra.mxu0 %v453
    %1232 = vmatpush.msra.mxu0 %v449
    %1233 = vmatpush.msra.mxu0 %v445
    %1234 = vmatpush.msra.mxu0 %v441
    %1235 = vmatpush.msra.mxu0 %v437
    %1236 = vmatpush.msra.mxu0 %v433
    %1237 = vmatmul.f32.gmra.mxu0 %v360
    %v1238 = vpop.f32.mrf.mxu0
    %v1239 = vadd.f32 %v1219, %v1238
    %1240 = vdwg.mxu0
    %1241 = vmatpush.msra.mxu0 %v557
    %1242 = vmatpush.msra.mxu0 %v553
    %1243 = vmatpush.msra.mxu0 %v549
    %1244 = vmatpush.msra.mxu0 %v545
    %1245 = vmatpush.msra.mxu0 %v541
    %1246 = vmatpush.msra.mxu0 %v537
    %1247 = vmatpush.msra.mxu0 %v533
    %1248 = vmatpush.msra.mxu0 %v529
    %1249 = vmatpush.msra.mxu0 %v525
    %1250 = vmatpush.msra.mxu0 %v521
    %1251 = vmatpush.msra.mxu0 %v517
    %1252 = vmatpush.msra.mxu0 %v513
    %1253 = vmatpush.msra.mxu0 %v509
    %1254 = vmatpush.msra.mxu0 %v505
    %1255 = vmatpush.msra.mxu0 %v501
    %1256 = vmatpush.msra.mxu0 %v497
    %1257 = vmatmul.f32.gmra.mxu0 %v361
    %v1258 = vpop.f32.mrf.mxu0
    %v1259 = vadd.f32 %v1239, %v1258
    %1260 = vdwg.mxu0
    %1261 = vmatpush.msra.mxu0 %v621
    %1262 = vmatpush.msra.mxu0 %v617
    %1263 = vmatpush.msra.mxu0 %v613
    %1264 = vmatpush.msra.mxu0 %v609
    %1265 = vmatpush.msra.mxu0 %v605
    %1266 = vmatpush.msra.mxu0 %v601
    %1267 = vmatpush.msra.mxu0 %v597
    %1268 = vmatpush.msra.mxu0 %v593
    %1269 = vmatpush.msra.mxu0 %v589
    %1270 = vmatpush.msra.mxu0 %v585
    %1271 = vmatpush.msra.mxu0 %v581
    %1272 = vmatpush.msra.mxu0 %v577
    %1273 = vmatpush.msra.mxu0 %v573
    %1274 = vmatpush.msra.mxu0 %v569
    %1275 = vmatpush.msra.mxu0 %v565
    %1276 = vmatpush.msra.mxu0 %v561
    %1277 = vmatmul.f32.gmra.mxu0 %v362
    %v1278 = vpop.f32.mrf.mxu0
    %v1279 = vadd.f32 %v1259, %v1278
    %1280 = vdwg.mxu0
    %1281 = vmatpush.msra.mxu0 %v685
    %1282 = vmatpush.msra.mxu0 %v681
    %1283 = vmatpush.msra.mxu0 %v677
    %1284 = vmatpush.msra.mxu0 %v673
    %1285 = vmatpush.msra.mxu0 %v669
    %1286 = vmatpush.msra.mxu0 %v665
    %1287 = vmatpush.msra.mxu0 %v661
    %1288 = vmatpush.msra.mxu0 %v657
    %1289 = vmatpush.msra.mxu0 %v653
    %1290 = vmatpush.msra.mxu0 %v649
    %1291 = vmatpush.msra.mxu0 %v645
    %1292 = vmatpush.msra.mxu0 %v641
    %1293 = vmatpush.msra.mxu0 %v637
    %1294 = vmatpush.msra.mxu0 %v633
    %1295 = vmatpush.msra.mxu0 %v629
    %1296 = vmatpush.msra.mxu0 %v625
    %1297 = vmatmul.f32.gmra.mxu0 %v363
    %v1298 = vpop.f32.mrf.mxu0
    %v1299 = vadd.f32 %v1279, %v1298
    %1300 = vdwg.mxu0
    %1301 = vmatpush.msra.mxu0 %v749
    %1302 = vmatpush.msra.mxu0 %v745
    %1303 = vmatpush.msra.mxu0 %v741
    %1304 = vmatpush.msra.mxu0 %v737
    %1305 = vmatpush.msra.mxu0 %v733
    %1306 = vmatpush.msra.mxu0 %v729
    %1307 = vmatpush.msra.mxu0 %v725
    %1308 = vmatpush.msra.mxu0 %v721
    %1309 = vmatpush.msra.mxu0 %v717
    %1310 = vmatpush.msra.mxu0 %v713
    %1311 = vmatpush.msra.mxu0 %v709
    %1312 = vmatpush.msra.mxu0 %v705
    %1313 = vmatpush.msra.mxu0 %v701
    %1314 = vmatpush.msra.mxu0 %v697
    %1315 = vmatpush.msra.mxu0 %v693
    %1316 = vmatpush.msra.mxu0 %v689
    %1317 = vmatmul.f32.gmra.mxu0 %v364
    %v1318 = vpop.f32.mrf.mxu0
    %v1319 = vadd.f32 %v1299, %v1318
    %1320 = vdwg.mxu0
    %1321 = vmatpush.msra.mxu0 %v813
    %1322 = vmatpush.msra.mxu0 %v809
    %1323 = vmatpush.msra.mxu0 %v805
    %1324 = vmatpush.msra.mxu0 %v801
    %1325 = vmatpush.msra.mxu0 %v797
    %1326 = vmatpush.msra.mxu0 %v793
    %1327 = vmatpush.msra.mxu0 %v789
    %1328 = vmatpush.msra.mxu0 %v785
    %1329 = vmatpush.msra.mxu0 %v781
    %1330 = vmatpush.msra.mxu0 %v777
    %1331 = vmatpush.msra.mxu0 %v773
    %1332 = vmatpush.msra.mxu0 %v769
    %1333 = vmatpush.msra.mxu0 %v765
    %1334 = vmatpush.msra.mxu0 %v761
    %1335 = vmatpush.msra.mxu0 %v757
    %1336 = vmatpush.msra.mxu0 %v753
    %1337 = vmatmul.f32.gmra.mxu0 %v365
    %v1338 = vpop.f32.mrf.mxu0
    %v1339 = vadd.f32 %v1319, %v1338
    %1340 = vdwg.mxu0
    %1341 = vmatpush.msra.mxu0 0.0
    %1342 = vmatpush.msra.mxu0 0.0
    %1343 = vmatpush.msra.mxu0 0.0
    %1344 = vmatpush.msra.mxu0 %v865
    %1345 = vmatpush.msra.mxu0 %v861
    %1346 = vmatpush.msra.mxu0 %v857
    %1347 = vmatpush.msra.mxu0 %v853
    %1348 = vmatpush.msra.mxu0 %v849
    %1349 = vmatpush.msra.mxu0 %v845
    %1350 = vmatpush.msra.mxu0 %v841
    %1351 = vmatpush.msra.mxu0 %v837
    %1352 = vmatpush.msra.mxu0 %v833
    %1353 = vmatpush.msra.mxu0 %v829
    %1354 = vmatpush.msra.mxu0 %v825
    %1355 = vmatpush.msra.mxu0 %v821
    %1356 = vmatpush.msra.mxu0 %v817
    %1357 = vmatmul.f32.gmra.mxu0 %v879
    %v1358 = vpop.f32.mrf.mxu0
    %v1359 = vadd.f32 %v1339, %v1358
    %1360 = vdwg.mxu0
    %1361 = vmatpush.msra.mxu0 %v430
    %1362 = vmatpush.msra.mxu0 %v426
    %1363 = vmatpush.msra.mxu0 %v422
    %1364 = vmatpush.msra.mxu0 %v418
    %1365 = vmatpush.msra.mxu0 %v414
    %1366 = vmatpush.msra.mxu0 %v410
    %1367 = vmatpush.msra.mxu0 %v406
    %1368 = vmatpush.msra.mxu0 %v402
    %1369 = vmatpush.msra.mxu0 %v398
    %1370 = vmatpush.msra.mxu0 %v394
    %1371 = vmatpush.msra.mxu0 %v390
    %1372 = vmatpush.msra.mxu0 %v386
    %1373 = vmatpush.msra.mxu0 %v382
    %1374 = vmatpush.msra.mxu0 %v378
    %1375 = vmatpush.msra.mxu0 %v374
    %1376 = vmatpush.msra.mxu0 %v370
    %1377 = vmatmul.f32.gmra.mxu0 %v359
    %v1378 = vpop.f32.mrf.mxu0
    %v1379 = vadd.f32 %v872, %v1378
    %1380 = vdwg.mxu0
    %1381 = vmatpush.msra.mxu0 %v494
    %1382 = vmatpush.msra.mxu0 %v490
    %1383 = vmatpush.msra.mxu0 %v486
    %1384 = vmatpush.msra.mxu0 %v482
    %1385 = vmatpush.msra.mxu0 %v478
    %1386 = vmatpush.msra.mxu0 %v474
    %1387 = vmatpush.msra.mxu0 %v470
    %1388 = vmatpush.msra.mxu0 %v466
    %1389 = vmatpush.msra.mxu0 %v462
    %1390 = vmatpush.msra.mxu0 %v458
    %1391 = vmatpush.msra.mxu0 %v454
    %1392 = vmatpush.msra.mxu0 %v450
    %1393 = vmatpush.msra.mxu0 %v446
    %1394 = vmatpush.msra.mxu0 %v442
    %1395 = vmatpush.msra.mxu0 %v438
    %1396 = vmatpush.msra.mxu0 %v434
    %1397 = vmatmul.f32.gmra.mxu0 %v360
    %v1398 = vpop.f32.mrf.mxu0
    %v1399 = vadd.f32 %v1379, %v1398
    %1400 = vdwg.mxu0
    %1401 = vmatpush.msra.mxu0 %v558
    %1402 = vmatpush.msra.mxu0 %v554
    %1403 = vmatpush.msra.mxu0 %v550
    %1404 = vmatpush.msra.mxu0 %v546
    %1405 = vmatpush.msra.mxu0 %v542
    %1406 = vmatpush.msra.mxu0 %v538
    %1407 = vmatpush.msra.mxu0 %v534
    %1408 = vmatpush.msra.mxu0 %v530
    %1409 = vmatpush.msra.mxu0 %v526
    %1410 = vmatpush.msra.mxu0 %v522
    %1411 = vmatpush.msra.mxu0 %v518
    %1412 = vmatpush.msra.mxu0 %v514
    %1413 = vmatpush.msra.mxu0 %v510
    %1414 = vmatpush.msra.mxu0 %v506
    %1415 = vmatpush.msra.mxu0 %v502
    %1416 = vmatpush.msra.mxu0 %v498
    %1417 = vmatmul.f32.gmra.mxu0 %v361
    %v1418 = vpop.f32.mrf.mxu0
    %v1419 = vadd.f32 %v1399, %v1418
    %1420 = vdwg.mxu0
    %1421 = vmatpush.msra.mxu0 %v622
    %1422 = vmatpush.msra.mxu0 %v618
    %1423 = vmatpush.msra.mxu0 %v614
    %1424 = vmatpush.msra.mxu0 %v610
    %1425 = vmatpush.msra.mxu0 %v606
    %1426 = vmatpush.msra.mxu0 %v602
    %1427 = vmatpush.msra.mxu0 %v598
    %1428 = vmatpush.msra.mxu0 %v594
    %1429 = vmatpush.msra.mxu0 %v590
    %1430 = vmatpush.msra.mxu0 %v586
    %1431 = vmatpush.msra.mxu0 %v582
    %1432 = vmatpush.msra.mxu0 %v578
    %1433 = vmatpush.msra.mxu0 %v574
    %1434 = vmatpush.msra.mxu0 %v570
    %1435 = vmatpush.msra.mxu0 %v566
    %1436 = vmatpush.msra.mxu0 %v562
    %1437 = vmatmul.f32.gmra.mxu0 %v362
    %v1438 = vpop.f32.mrf.mxu0
    %v1439 = vadd.f32 %v1419, %v1438
    %1440 = vdwg.mxu0
    %1441 = vmatpush.msra.mxu0 %v686
    %1442 = vmatpush.msra.mxu0 %v682
    %1443 = vmatpush.msra.mxu0 %v678
    %1444 = vmatpush.msra.mxu0 %v674
    %1445 = vmatpush.msra.mxu0 %v670
    %1446 = vmatpush.msra.mxu0 %v666
    %1447 = vmatpush.msra.mxu0 %v662
    %1448 = vmatpush.msra.mxu0 %v658
    %1449 = vmatpush.msra.mxu0 %v654
    %1450 = vmatpush.msra.mxu0 %v650
    %1451 = vmatpush.msra.mxu0 %v646
    %1452 = vmatpush.msra.mxu0 %v642
    %1453 = vmatpush.msra.mxu0 %v638
    %1454 = vmatpush.msra.mxu0 %v634
    %1455 = vmatpush.msra.mxu0 %v630
    %1456 = vmatpush.msra.mxu0 %v626
    %1457 = vmatmul.f32.gmra.mxu0 %v363
    %v1458 = vpop.f32.mrf.mxu0
    %v1459 = vadd.f32 %v1439, %v1458
    %1460 = vdwg.mxu0
    %1461 = vmatpush.msra.mxu0 %v750
    %1462 = vmatpush.msra.mxu0 %v746
    %1463 = vmatpush.msra.mxu0 %v742
    %1464 = vmatpush.msra.mxu0 %v738
    %1465 = vmatpush.msra.mxu0 %v734
    %1466 = vmatpush.msra.mxu0 %v730
    %1467 = vmatpush.msra.mxu0 %v726
    %1468 = vmatpush.msra.mxu0 %v722
    %1469 = vmatpush.msra.mxu0 %v718
    %1470 = vmatpush.msra.mxu0 %v714
    %1471 = vmatpush.msra.mxu0 %v710
    %1472 = vmatpush.msra.mxu0 %v706
    %1473 = vmatpush.msra.mxu0 %v702
    %1474 = vmatpush.msra.mxu0 %v698
    %1475 = vmatpush.msra.mxu0 %v694
    %1476 = vmatpush.msra.mxu0 %v690
    %1477 = vmatmul.f32.gmra.mxu0 %v364
    %v1478 = vpop.f32.mrf.mxu0
    %v1479 = vadd.f32 %v1459, %v1478
    %1480 = vdwg.mxu0
    %1481 = vmatpush.msra.mxu0 %v814
    %1482 = vmatpush.msra.mxu0 %v810
    %1483 = vmatpush.msra.mxu0 %v806
    %1484 = vmatpush.msra.mxu0 %v802
    %1485 = vmatpush.msra.mxu0 %v798
    %1486 = vmatpush.msra.mxu0 %v794
    %1487 = vmatpush.msra.mxu0 %v790
    %1488 = vmatpush.msra.mxu0 %v786
    %1489 = vmatpush.msra.mxu0 %v782
    %1490 = vmatpush.msra.mxu0 %v778
    %1491 = vmatpush.msra.mxu0 %v774
    %1492 = vmatpush.msra.mxu0 %v770
    %1493 = vmatpush.msra.mxu0 %v766
    %1494 = vmatpush.msra.mxu0 %v762
    %1495 = vmatpush.msra.mxu0 %v758
    %1496 = vmatpush.msra.mxu0 %v754
    %1497 = vmatmul.f32.gmra.mxu0 %v365
    %v1498 = vpop.f32.mrf.mxu0
    %v1499 = vadd.f32 %v1479, %v1498
    %1500 = vdwg.mxu0
    %1501 = vmatpush.msra.mxu0 0.0
    %1502 = vmatpush.msra.mxu0 0.0
    %1503 = vmatpush.msra.mxu0 0.0
    %1504 = vmatpush.msra.mxu0 %v866
    %1505 = vmatpush.msra.mxu0 %v862
    %1506 = vmatpush.msra.mxu0 %v858
    %1507 = vmatpush.msra.mxu0 %v854
    %1508 = vmatpush.msra.mxu0 %v850
    %1509 = vmatpush.msra.mxu0 %v846
    %1510 = vmatpush.msra.mxu0 %v842
    %1511 = vmatpush.msra.mxu0 %v838
    %1512 = vmatpush.msra.mxu0 %v834
    %1513 = vmatpush.msra.mxu0 %v830
    %1514 = vmatpush.msra.mxu0 %v826
    %1515 = vmatpush.msra.mxu0 %v822
    %1516 = vmatpush.msra.mxu0 %v818
    %1517 = vmatmul.f32.gmra.mxu0 %v879
    %v1518 = vpop.f32.mrf.mxu0
    %v1519 = vadd.f32 %v1499, %v1518
    %1520 = vdwg.mxu0
    %v1521 = vmax.f32 %v1039, 0.0
    %v1522 = vmax.f32 %v1199, 0.0
    %v1523 = vmax.f32 %v1359, 0.0
    %v1524 = vmax.f32 %v1519, 0.0
    %v1525 = vld [vmem:[%s5] sm:$0xff]
    %v1526 = vld [vmem:[%s5 + $0x8] sm:$0xff]
    %v1527 = vld [vmem:[%s5 + $0x10] sm:$0xff]
    %v1528 = vld [vmem:[%s5 + $0x18] sm:$0xff]
    %v1529 = vld [vmem:[%s5 + $0x20] sm:$0xff]
    %v1530 = vld [vmem:[%s5 + $0x28] sm:$0xff]
    %v1531 = vld [vmem:[%s5 + $0x30] sm:$0xff]
    %v1532 = vld [vmem:[%s5 + $0x38] sm:$0xff]
    %v1533 = vld [vmem:[%s5 + $0x40] sm:$0xff]
    %v1534 = vld [vmem:[%s5 + $0x48] sm:$0xff]
    %v1535 = vld [vmem:[%s5 + $0x50] sm:$0xff]
    %v1536 = vld [vmem:[%s5 + $0x58] sm:$0xff]
    %v1537 = vld [vmem:[%s5 + $0x60] sm:$0xff]
    %v1538 = vld [vmem:[%s5 + $0x68] sm:$0xff]
    %v1539 = vld [vmem:[%s5 + $0x70] sm:$0xff]
    %v1540 = vld [vmem:[%s5 + $0x78] sm:$0xff]
    %v1541 = vld [vmem:[%s5 + $0x80] sm:$0xff]
    %v1542 = vld [vmem:[%s5 + $0x88] sm:$0xff]
    %v1543 = vld [vmem:[%s5 + $0x90] sm:$0xff]
    %v1544 = vld [vmem:[%s5 + $0x98] sm:$0xff]
    %v1545 = vld [vmem:[%s5 + $0xa0] sm:$0xff]
    %v1546 = vld [vmem:[%s5 + $0xa8] sm:$0xff]
    %v1547 = vld [vmem:[%s5 + $0xb0] sm:$0xff]
    %v1548 = vld [vmem:[%s5 + $0xb8] sm:$0xff]
    %v1549 = vld [vmem:[%s5 + $0xc0] sm:$0xff]
    %v1550 = vld [vmem:[%s5 + $0xc8] sm:$0xff]
    %v1551 = vld [vmem:[%s5 + $0xd0] sm:$0xff]
    %v1552 = vld [vmem:[%s5 + $0xd8] sm:$0xff]
    %v1553 = vld [vmem:[%s5 + $0xe0] sm:$0xff]
    %v1554 = vld [vmem:[%s5 + $0xe8] sm:$0xff]
    %v1555 = vld [vmem:[%s5 + $0xf0] sm:$0xff]
    %v1556 = vld [vmem:[%s5 + $0xf8] sm:$0xff]
    %v1557 = vld [vmem:[%s5 + $0x100] sm:$0xff]
    %v1558 = vld [vmem:[%s5 + $0x108] sm:$0xff]
    %v1559 = vld [vmem:[%s5 + $0x110] sm:$0xff]
    %v1560 = vld [vmem:[%s5 + $0x118] sm:$0xff]
    %v1561 = vld [vmem:[%s5 + $0x120] sm:$0xff]
    %v1562 = vld [vmem:[%s5 + $0x128] sm:$0xff]
    %v1563 = vld [vmem:[%s5 + $0x130] sm:$0xff]
    %v1564 = vld [vmem:[%s5 + $0x138] sm:$0xff]
    %v1565 = vld [vmem:[%s5 + $0x140] sm:$0xff]
    %v1566 = vld [vmem:[%s5 + $0x148] sm:$0xff]
    %v1567 = vld [vmem:[%s5 + $0x150] sm:$0xff]
    %v1568 = vld [vmem:[%s5 + $0x158] sm:$0xff]
    %v1569 = vld [vmem:[%s5 + $0x160] sm:$0xff]
    %v1570 = vld [vmem:[%s5 + $0x168] sm:$0xff]
    %v1571 = vld [vmem:[%s5 + $0x170] sm:$0xff]
    %v1572 = vld [vmem:[%s5 + $0x178] sm:$0xff]
    %v1573 = vld [vmem:[%s5 + $0x180] sm:$0xff]
    %v1574 = vld [vmem:[%s5 + $0x188] sm:$0xff]
    %v1575 = vld [vmem:[%s5 + $0x190] sm:$0xff]
    %v1576 = vld [vmem:[%s5 + $0x198] sm:$0xff]
    %v1577 = vld [vmem:[%s5 + $0x1a0] sm:$0xff]
    %v1578 = vld [vmem:[%s5 + $0x1a8] sm:$0xff]
    %v1579 = vld [vmem:[%s5 + $0x1b0] sm:$0xff]
    %v1580 = vld [vmem:[%s5 + $0x1b8] sm:$0xff]
    %v1581 = vld [vmem:[%s5 + $0x1c0] sm:$0xff]
    %v1582 = vld [vmem:[%s5 + $0x1c8] sm:$0xff]
    %v1583 = vld [vmem:[%s5 + $0x1d0] sm:$0xff]
    %v1584 = vld [vmem:[%s5 + $0x1d8] sm:$0xff]
    %v1585 = vld [vmem:[%s5 + $0x1e0] sm:$0xff]
    %v1586 = vld [vmem:[%s5 + $0x1e8] sm:$0xff]
    %v1587 = vld [vmem:[%s5 + $0x1f0] sm:$0xf]
    %v1588 = vld [vmem:[#allocation10] sm:$0x1]
    %v1590 = vperm.slane %v1588, 0
    %vm1592 = vcmask 949248
    %v1594 = vsel %vm1592, %v1524, 0
    %vm1596 = vcmask 1043456
    %v1598 = vsel %vm1596, %v1587, 0
    %1600 = vmatpush.msra.mxu0 %v1540
    %1601 = vmatpush.msra.mxu0 %v1539
    %1602 = vmatpush.msra.mxu0 %v1538
    %1603 = vmatpush.msra.mxu0 %v1537
    %1604 = vmatpush.msra.mxu0 %v1536
    %1605 = vmatpush.msra.mxu0 %v1535
    %1606 = vmatpush.msra.mxu0 %v1534
    %1607 = vmatpush.msra.mxu0 %v1533
    %1608 = vmatpush.msra.mxu0 %v1532
    %1609 = vmatpush.msra.mxu0 %v1531
    %1610 = vmatpush.msra.mxu0 %v1530
    %1611 = vmatpush.msra.mxu0 %v1529
    %1612 = vmatpush.msra.mxu0 %v1528
    %1613 = vmatpush.msra.mxu0 %v1527
    %1614 = vmatpush.msra.mxu0 %v1526
    %1615 = vmatpush.msra.mxu0 %v1525
    %1616 = vmatmul.f32.gmra.mxu0 %v1521
    %v1617 = vpop.f32.mrf.mxu0
    %v1618 = vadd.f32 %v1590, %v1617
    %1619 = vdwg.mxu0
    %1620 = vmatpush.msra.mxu0 %v1556
    %1621 = vmatpush.msra.mxu0 %v1555
    %1622 = vmatpush.msra.mxu0 %v1554
    %1623 = vmatpush.msra.mxu0 %v1553
    %1624 = vmatpush.msra.mxu0 %v1552
    %1625 = vmatpush.msra.mxu0 %v1551
    %1626 = vmatpush.msra.mxu0 %v1550
    %1627 = vmatpush.msra.mxu0 %v1549
    %1628 = vmatpush.msra.mxu0 %v1548
    %1629 = vmatpush.msra.mxu0 %v1547
    %1630 = vmatpush.msra.mxu0 %v1546
    %1631 = vmatpush.msra.mxu0 %v1545
    %1632 = vmatpush.msra.mxu0 %v1544
    %1633 = vmatpush.msra.mxu0 %v1543
    %1634 = vmatpush.msra.mxu0 %v1542
    %1635 = vmatpush.msra.mxu0 %v1541
    %1636 = vmatmul.f32.gmra.mxu0 %v1522
    %v1637 = vpop.f32.mrf.mxu0
    %v1638 = vadd.f32 %v1618, %v1637
    %1639 = vdwg.mxu0
    %1640 = vmatpush.msra.mxu0 %v1572
    %1641 = vmatpush.msra.mxu0 %v1571
    %1642 = vmatpush.msra.mxu0 %v1570
    %1643 = vmatpush.msra.mxu0 %v1569
    %1644 = vmatpush.msra.mxu0 %v1568
    %1645 = vmatpush.msra.mxu0 %v1567
    %1646 = vmatpush.msra.mxu0 %v1566
    %1647 = vmatpush.msra.mxu0 %v1565
    %1648 = vmatpush.msra.mxu0 %v1564
    %1649 = vmatpush.msra.mxu0 %v1563
    %1650 = vmatpush.msra.mxu0 %v1562
    %1651 = vmatpush.msra.mxu0 %v1561
    %1652 = vmatpush.msra.mxu0 %v1560
    %1653 = vmatpush.msra.mxu0 %v1559
    %1654 = vmatpush.msra.mxu0 %v1558
    %1655 = vmatpush.msra.mxu0 %v1557
    %1656 = vmatmul.f32.gmra.mxu0 %v1523
    %v1657 = vpop.f32.mrf.mxu0
    %v1658 = vadd.f32 %v1638, %v1657
    %1659 = vdwg.mxu0
    %1660 = vmatpush.msra.mxu0 0.0
    %1661 = vmatpush.msra.mxu0 %v1598
    %1662 = vmatpush.msra.mxu0 %v1586
    %1663 = vmatpush.msra.mxu0 %v1585
    %1664 = vmatpush.msra.mxu0 %v1584
    %1665 = vmatpush.msra.mxu0 %v1583
    %1666 = vmatpush.msra.mxu0 %v1582
    %1667 = vmatpush.msra.mxu0 %v1581
    %1668 = vmatpush.msra.mxu0 %v1580
    %1669 = vmatpush.msra.mxu0 %v1579
    %1670 = vmatpush.msra.mxu0 %v1578
    %1671 = vmatpush.msra.mxu0 %v1577
    %1672 = vmatpush.msra.mxu0 %v1576
    %1673 = vmatpush.msra.mxu0 %v1575
    %1674 = vmatpush.msra.mxu0 %v1574
    %1675 = vmatpush.msra.mxu0 %v1573
    %1676 = vmatmul.f32.gmra.mxu0 %v1594
    %v1677 = vpop.f32.mrf.mxu0
    %v1678 = vadd.f32 %v1658, %v1677
    %1679 = vdwg.mxu0
    %v1680 = vmax.f32 %v1678, 0.0
    %vm1681 = vcmask 814080
    %1682 = vst.msk [vmem:[%s7] sm:$0xf] %vm1681, %v1680
    // Predicated region
    $region54: #{flexible_model_forward.7} parent=1 // pred_check
      _
    $region55: #{flexible_model_forward.7} parent=1 // pred_check_branch
      %1684 = sbr.rel (0) target = $region57
    $region56: #{flexible_model_forward.7} parent=1 // pred_region
      _
    $region57: #{flexible_model_forward.7} parent=1 // pred_fallthru
      _
    // Predicated region
    $region58: #{flexible_model_forward.7} parent=1 // pred_check
      _
    $region59: #{flexible_model_forward.7} parent=1 // pred_check_branch
      %1686 = sbr.rel (0) target = $region61
    $region60: #{flexible_model_forward.7} parent=1 // pred_region
      _
    $region61: #{flexible_model_forward.7} parent=1 // pred_fallthru
      _
    %1687 = vsyncpa [#allocation3], 1
    %1688 = vsyncpa [#allocation5], 1
    %1689 = vsyncpa [#allocation8], 1
    %1690 = vsyncpa [#allocation11], 1

</llo_original>
